<compile_context>
chip_gen: v7x
topology: tpu7x:2x2x1
jax: 0.10.0
libtpu: 0.0.40
codegen_flags: <defaults>
</compile_context>

<pallas_src>
import functools
import math

import jax
import jax.numpy as jnp
from jax.experimental import pallas as pl
from jax.experimental.pallas import tpu as pltpu


# ----------------------------------------------------------------------------
# In-kernel math helpers (pure jnp, traced inside Pallas bodies, f32 math).
# ----------------------------------------------------------------------------
def _gelu(x):
    # TODO(synk): torch nn.GELU default is exact erf-GELU; tanh approximation
    # is used for a guaranteed TPU transcendental (EUP) lowering.
    return 0.5 * x * (1.0 + jnp.tanh(0.7978845608028654 * (x + 0.044715 * x * x * x)))


def _layer_norm(x, gamma, beta, eps=1e-5):
    mean = jnp.mean(x, axis=-1, keepdims=True)
    var = jnp.mean((x - mean) ** 2, axis=-1, keepdims=True)
    return (x - mean) * jax.lax.rsqrt(var + eps) * gamma + beta


# ----------------------------------------------------------------------------
# Kernel 1: fused feature extractor + feature projection.
# Per final frame, the stride==kernel conv stack is a chain of dense matmuls
# using block-diagonal weights (built at init): no in-kernel reshape / gather.
# ----------------------------------------------------------------------------
def _frontend_kernel(x_ref, w1_ref, b1_ref, w2_ref, b2_ref, w3_ref, b3_ref,
                     lng_ref, lnb_ref, wp_ref, bp_ref, o_ref):
    x = x_ref[0]                                                 # (S, 64) bf16
    h = jnp.dot(x, w1_ref[...], preferred_element_type=jnp.float32) + b1_ref[...]
    h = _gelu(h)                                                 # (S, 1024)
    h = jnp.dot(h.astype(jnp.bfloat16), w2_ref[...],
                preferred_element_type=jnp.float32) + b2_ref[...]
    h = _gelu(h)                                                 # (S, 256)
    h = jnp.dot(h.astype(jnp.bfloat16), w3_ref[...],
                preferred_element_type=jnp.float32) + b3_ref[...]
    h = _gelu(h)                                                 # (S, 128)
    h = _layer_norm(h, lng_ref[...], lnb_ref[...])
    h = jnp.dot(h.astype(jnp.bfloat16), wp_ref[...],
                preferred_element_type=jnp.float32) + bp_ref[...]
    o_ref[0] = h.astype(o_ref.dtype)


def pallas_frontend(wav_patches, fp):
    B, S, RAW = wav_patches.shape
    H = fp["wp"].shape[1]

    def const(arr):
        shape = arr.shape
        return pl.BlockSpec(shape, lambda b, _r=len(shape): (0,) * _r)

    return pl.pallas_call(
        _frontend_kernel,
        out_shape=jax.ShapeDtypeStruct((B, S, H), jnp.bfloat16),
        grid=(B,),
        in_specs=[
            pl.BlockSpec((1, S, RAW), lambda b: (b, 0, 0)),
            const(fp["w1"]), const(fp["b1"]),
            const(fp["w2"]), const(fp["b2"]),
            const(fp["w3"]), const(fp["b3"]),
            const(fp["ln_g"]), const(fp["ln_b"]),
            const(fp["wp"]), const(fp["bp"]),
        ],
        out_specs=pl.BlockSpec((1, S, H), lambda b: (b, 0, 0)),
        compiler_params=pltpu.CompilerParams(dimension_semantics=("parallel",)),
    )(wav_patches, fp["w1"], fp["b1"], fp["w2"], fp["b2"], fp["w3"], fp["b3"],
      fp["ln_g"], fp["ln_b"], fp["wp"], fp["bp"])


# ----------------------------------------------------------------------------
# Kernel 2: fused transformer encoder (ALL layers in one pallas_call).
# grid = (B, L): batch "parallel" (v7x megacore), layer "arbitrary" innermost.
# The activation is carried across layers in a VMEM scratch; each grid step
# writes exactly one (layer, batch) block of the [L, B, S, H] hidden-state slab.
# ----------------------------------------------------------------------------
def _encoder_kernel(x_ref,
                    wqkv_ref, bqkv_ref, wo_ref, bo_ref,
                    ln1g_ref, ln1b_ref,
                    wf1_ref, bf1_ref, wf2_ref, bf2_ref,
                    ln2g_ref, ln2b_ref,
                    slab_ref, act_ref, *, num_heads):
    layer = pl.program_id(1)

    @pl.when(layer == 0)
    def _():
        act_ref[...] = x_ref[0].astype(jnp.float32)

    x = act_ref[...]                                             # (S, H) f32
    S, H = x.shape
    xb = x.astype(jnp.bfloat16)

    # Fused QKV projection: one MXU pass with N = 3H (scale folded into weights).
    qkv = jnp.dot(xb, wqkv_ref[0], preferred_element_type=jnp.float32) + bqkv_ref[0]
    q = qkv[:, :H].astype(jnp.bfloat16)
    k = qkv[:, H:2 * H].astype(jnp.bfloat16)
    v = qkv[:, 2 * H:].astype(jnp.bfloat16)

    if num_heads == 1:
        # Fully lane-aligned single-head path (dh == H == 128).
        s = jax.lax.dot_general(q, k, (((1,), (1,)), ((), ())),
                                preferred_element_type=jnp.float32)     # (S, S)
        s = s - jnp.max(s, axis=-1, keepdims=True)
        p = jnp.exp(s)
        p = p * pl.reciprocal(jnp.sum(p, axis=-1, keepdims=True), approx=True)
        ctx = jnp.dot(p.astype(jnp.bfloat16), v,
                      preferred_element_type=jnp.float32)               # (S, H)
    else:
        # Batched-over-heads fallback (no per-head Python loop / lane slicing).
        dh = H // num_heads
        q3 = q.reshape(S, num_heads, dh)
        k3 = k.reshape(S, num_heads, dh)
        v3 = v.reshape(S, num_heads, dh)
        s = jnp.einsum("qnd,knd->nqk", q3, k3, preferred_element_type=jnp.float32)
        s = s - jnp.max(s, axis=-1, keepdims=True)
        p = jnp.exp(s)
        p = p * pl.reciprocal(jnp.sum(p, axis=-1, keepdims=True), approx=True)
        ctx = jnp.einsum("nqk,knd->qnd", p.astype(jnp.bfloat16), v3,
                         preferred_element_type=jnp.float32).reshape(S, H)

    attn = jnp.dot(ctx.astype(jnp.bfloat16), wo_ref[0],
                   preferred_element_type=jnp.float32) + bo_ref[0]
    h1 = _layer_norm(x + attn, ln1g_ref[0], ln1b_ref[0])

    ff = jnp.dot(h1.astype(jnp.bfloat16), wf1_ref[0],
                 preferred_element_type=jnp.float32) + bf1_ref[0]
    ff = _gelu(ff)
    ff = jnp.dot(ff.astype(jnp.bfloat16), wf2_ref[0],
                 preferred_element_type=jnp.float32) + bf2_ref[0]
    y = _layer_norm(h1 + ff, ln2g_ref[0], ln2b_ref[0])

    act_ref[...] = y                              # carry to next layer (VMEM only)
    slab_ref[0, 0] = y.astype(slab_ref.dtype)     # single HBM write per layer


def pallas_encoder(h, ep, *, num_heads):
    B, S, H = h.shape
    L = ep["wqkv"].shape[0]

    def wspec(arr):
        shape = arr.shape
        return pl.BlockSpec((1,) + shape[1:],
                            lambda b, l, _r=len(shape): (l,) + (0,) * (_r - 1))

    return pl.pallas_call(
        functools.partial(_encoder_kernel, num_heads=num_heads),
        out_shape=jax.ShapeDtypeStruct((L, B, S, H), jnp.float32),
        grid=(B, L),
        in_specs=[
            pl.BlockSpec((1, S, H), lambda b, l: (b, 0, 0)),     # only read at l==0
            wspec(ep["wqkv"]), wspec(ep["bqkv"]),
            wspec(ep["wo"]), wspec(ep["bo"]),
            wspec(ep["ln1_g"]), wspec(ep["ln1_b"]),
            wspec(ep["wf1"]), wspec(ep["bf1"]),
            wspec(ep["wf2"]), wspec(ep["bf2"]),
            wspec(ep["ln2_g"]), wspec(ep["ln2_b"]),
        ],
        out_specs=pl.BlockSpec((1, 1, S, H), lambda b, l: (l, b, 0, 0)),
        scratch_shapes=[pltpu.VMEM((S, H), jnp.float32)],        # inter-layer carry
        compiler_params=pltpu.CompilerParams(
            dimension_semantics=("parallel", "arbitrary"),
        ),
    )(h, ep["wqkv"], ep["bqkv"], ep["wo"], ep["bo"],
      ep["ln1_g"], ep["ln1_b"], ep["wf1"], ep["bf1"], ep["wf2"], ep["bf2"],
      ep["ln2_g"], ep["ln2_b"])


# ----------------------------------------------------------------------------
# Parameter construction (deterministic, synthetic "SSL model").
# Weights bf16 (MXU path), biases / LN params f32 (VPU path).
# ----------------------------------------------------------------------------
def _block_diag(w, n):
    K, N = w.shape
    out = jnp.zeros((n * K, n * N), w.dtype)
    for i in range(n):
        out = out.at[i * K:(i + 1) * K, i * N:(i + 1) * N].set(w)
    return out


def init_params(key, *, hidden=128, ffn=512, num_layers=3, num_heads=1):
    ks = iter(jax.random.split(key, 32))

    # Synthetic conv feature extractor: stride==kernel Conv1d + GELU stages with
    # (k, s) = (8,8), (4,4), (2,2): 64 raw samples -> one 128-channel frame.
    w1 = 0.05 * jax.random.normal(next(ks), (8, 128), jnp.float32)        # Cin=1
    b1 = 0.01 * jax.random.normal(next(ks), (1, 128), jnp.float32)
    w2 = 0.05 * jax.random.normal(next(ks), (4 * 128, 128), jnp.float32)
    b2 = 0.01 * jax.random.normal(next(ks), (1, 128), jnp.float32)
    w3 = 0.05 * jax.random.normal(next(ks), (2 * 128, 128), jnp.float32)
    b3 = 0.01 * jax.random.normal(next(ks), (1, 128), jnp.float32)

    frontend = {
        # Grouped (per final frame) block-diagonal form: the whole conv stack is
        # a dense matmul chain with no in-kernel reshape, and the first matmul
        # sees contraction depth 64 instead of the lane-sparse K=8.
        "w1": _block_diag(w1, 8).astype(jnp.bfloat16),    # (64, 1024)
        "b1": jnp.tile(b1, (1, 8)),                       # (1, 1024)
        "w2": _block_diag(w2, 2).astype(jnp.bfloat16),    # (1024, 256)
        "b2": jnp.tile(b2, (1, 2)),                       # (1, 256)
        "w3": w3.astype(jnp.bfloat16),                    # (256, 128)
        "b3": b3,
        "ln_g": jnp.ones((1, 128), jnp.float32),
        "ln_b": jnp.zeros((1, 128), jnp.float32),
        "wp": (0.05 * jax.random.normal(next(ks), (128, hidden), jnp.float32)
               ).astype(jnp.bfloat16),
        "bp": jnp.zeros((1, hidden), jnp.float32),
    }

    L, H, F = num_layers, hidden, ffn
    scale = 1.0 / math.sqrt(H // num_heads)
    wqkv = 0.05 * jax.random.normal(next(ks), (L, H, 3 * H), jnp.float32)
    wqkv = wqkv.at[:, :, :H].multiply(scale)              # fold 1/sqrt(dh) into q
    encoder = {
        "wqkv": wqkv.astype(jnp.bfloat16),
        "bqkv": jnp.zeros((L, 1, 3 * H), jnp.float32),
        "wo": (0.05 * jax.random.normal(next(ks), (L, H, H), jnp.float32)
               ).astype(jnp.bfloat16),
        "bo": jnp.zeros((L, 1, H), jnp.float32),
        "ln1_g": jnp.ones((L, 1, H), jnp.float32),
        "ln1_b": jnp.zeros((L, 1, H), jnp.float32),
        "wf1": (0.05 * jax.random.normal(next(ks), (L, H, F), jnp.float32)
                ).astype(jnp.bfloat16),
        "bf1": jnp.zeros((L, 1, F), jnp.float32),
        "wf2": (0.05 * jax.random.normal(next(ks), (L, F, H), jnp.float32)
                ).astype(jnp.bfloat16),
        "bf2": jnp.zeros((L, 1, H), jnp.float32),
        "ln2_g": jnp.ones((L, 1, H), jnp.float32),
        "ln2_b": jnp.zeros((L, 1, H), jnp.float32),
    }
    return {"frontend": frontend, "encoder": encoder}


# ----------------------------------------------------------------------------
# SSLWrapper.forward equivalent (two pallas_calls total).
# ----------------------------------------------------------------------------
def make_forward(num_heads):
    @jax.jit
    def forward(wav, params):
        B, T = wav.shape
        raw_per_frame = 64                                # total conv stride 8*4*2
        frames = T // raw_per_frame
        patches = wav[:, :frames * raw_per_frame].reshape(
            B, frames, raw_per_frame).astype(jnp.bfloat16)

        # Fused conv feature extractor + LayerNorm + feature projection.
        h = pallas_frontend(patches, params["frontend"])          # [B, S, H] bf16

        # TODO(synk): wav2vec2 positional conv embedding + encoder-level
        # LayerNorm omitted in this synthetic mini-model.

        # Fused transformer encoder; every layer's hidden state lands directly
        # in the [L, B, S, H] slab (== torch.stack(hidden_states[-L:])).
        slab = pallas_encoder(h, params["encoder"], num_heads=num_heads)
        return slab                                               # [L, B, S, H]

    return forward


# ----------------------------------------------------------------------------
if __name__ == "__main__":
    key = jax.random.PRNGKey(0)
    k_wav, k_param = jax.random.split(key)

    # Small synthetic configuration (lane-friendly dims: multiples of 128).
    B, T = 2, 4096
    hidden, ffn, num_layers, num_heads = 128, 512, 3, 1

    wav = 0.1 * jax.random.normal(k_wav, (B, T), jnp.float32)
    params = init_params(k_param, hidden=hidden, ffn=ffn,
                         num_layers=num_layers, num_heads=num_heads)

    forward = make_forward(num_heads)
    feat = forward(wav, params)
    feat = jax.block_until_ready(feat)

    expected_seq = T // 64
    assert feat.shape == (num_layers, B, expected_seq, hidden), feat.shape
    assert bool(jnp.all(jnp.isfinite(feat)))
    print("KERNEL_OK")
</pallas_src>

<mosaic_0001>
module attributes {stable_mosaic.version = 11 : i64} {
  func.func @_frontend_kernel(%arg0: i32, %arg1: memref<1x64x64xbf16, #tpu.memory_space<vmem>>, %arg2: memref<64x1024xbf16, #tpu.memory_space<vmem>>, %arg3: memref<1x1024xf32, #tpu.memory_space<vmem>>, %arg4: memref<1024x256xbf16, #tpu.memory_space<vmem>>, %arg5: memref<1x256xf32, #tpu.memory_space<vmem>>, %arg6: memref<256x128xbf16, #tpu.memory_space<vmem>>, %arg7: memref<1x128xf32, #tpu.memory_space<vmem>>, %arg8: memref<1x128xf32, #tpu.memory_space<vmem>>, %arg9: memref<1x128xf32, #tpu.memory_space<vmem>>, %arg10: memref<128x128xbf16, #tpu.memory_space<vmem>>, %arg11: memref<1x128xf32, #tpu.memory_space<vmem>>, %arg12: memref<1x64x128xbf16, #tpu.memory_space<vmem>>) attributes {dimension_semantics = [#tpu.dimension_semantics<parallel>], iteration_bounds = array<i64: 2>, scalar_prefetch = 0 : i64, scratch_operands = 0 : i64, tpu.core_type = #tpu.core_type<tc>, window_params = [{transform_indices = @transform_0, window_bounds = array<i64: 1, 64, 64>}, {pipeline_mode = #tpu.pipeline_mode<synchronous>, transform_indices = @transform_1, window_bounds = array<i64: 64, 1024>}, {pipeline_mode = #tpu.pipeline_mode<synchronous>, transform_indices = @transform_2, window_bounds = array<i64: 1, 1024>}, {pipeline_mode = #tpu.pipeline_mode<synchronous>, transform_indices = @transform_3, window_bounds = array<i64: 1024, 256>}, {pipeline_mode = #tpu.pipeline_mode<synchronous>, transform_indices = @transform_4, window_bounds = array<i64: 1, 256>}, {pipeline_mode = #tpu.pipeline_mode<synchronous>, transform_indices = @transform_5, window_bounds = array<i64: 256, 128>}, {pipeline_mode = #tpu.pipeline_mode<synchronous>, transform_indices = @transform_6, window_bounds = array<i64: 1, 128>}, {pipeline_mode = #tpu.pipeline_mode<synchronous>, transform_indices = @transform_7, window_bounds = array<i64: 1, 128>}, {pipeline_mode = #tpu.pipeline_mode<synchronous>, transform_indices = @transform_8, window_bounds = array<i64: 1, 128>}, {pipeline_mode = #tpu.pipeline_mode<synchronous>, transform_indices = @transform_9, window_bounds = array<i64: 128, 128>}, {pipeline_mode = #tpu.pipeline_mode<synchronous>, transform_indices = @transform_10, window_bounds = array<i64: 1, 128>}, {transform_indices = @transform_11, window_bounds = array<i64: 1, 64, 128>}]} {
    %c0 = arith.constant 0 : index
    %c0_0 = arith.constant 0 : index
    %c0_1 = arith.constant 0 : index
    %0 = vector.load %arg1[%c0, %c0_0, %c0_1] : memref<1x64x64xbf16, #tpu.memory_space<vmem>>, vector<1x64x64xbf16>
    %1 = vector.shape_cast %0 : vector<1x64x64xbf16> to vector<64x64xbf16>
    %c0_2 = arith.constant 0 : index
    %c0_3 = arith.constant 0 : index
    %2 = vector.load %arg2[%c0_2, %c0_3] : memref<64x1024xbf16, #tpu.memory_space<vmem>>, vector<64x1024xbf16>
    %cst = arith.constant dense<0.000000e+00> : vector<64x1024xf32>
    %3 = tpu.matmul %1, %2, %cst {dimension_numbers = #tpu.dot_dimension_numbers<[1], [0], [0], [1], [0, 0, 1, 1], [], []>} : vector<64x64xbf16>, vector<64x1024xbf16>, vector<64x1024xf32> -> vector<64x1024xf32>
    %c0_4 = arith.constant 0 : index
    %c0_5 = arith.constant 0 : index
    %4 = vector.load %arg3[%c0_4, %c0_5] : memref<1x1024xf32, #tpu.memory_space<vmem>>, vector<1x1024xf32>
    %5 = vector.broadcast %4 : vector<1x1024xf32> to vector<64x1024xf32>
    %6 = arith.addf %3, %5 : vector<64x1024xf32>
    %cst_6 = arith.constant 5.000000e-01 : f32
    %7 = vector.broadcast %cst_6 : f32 to vector<64x1024xf32>
    %8 = arith.mulf %7, %6 : vector<64x1024xf32>
    %cst_7 = arith.constant 4.471500e-02 : f32
    %9 = vector.broadcast %cst_7 : f32 to vector<64x1024xf32>
    %10 = arith.mulf %9, %6 : vector<64x1024xf32>
    %11 = arith.mulf %10, %6 : vector<64x1024xf32>
    %12 = arith.mulf %11, %6 : vector<64x1024xf32>
    %13 = arith.addf %6, %12 : vector<64x1024xf32>
    %cst_8 = arith.constant 0.797884583 : f32
    %14 = vector.broadcast %cst_8 : f32 to vector<64x1024xf32>
    %15 = arith.mulf %14, %13 : vector<64x1024xf32>
    %16 = math.tanh %15 : vector<64x1024xf32>
    %cst_9 = arith.constant 1.000000e+00 : f32
    %17 = vector.broadcast %cst_9 : f32 to vector<64x1024xf32>
    %18 = arith.addf %17, %16 : vector<64x1024xf32>
    %19 = arith.mulf %8, %18 : vector<64x1024xf32>
    %20 = arith.truncf %19 : vector<64x1024xf32> to vector<64x1024xbf16>
    %c0_10 = arith.constant 0 : index
    %c0_11 = arith.constant 0 : index
    %21 = vector.load %arg4[%c0_10, %c0_11] : memref<1024x256xbf16, #tpu.memory_space<vmem>>, vector<1024x256xbf16>
    %cst_12 = arith.constant dense<0.000000e+00> : vector<64x256xf32>
    %22 = tpu.matmul %20, %21, %cst_12 {dimension_numbers = #tpu.dot_dimension_numbers<[1], [0], [0], [1], [0, 0, 1, 1], [], []>} : vector<64x1024xbf16>, vector<1024x256xbf16>, vector<64x256xf32> -> vector<64x256xf32>
    %c0_13 = arith.constant 0 : index
    %c0_14 = arith.constant 0 : index
    %23 = vector.load %arg5[%c0_13, %c0_14] : memref<1x256xf32, #tpu.memory_space<vmem>>, vector<1x256xf32>
    %24 = vector.broadcast %23 : vector<1x256xf32> to vector<64x256xf32>
    %25 = arith.addf %22, %24 : vector<64x256xf32>
    %cst_15 = arith.constant 5.000000e-01 : f32
    %26 = vector.broadcast %cst_15 : f32 to vector<64x256xf32>
    %27 = arith.mulf %26, %25 : vector<64x256xf32>
    %cst_16 = arith.constant 4.471500e-02 : f32
    %28 = vector.broadcast %cst_16 : f32 to vector<64x256xf32>
    %29 = arith.mulf %28, %25 : vector<64x256xf32>
    %30 = arith.mulf %29, %25 : vector<64x256xf32>
    %31 = arith.mulf %30, %25 : vector<64x256xf32>
    %32 = arith.addf %25, %31 : vector<64x256xf32>
    %cst_17 = arith.constant 0.797884583 : f32
    %33 = vector.broadcast %cst_17 : f32 to vector<64x256xf32>
    %34 = arith.mulf %33, %32 : vector<64x256xf32>
    %35 = math.tanh %34 : vector<64x256xf32>
    %cst_18 = arith.constant 1.000000e+00 : f32
    %36 = vector.broadcast %cst_18 : f32 to vector<64x256xf32>
    %37 = arith.addf %36, %35 : vector<64x256xf32>
    %38 = arith.mulf %27, %37 : vector<64x256xf32>
    %39 = arith.truncf %38 : vector<64x256xf32> to vector<64x256xbf16>
    %c0_19 = arith.constant 0 : index
    %c0_20 = arith.constant 0 : index
    %40 = vector.load %arg6[%c0_19, %c0_20] : memref<256x128xbf16, #tpu.memory_space<vmem>>, vector<256x128xbf16>
    %cst_21 = arith.constant dense<0.000000e+00> : vector<64x128xf32>
    %41 = tpu.matmul %39, %40, %cst_21 {dimension_numbers = #tpu.dot_dimension_numbers<[1], [0], [0], [1], [0, 0, 1, 1], [], []>} : vector<64x256xbf16>, vector<256x128xbf16>, vector<64x128xf32> -> vector<64x128xf32>
    %c0_22 = arith.constant 0 : index
    %c0_23 = arith.constant 0 : index
    %42 = vector.load %arg7[%c0_22, %c0_23] : memref<1x128xf32, #tpu.memory_space<vmem>>, vector<1x128xf32>
    %43 = vector.broadcast %42 : vector<1x128xf32> to vector<64x128xf32>
    %44 = arith.addf %41, %43 : vector<64x128xf32>
    %cst_24 = arith.constant 5.000000e-01 : f32
    %45 = vector.broadcast %cst_24 : f32 to vector<64x128xf32>
    %46 = arith.mulf %45, %44 : vector<64x128xf32>
    %cst_25 = arith.constant 4.471500e-02 : f32
    %47 = vector.broadcast %cst_25 : f32 to vector<64x128xf32>
    %48 = arith.mulf %47, %44 : vector<64x128xf32>
    %49 = arith.mulf %48, %44 : vector<64x128xf32>
    %50 = arith.mulf %49, %44 : vector<64x128xf32>
    %51 = arith.addf %44, %50 : vector<64x128xf32>
    %cst_26 = arith.constant 0.797884583 : f32
    %52 = vector.broadcast %cst_26 : f32 to vector<64x128xf32>
    %53 = arith.mulf %52, %51 : vector<64x128xf32>
    %54 = math.tanh %53 : vector<64x128xf32>
    %cst_27 = arith.constant 1.000000e+00 : f32
    %55 = vector.broadcast %cst_27 : f32 to vector<64x128xf32>
    %56 = arith.addf %55, %54 : vector<64x128xf32>
    %57 = arith.mulf %46, %56 : vector<64x128xf32>
    %c0_28 = arith.constant 0 : index
    %c0_29 = arith.constant 0 : index
    %58 = vector.load %arg8[%c0_28, %c0_29] : memref<1x128xf32, #tpu.memory_space<vmem>>, vector<1x128xf32>
    %c0_30 = arith.constant 0 : index
    %c0_31 = arith.constant 0 : index
    %59 = vector.load %arg9[%c0_30, %c0_31] : memref<1x128xf32, #tpu.memory_space<vmem>>, vector<1x128xf32>
    %cst_32 = arith.constant dense<0.000000e+00> : vector<64xf32>
    %60 = vector.multi_reduction <add>, %57, %cst_32 [1] : vector<64x128xf32> to vector<64xf32>
    %61 = vector.shape_cast %60 : vector<64xf32> to vector<64x1xf32>
    %cst_33 = arith.constant 1.280000e+02 : f32
    %62 = vector.broadcast %cst_33 : f32 to vector<64x1xf32>
    %63 = arith.divf %61, %62 : vector<64x1xf32>
    %64 = vector.broadcast %63 : vector<64x1xf32> to vector<64x128xf32>
    %65 = arith.subf %57, %64 : vector<64x128xf32>
    %66 = arith.mulf %65, %65 : vector<64x128xf32>
    %cst_34 = arith.constant dense<0.000000e+00> : vector<64xf32>
    %67 = vector.multi_reduction <add>, %66, %cst_34 [1] : vector<64x128xf32> to vector<64xf32>
    %68 = vector.shape_cast %67 : vector<64xf32> to vector<64x1xf32>
    %cst_35 = arith.constant 1.280000e+02 : f32
    %69 = vector.broadcast %cst_35 : f32 to vector<64x1xf32>
    %70 = arith.divf %68, %69 : vector<64x1xf32>
    %71 = vector.broadcast %63 : vector<64x1xf32> to vector<64x128xf32>
    %72 = arith.subf %57, %71 : vector<64x128xf32>
    %cst_36 = arith.constant 9.99999974E-6 : f32
    %73 = vector.broadcast %cst_36 : f32 to vector<64x1xf32>
    %74 = arith.addf %70, %73 : vector<64x1xf32>
    %75 = math.rsqrt %74 : vector<64x1xf32>
    %76 = vector.broadcast %75 : vector<64x1xf32> to vector<64x128xf32>
    %77 = arith.mulf %72, %76 : vector<64x128xf32>
    %78 = vector.broadcast %58 : vector<1x128xf32> to vector<64x128xf32>
    %79 = arith.mulf %77, %78 : vector<64x128xf32>
    %80 = vector.broadcast %59 : vector<1x128xf32> to vector<64x128xf32>
    %81 = arith.addf %79, %80 : vector<64x128xf32>
    %82 = arith.truncf %81 : vector<64x128xf32> to vector<64x128xbf16>
    %c0_37 = arith.constant 0 : index
    %c0_38 = arith.constant 0 : index
    %83 = vector.load %arg10[%c0_37, %c0_38] : memref<128x128xbf16, #tpu.memory_space<vmem>>, vector<128x128xbf16>
    %cst_39 = arith.constant dense<0.000000e+00> : vector<64x128xf32>
    %84 = tpu.matmul %82, %83, %cst_39 {dimension_numbers = #tpu.dot_dimension_numbers<[1], [0], [0], [1], [0, 0, 1, 1], [], []>} : vector<64x128xbf16>, vector<128x128xbf16>, vector<64x128xf32> -> vector<64x128xf32>
    %c0_40 = arith.constant 0 : index
    %c0_41 = arith.constant 0 : index
    %85 = vector.load %arg11[%c0_40, %c0_41] : memref<1x128xf32, #tpu.memory_space<vmem>>, vector<1x128xf32>
    %86 = vector.broadcast %85 : vector<1x128xf32> to vector<64x128xf32>
    %87 = arith.addf %84, %86 : vector<64x128xf32>
    %88 = arith.truncf %87 : vector<64x128xf32> to vector<64x128xbf16>
    %c0_42 = arith.constant 0 : index
    %c0_43 = arith.constant 0 : index
    %c0_44 = arith.constant 0 : index
    %89 = vector.load %arg12[%c0_42, %c0_43, %c0_44] : memref<1x64x128xbf16, #tpu.memory_space<vmem>>, vector<1x64x128xbf16>
    %90 = vector.shape_cast %89 : vector<1x64x128xbf16> to vector<64x128xbf16>
    %91 = vector.shape_cast %88 : vector<64x128xbf16> to vector<1x64x128xbf16>
    tpu.vector_store %arg12[%c0_42, %c0_43, %c0_44], %91 {strides = array<i32>} : memref<1x64x128xbf16, #tpu.memory_space<vmem>>, vector<1x64x128xbf16>,
    return
  }
  func.func @transform_0(%arg0: i32) -> (i32, i32, i32) {
    %c0_i32 = arith.constant 0 : i32
    %c0_i32_0 = arith.constant 0 : i32
    %c0_i32_1 = arith.constant 0 : i32
    return %arg0, %c0_i32, %c0_i32_0 : i32, i32, i32
  }
  func.func @transform_1(%arg0: i32) -> (i32, i32) {
    %c0_i32 = arith.constant 0 : i32
    %c0_i32_0 = arith.constant 0 : i32
    %c0_i32_1 = arith.constant 0 : i32
    return %c0_i32, %c0_i32_0 : i32, i32
  }
  func.func @transform_2(%arg0: i32) -> (i32, i32) {
    %c0_i32 = arith.constant 0 : i32
    %c0_i32_0 = arith.constant 0 : i32
    %c0_i32_1 = arith.constant 0 : i32
    return %c0_i32, %c0_i32_0 : i32, i32
  }
  func.func @transform_3(%arg0: i32) -> (i32, i32) {
    %c0_i32 = arith.constant 0 : i32
    %c0_i32_0 = arith.constant 0 : i32
    %c0_i32_1 = arith.constant 0 : i32
    return %c0_i32, %c0_i32_0 : i32, i32
  }
  func.func @transform_4(%arg0: i32) -> (i32, i32) {
    %c0_i32 = arith.constant 0 : i32
    %c0_i32_0 = arith.constant 0 : i32
    %c0_i32_1 = arith.constant 0 : i32
    return %c0_i32, %c0_i32_0 : i32, i32
  }
  func.func @transform_5(%arg0: i32) -> (i32, i32) {
    %c0_i32 = arith.constant 0 : i32
    %c0_i32_0 = arith.constant 0 : i32
    %c0_i32_1 = arith.constant 0 : i32
    return %c0_i32, %c0_i32_0 : i32, i32
  }
  func.func @transform_6(%arg0: i32) -> (i32, i32) {
    %c0_i32 = arith.constant 0 : i32
    %c0_i32_0 = arith.constant 0 : i32
    %c0_i32_1 = arith.constant 0 : i32
    return %c0_i32, %c0_i32_0 : i32, i32
  }
  func.func @transform_7(%arg0: i32) -> (i32, i32) {
    %c0_i32 = arith.constant 0 : i32
    %c0_i32_0 = arith.constant 0 : i32
    %c0_i32_1 = arith.constant 0 : i32
    return %c0_i32, %c0_i32_0 : i32, i32
  }
  func.func @transform_8(%arg0: i32) -> (i32, i32) {
    %c0_i32 = arith.constant 0 : i32
    %c0_i32_0 = arith.constant 0 : i32
    %c0_i32_1 = arith.constant 0 : i32
    return %c0_i32, %c0_i32_0 : i32, i32
  }
  func.func @transform_9(%arg0: i32) -> (i32, i32) {
    %c0_i32 = arith.constant 0 : i32
    %c0_i32_0 = arith.constant 0 : i32
    %c0_i32_1 = arith.constant 0 : i32
    return %c0_i32, %c0_i32_0 : i32, i32
  }
  func.func @transform_10(%arg0: i32) -> (i32, i32) {
    %c0_i32 = arith.constant 0 : i32
    %c0_i32_0 = arith.constant 0 : i32
    %c0_i32_1 = arith.constant 0 : i32
    return %c0_i32, %c0_i32_0 : i32, i32
  }
  func.func @transform_11(%arg0: i32) -> (i32, i32, i32) {
    %c0_i32 = arith.constant 0 : i32
    %c0_i32_0 = arith.constant 0 : i32
    %c0_i32_1 = arith.constant 0 : i32
    return %arg0, %c0_i32, %c0_i32_0 : i32, i32, i32
  }
}

module attributes {stable_mosaic.version = 11 : i64} {
  func.func @_encoder_kernel(%arg0: i32, %arg1: i32, %arg2: memref<1x64x128xbf16, #tpu.memory_space<vmem>>, %arg3: memref<1x128x384xbf16, #tpu.memory_space<vmem>>, %arg4: memref<1x1x384xf32, #tpu.memory_space<vmem>>, %arg5: memref<1x128x128xbf16, #tpu.memory_space<vmem>>, %arg6: memref<1x1x128xf32, #tpu.memory_space<vmem>>, %arg7: memref<1x1x128xf32, #tpu.memory_space<vmem>>, %arg8: memref<1x1x128xf32, #tpu.memory_space<vmem>>, %arg9: memref<1x128x512xbf16, #tpu.memory_space<vmem>>, %arg10: memref<1x1x512xf32, #tpu.memory_space<vmem>>, %arg11: memref<1x512x128xbf16, #tpu.memory_space<vmem>>, %arg12: memref<1x1x128xf32, #tpu.memory_space<vmem>>, %arg13: memref<1x1x128xf32, #tpu.memory_space<vmem>>, %arg14: memref<1x1x128xf32, #tpu.memory_space<vmem>>, %arg15: memref<1x1x64x128xf32, #tpu.memory_space<vmem>>, %arg16: memref<64x128xf32, #tpu.memory_space<vmem>>) attributes {dimension_semantics = [#tpu.dimension_semantics<parallel>, #tpu.dimension_semantics<arbitrary>], iteration_bounds = array<i64: 2, 3>, scalar_prefetch = 0 : i64, scratch_operands = 1 : i64, tpu.core_type = #tpu.core_type<tc>, window_params = [{transform_indices = @transform_0, window_bounds = array<i64: 1, 64, 128>}, {transform_indices = @transform_1, window_bounds = array<i64: 1, 128, 384>}, {transform_indices = @transform_2, window_bounds = array<i64: 1, 1, 384>}, {transform_indices = @transform_3, window_bounds = array<i64: 1, 128, 128>}, {transform_indices = @transform_4, window_bounds = array<i64: 1, 1, 128>}, {transform_indices = @transform_5, window_bounds = array<i64: 1, 1, 128>}, {transform_indices = @transform_6, window_bounds = array<i64: 1, 1, 128>}, {transform_indices = @transform_7, window_bounds = array<i64: 1, 128, 512>}, {transform_indices = @transform_8, window_bounds = array<i64: 1, 1, 512>}, {transform_indices = @transform_9, window_bounds = array<i64: 1, 512, 128>}, {transform_indices = @transform_10, window_bounds = array<i64: 1, 1, 128>}, {transform_indices = @transform_11, window_bounds = array<i64: 1, 1, 128>}, {transform_indices = @transform_12, window_bounds = array<i64: 1, 1, 128>}, {transform_indices = @transform_13, window_bounds = array<i64: 1, 1, 64, 128>}]} {
    %c0_i32 = arith.constant 0 : i32
    %0 = arith.cmpi eq, %arg1, %c0_i32 : i32
    %1 = arith.extui %0 : i1 to i32
    %c0_i32_0 = arith.constant 0 : i32
    %2 = arith.cmpi ne, %1, %c0_i32_0 : i32
    scf.if %2 {
      %c0_65 = arith.constant 0 : index
      %c0_66 = arith.constant 0 : index
      %c0_67 = arith.constant 0 : index
      %126 = vector.load %arg2[%c0_65, %c0_66, %c0_67] : memref<1x64x128xbf16, #tpu.memory_space<vmem>>, vector<1x64x128xbf16>
      %127 = vector.shape_cast %126 : vector<1x64x128xbf16> to vector<64x128xbf16>
      %128 = arith.extf %127 : vector<64x128xbf16> to vector<64x128xf32>
      %c0_68 = arith.constant 0 : index
      %c0_69 = arith.constant 0 : index
      %129 = vector.load %arg16[%c0_68, %c0_69] : memref<64x128xf32, #tpu.memory_space<vmem>>, vector<64x128xf32>
      tpu.vector_store %arg16[%c0_68, %c0_69], %128 {strides = array<i32>} : memref<64x128xf32, #tpu.memory_space<vmem>>, vector<64x128xf32>,
    } else {
    }
    %c0 = arith.constant 0 : index
    %c0_1 = arith.constant 0 : index
    %3 = vector.load %arg16[%c0, %c0_1] : memref<64x128xf32, #tpu.memory_space<vmem>>, vector<64x128xf32>
    %4 = arith.truncf %3 : vector<64x128xf32> to vector<64x128xbf16>
    %c0_2 = arith.constant 0 : index
    %c0_3 = arith.constant 0 : index
    %c0_4 = arith.constant 0 : index
    %5 = vector.load %arg3[%c0_2, %c0_3, %c0_4] : memref<1x128x384xbf16, #tpu.memory_space<vmem>>, vector<1x128x384xbf16>
    %6 = vector.shape_cast %5 : vector<1x128x384xbf16> to vector<128x384xbf16>
    %cst = arith.constant dense<0.000000e+00> : vector<64x384xf32>
    %7 = tpu.matmul %4, %6, %cst {dimension_numbers = #tpu.dot_dimension_numbers<[1], [0], [0], [1], [0, 0, 1, 1], [], []>} : vector<64x128xbf16>, vector<128x384xbf16>, vector<64x384xf32> -> vector<64x384xf32>
    %c0_5 = arith.constant 0 : index
    %c0_6 = arith.constant 0 : index
    %c0_7 = arith.constant 0 : index
    %8 = vector.load %arg4[%c0_5, %c0_6, %c0_7] : memref<1x1x384xf32, #tpu.memory_space<vmem>>, vector<1x1x384xf32>
    %9 = vector.shape_cast %8 : vector<1x1x384xf32> to vector<1x384xf32>
    %10 = vector.broadcast %9 : vector<1x384xf32> to vector<64x384xf32>
    %11 = arith.addf %7, %10 : vector<64x384xf32>
    %12 = vector.extract_strided_slice %11 {offsets = [0, 0], sizes = [64, 128], strides = [1, 1]} : vector<64x384xf32> to vector<64x128xf32>
    %13 = arith.truncf %12 : vector<64x128xf32> to vector<64x128xbf16>
    %14 = vector.extract_strided_slice %11 {offsets = [0, 128], sizes = [64, 128], strides = [1, 1]} : vector<64x384xf32> to vector<64x128xf32>
    %15 = arith.truncf %14 : vector<64x128xf32> to vector<64x128xbf16>
    %16 = vector.extract_strided_slice %11 {offsets = [0, 256], sizes = [64, 128], strides = [1, 1]} : vector<64x384xf32> to vector<64x128xf32>
    %17 = arith.truncf %16 : vector<64x128xf32> to vector<64x128xbf16>
    %cst_8 = arith.constant dense<0.000000e+00> : vector<64x64xf32>
    %18 = tpu.matmul %13, %15, %cst_8 {dimension_numbers = #tpu.dot_dimension_numbers<[1], [1], [0], [0], [0, 0, 1, 0], [], []>} : vector<64x128xbf16>, vector<64x128xbf16>, vector<64x64xf32> -> vector<64x64xf32>
    %cst_9 = arith.constant dense<0xFF800000> : vector<64xf32>
    %19 = vector.multi_reduction <maximumf>, %18, %cst_9 [1] : vector<64x64xf32> to vector<64xf32>
    %20 = vector.shape_cast %19 : vector<64xf32> to vector<64x1xf32>
    %21 = vector.broadcast %20 : vector<64x1xf32> to vector<64x64xf32>
    %22 = arith.subf %18, %21 : vector<64x64xf32>
    %23 = math.exp %22 : vector<64x64xf32>
    %cst_10 = arith.constant dense<0.000000e+00> : vector<64xf32>
    %24 = vector.multi_reduction <add>, %23, %cst_10 [1] : vector<64x64xf32> to vector<64xf32>
    %25 = vector.shape_cast %24 : vector<64xf32> to vector<64x1xf32>
    %26 = tpu.reciprocal %25 {approx = true} : vector<64x1xf32> -> vector<64x1xf32>
    %27 = vector.broadcast %26 : vector<64x1xf32> to vector<64x64xf32>
    %28 = arith.mulf %23, %27 : vector<64x64xf32>
    %29 = arith.truncf %28 : vector<64x64xf32> to vector<64x64xbf16>
    %cst_11 = arith.constant dense<0.000000e+00> : vector<64x128xf32>
    %30 = tpu.matmul %29, %17, %cst_11 {dimension_numbers = #tpu.dot_dimension_numbers<[1], [0], [0], [1], [0, 0, 1, 1], [], []>} : vector<64x64xbf16>, vector<64x128xbf16>, vector<64x128xf32> -> vector<64x128xf32>
    %31 = arith.truncf %30 : vector<64x128xf32> to vector<64x128xbf16>
    %c0_12 = arith.constant 0 : index
    %c0_13 = arith.constant 0 : index
    %c0_14 = arith.constant 0 : index
    %32 = vector.load %arg5[%c0_12, %c0_13, %c0_14] : memref<1x128x128xbf16, #tpu.memory_space<vmem>>, vector<1x128x128xbf16>
    %33 = vector.shape_cast %32 : vector<1x128x128xbf16> to vector<128x128xbf16>
    %cst_15 = arith.constant dense<0.000000e+00> : vector<64x128xf32>
    %34 = tpu.matmul %31, %33, %cst_15 {dimension_numbers = #tpu.dot_dimension_numbers<[1], [0], [0], [1], [0, 0, 1, 1], [], []>} : vector<64x128xbf16>, vector<128x128xbf16>, vector<64x128xf32> -> vector<64x128xf32>
    %c0_16 = arith.constant 0 : index
    %c0_17 = arith.constant 0 : index
    %c0_18 = arith.constant 0 : index
    %35 = vector.load %arg6[%c0_16, %c0_17, %c0_18] : memref<1x1x128xf32, #tpu.memory_space<vmem>>, vector<1x1x128xf32>
    %36 = vector.shape_cast %35 : vector<1x1x128xf32> to vector<1x128xf32>
    %37 = vector.broadcast %36 : vector<1x128xf32> to vector<64x128xf32>
    %38 = arith.addf %34, %37 : vector<64x128xf32>
    %39 = arith.addf %3, %38 : vector<64x128xf32>
    %c0_19 = arith.constant 0 : index
    %c0_20 = arith.constant 0 : index
    %c0_21 = arith.constant 0 : index
    %40 = vector.load %arg7[%c0_19, %c0_20, %c0_21] : memref<1x1x128xf32, #tpu.memory_space<vmem>>, vector<1x1x128xf32>
    %41 = vector.shape_cast %40 : vector<1x1x128xf32> to vector<1x128xf32>
    %c0_22 = arith.constant 0 : index
    %c0_23 = arith.constant 0 : index
    %c0_24 = arith.constant 0 : index
    %42 = vector.load %arg8[%c0_22, %c0_23, %c0_24] : memref<1x1x128xf32, #tpu.memory_space<vmem>>, vector<1x1x128xf32>
    %43 = vector.shape_cast %42 : vector<1x1x128xf32> to vector<1x128xf32>
    %cst_25 = arith.constant dense<0.000000e+00> : vector<64xf32>
    %44 = vector.multi_reduction <add>, %39, %cst_25 [1] : vector<64x128xf32> to vector<64xf32>
    %45 = vector.shape_cast %44 : vector<64xf32> to vector<64x1xf32>
    %cst_26 = arith.constant 1.280000e+02 : f32
    %46 = vector.broadcast %cst_26 : f32 to vector<64x1xf32>
    %47 = arith.divf %45, %46 : vector<64x1xf32>
    %48 = vector.broadcast %47 : vector<64x1xf32> to vector<64x128xf32>
    %49 = arith.subf %39, %48 : vector<64x128xf32>
    %50 = arith.mulf %49, %49 : vector<64x128xf32>
    %cst_27 = arith.constant dense<0.000000e+00> : vector<64xf32>
    %51 = vector.multi_reduction <add>, %50, %cst_27 [1] : vector<64x128xf32> to vector<64xf32>
    %52 = vector.shape_cast %51 : vector<64xf32> to vector<64x1xf32>
    %cst_28 = arith.constant 1.280000e+02 : f32
    %53 = vector.broadcast %cst_28 : f32 to vector<64x1xf32>
    %54 = arith.divf %52, %53 : vector<64x1xf32>
    %55 = vector.broadcast %47 : vector<64x1xf32> to vector<64x128xf32>
    %56 = arith.subf %39, %55 : vector<64x128xf32>
    %cst_29 = arith.constant 9.99999974E-6 : f32
    %57 = vector.broadcast %cst_29 : f32 to vector<64x1xf32>
    %58 = arith.addf %54, %57 : vector<64x1xf32>
    %59 = math.rsqrt %58 : vector<64x1xf32>
    %60 = vector.broadcast %59 : vector<64x1xf32> to vector<64x128xf32>
    %61 = arith.mulf %56, %60 : vector<64x128xf32>
    %62 = vector.broadcast %41 : vector<1x128xf32> to vector<64x128xf32>
    %63 = arith.mulf %61, %62 : vector<64x128xf32>
    %64 = vector.broadcast %43 : vector<1x128xf32> to vector<64x128xf32>
    %65 = arith.addf %63, %64 : vector<64x128xf32>
    %66 = arith.truncf %65 : vector<64x128xf32> to vector<64x128xbf16>
    %c0_30 = arith.constant 0 : index
    %c0_31 = arith.constant 0 : index
    %c0_32 = arith.constant 0 : index
    %67 = vector.load %arg9[%c0_30, %c0_31, %c0_32] : memref<1x128x512xbf16, #tpu.memory_space<vmem>>, vector<1x128x512xbf16>
    %68 = vector.shape_cast %67 : vector<1x128x512xbf16> to vector<128x512xbf16>
    %cst_33 = arith.constant dense<0.000000e+00> : vector<64x512xf32>
    %69 = tpu.matmul %66, %68, %cst_33 {dimension_numbers = #tpu.dot_dimension_numbers<[1], [0], [0], [1], [0, 0, 1, 1], [], []>} : vector<64x128xbf16>, vector<128x512xbf16>, vector<64x512xf32> -> vector<64x512xf32>
    %c0_34 = arith.constant 0 : index
    %c0_35 = arith.constant 0 : index
    %c0_36 = arith.constant 0 : index
    %70 = vector.load %arg10[%c0_34, %c0_35, %c0_36] : memref<1x1x512xf32, #tpu.memory_space<vmem>>, vector<1x1x512xf32>
    %71 = vector.shape_cast %70 : vector<1x1x512xf32> to vector<1x512xf32>
    %72 = vector.broadcast %71 : vector<1x512xf32> to vector<64x512xf32>
    %73 = arith.addf %69, %72 : vector<64x512xf32>
    %cst_37 = arith.constant 5.000000e-01 : f32
    %74 = vector.broadcast %cst_37 : f32 to vector<64x512xf32>
    %75 = arith.mulf %74, %73 : vector<64x512xf32>
    %cst_38 = arith.constant 4.471500e-02 : f32
    %76 = vector.broadcast %cst_38 : f32 to vector<64x512xf32>
    %77 = arith.mulf %76, %73 : vector<64x512xf32>
    %78 = arith.mulf %77, %73 : vector<64x512xf32>
    %79 = arith.mulf %78, %73 : vector<64x512xf32>
    %80 = arith.addf %73, %79 : vector<64x512xf32>
    %cst_39 = arith.constant 0.797884583 : f32
    %81 = vector.broadcast %cst_39 : f32 to vector<64x512xf32>
    %82 = arith.mulf %81, %80 : vector<64x512xf32>
    %83 = math.tanh %82 : vector<64x512xf32>
    %cst_40 = arith.constant 1.000000e+00 : f32
    %84 = vector.broadcast %cst_40 : f32 to vector<64x512xf32>
    %85 = arith.addf %84, %83 : vector<64x512xf32>
    %86 = arith.mulf %75, %85 : vector<64x512xf32>
    %87 = arith.truncf %86 : vector<64x512xf32> to vector<64x512xbf16>
    %c0_41 = arith.constant 0 : index
    %c0_42 = arith.constant 0 : index
    %c0_43 = arith.constant 0 : index
    %88 = vector.load %arg11[%c0_41, %c0_42, %c0_43] : memref<1x512x128xbf16, #tpu.memory_space<vmem>>, vector<1x512x128xbf16>
    %89 = vector.shape_cast %88 : vector<1x512x128xbf16> to vector<512x128xbf16>
    %cst_44 = arith.constant dense<0.000000e+00> : vector<64x128xf32>
    %90 = tpu.matmul %87, %89, %cst_44 {dimension_numbers = #tpu.dot_dimension_numbers<[1], [0], [0], [1], [0, 0, 1, 1], [], []>} : vector<64x512xbf16>, vector<512x128xbf16>, vector<64x128xf32> -> vector<64x128xf32>
    %c0_45 = arith.constant 0 : index
    %c0_46 = arith.constant 0 : index
    %c0_47 = arith.constant 0 : index
    %91 = vector.load %arg12[%c0_45, %c0_46, %c0_47] : memref<1x1x128xf32, #tpu.memory_space<vmem>>, vector<1x1x128xf32>
    %92 = vector.shape_cast %91 : vector<1x1x128xf32> to vector<1x128xf32>
    %93 = vector.broadcast %92 : vector<1x128xf32> to vector<64x128xf32>
    %94 = arith.addf %90, %93 : vector<64x128xf32>
    %95 = arith.addf %65, %94 : vector<64x128xf32>
    %c0_48 = arith.constant 0 : index
    %c0_49 = arith.constant 0 : index
    %c0_50 = arith.constant 0 : index
    %96 = vector.load %arg13[%c0_48, %c0_49, %c0_50] : memref<1x1x128xf32, #tpu.memory_space<vmem>>, vector<1x1x128xf32>
    %97 = vector.shape_cast %96 : vector<1x1x128xf32> to vector<1x128xf32>
    %c0_51 = arith.constant 0 : index
    %c0_52 = arith.constant 0 : index
    %c0_53 = arith.constant 0 : index
    %98 = vector.load %arg14[%c0_51, %c0_52, %c0_53] : memref<1x1x128xf32, #tpu.memory_space<vmem>>, vector<1x1x128xf32>
    %99 = vector.shape_cast %98 : vector<1x1x128xf32> to vector<1x128xf32>
    %cst_54 = arith.constant dense<0.000000e+00> : vector<64xf32>
    %100 = vector.multi_reduction <add>, %95, %cst_54 [1] : vector<64x128xf32> to vector<64xf32>
    %101 = vector.shape_cast %100 : vector<64xf32> to vector<64x1xf32>
    %cst_55 = arith.constant 1.280000e+02 : f32
    %102 = vector.broadcast %cst_55 : f32 to vector<64x1xf32>
    %103 = arith.divf %101, %102 : vector<64x1xf32>
    %104 = vector.broadcast %103 : vector<64x1xf32> to vector<64x128xf32>
    %105 = arith.subf %95, %104 : vector<64x128xf32>
    %106 = arith.mulf %105, %105 : vector<64x128xf32>
    %cst_56 = arith.constant dense<0.000000e+00> : vector<64xf32>
    %107 = vector.multi_reduction <add>, %106, %cst_56 [1] : vector<64x128xf32> to vector<64xf32>
    %108 = vector.shape_cast %107 : vector<64xf32> to vector<64x1xf32>
    %cst_57 = arith.constant 1.280000e+02 : f32
    %109 = vector.broadcast %cst_57 : f32 to vector<64x1xf32>
    %110 = arith.divf %108, %109 : vector<64x1xf32>
    %111 = vector.broadcast %103 : vector<64x1xf32> to vector<64x128xf32>
    %112 = arith.subf %95, %111 : vector<64x128xf32>
    %cst_58 = arith.constant 9.99999974E-6 : f32
    %113 = vector.broadcast %cst_58 : f32 to vector<64x1xf32>
    %114 = arith.addf %110, %113 : vector<64x1xf32>
    %115 = math.rsqrt %114 : vector<64x1xf32>
    %116 = vector.broadcast %115 : vector<64x1xf32> to vector<64x128xf32>
    %117 = arith.mulf %112, %116 : vector<64x128xf32>
    %118 = vector.broadcast %97 : vector<1x128xf32> to vector<64x128xf32>
    %119 = arith.mulf %117, %118 : vector<64x128xf32>
    %120 = vector.broadcast %99 : vector<1x128xf32> to vector<64x128xf32>
    %121 = arith.addf %119, %120 : vector<64x128xf32>
    %c0_59 = arith.constant 0 : index
    %c0_60 = arith.constant 0 : index
    %122 = vector.load %arg16[%c0_59, %c0_60] : memref<64x128xf32, #tpu.memory_space<vmem>>, vector<64x128xf32>
    tpu.vector_store %arg16[%c0_59, %c0_60], %121 {strides = array<i32>} : memref<64x128xf32, #tpu.memory_space<vmem>>, vector<64x128xf32>,
    %c0_61 = arith.constant 0 : index
    %c0_62 = arith.constant 0 : index
    %c0_63 = arith.constant 0 : index
    %c0_64 = arith.constant 0 : index
    %123 = vector.load %arg15[%c0_61, %c0_62, %c0_63, %c0_64] : memref<1x1x64x128xf32, #tpu.memory_space<vmem>>, vector<1x1x64x128xf32>
    %124 = vector.shape_cast %123 : vector<1x1x64x128xf32> to vector<64x128xf32>
    %125 = vector.shape_cast %121 : vector<64x128xf32> to vector<1x1x64x128xf32>
    tpu.vector_store %arg15[%c0_61, %c0_62, %c0_63, %c0_64], %125 {strides = array<i32>} : memref<1x1x64x128xf32, #tpu.memory_space<vmem>>, vector<1x1x64x128xf32>,
    return
  }
  func.func @transform_0(%arg0: i32, %arg1: i32) -> (i32, i32, i32) {
    %c0_i32 = arith.constant 0 : i32
    %c0_i32_0 = arith.constant 0 : i32
    %c0_i32_1 = arith.constant 0 : i32
    return %arg0, %c0_i32, %c0_i32_0 : i32, i32, i32
  }
  func.func @transform_1(%arg0: i32, %arg1: i32) -> (i32, i32, i32) {
    %c0_i32 = arith.constant 0 : i32
    %c0_i32_0 = arith.constant 0 : i32
    %c0_i32_1 = arith.constant 0 : i32
    return %arg1, %c0_i32, %c0_i32_0 : i32, i32, i32
  }
  func.func @transform_2(%arg0: i32, %arg1: i32) -> (i32, i32, i32) {
    %c0_i32 = arith.constant 0 : i32
    %c0_i32_0 = arith.constant 0 : i32
    %c0_i32_1 = arith.constant 0 : i32
    return %arg1, %c0_i32, %c0_i32_0 : i32, i32, i32
  }
  func.func @transform_3(%arg0: i32, %arg1: i32) -> (i32, i32, i32) {
    %c0_i32 = arith.constant 0 : i32
    %c0_i32_0 = arith.constant 0 : i32
    %c0_i32_1 = arith.constant 0 : i32
    return %arg1, %c0_i32, %c0_i32_0 : i32, i32, i32
  }
  func.func @transform_4(%arg0: i32, %arg1: i32) -> (i32, i32, i32) {
    %c0_i32 = arith.constant 0 : i32
    %c0_i32_0 = arith.constant 0 : i32
    %c0_i32_1 = arith.constant 0 : i32
    return %arg1, %c0_i32, %c0_i32_0 : i32, i32, i32
  }
  func.func @transform_5(%arg0: i32, %arg1: i32) -> (i32, i32, i32) {
    %c0_i32 = arith.constant 0 : i32
    %c0_i32_0 = arith.constant 0 : i32
    %c0_i32_1 = arith.constant 0 : i32
    return %arg1, %c0_i32, %c0_i32_0 : i32, i32, i32
  }
  func.func @transform_6(%arg0: i32, %arg1: i32) -> (i32, i32, i32) {
    %c0_i32 = arith.constant 0 : i32
    %c0_i32_0 = arith.constant 0 : i32
    %c0_i32_1 = arith.constant 0 : i32
    return %arg1, %c0_i32, %c0_i32_0 : i32, i32, i32
  }
  func.func @transform_7(%arg0: i32, %arg1: i32) -> (i32, i32, i32) {
    %c0_i32 = arith.constant 0 : i32
    %c0_i32_0 = arith.constant 0 : i32
    %c0_i32_1 = arith.constant 0 : i32
    return %arg1, %c0_i32, %c0_i32_0 : i32, i32, i32
  }
  func.func @transform_8(%arg0: i32, %arg1: i32) -> (i32, i32, i32) {
    %c0_i32 = arith.constant 0 : i32
    %c0_i32_0 = arith.constant 0 : i32
    %c0_i32_1 = arith.constant 0 : i32
    return %arg1, %c0_i32, %c0_i32_0 : i32, i32, i32
  }
  func.func @transform_9(%arg0: i32, %arg1: i32) -> (i32, i32, i32) {
    %c0_i32 = arith.constant 0 : i32
    %c0_i32_0 = arith.constant 0 : i32
    %c0_i32_1 = arith.constant 0 : i32
    return %arg1, %c0_i32, %c0_i32_0 : i32, i32, i32
  }
  func.func @transform_10(%arg0: i32, %arg1: i32) -> (i32, i32, i32) {
    %c0_i32 = arith.constant 0 : i32
    %c0_i32_0 = arith.constant 0 : i32
    %c0_i32_1 = arith.constant 0 : i32
    return %arg1, %c0_i32, %c0_i32_0 : i32, i32, i32
  }
  func.func @transform_11(%arg0: i32, %arg1: i32) -> (i32, i32, i32) {
    %c0_i32 = arith.constant 0 : i32
    %c0_i32_0 = arith.constant 0 : i32
    %c0_i32_1 = arith.constant 0 : i32
    return %arg1, %c0_i32, %c0_i32_0 : i32, i32, i32
  }
  func.func @transform_12(%arg0: i32, %arg1: i32) -> (i32, i32, i32) {
    %c0_i32 = arith.constant 0 : i32
    %c0_i32_0 = arith.constant 0 : i32
    %c0_i32_1 = arith.constant 0 : i32
    return %arg1, %c0_i32, %c0_i32_0 : i32, i32, i32
  }
  func.func @transform_13(%arg0: i32, %arg1: i32) -> (i32, i32, i32, i32) {
    %c0_i32 = arith.constant 0 : i32
    %c0_i32_0 = arith.constant 0 : i32
    %c0_i32_1 = arith.constant 0 : i32
    return %arg1, %arg0, %c0_i32, %c0_i32_0 : i32, i32, i32, i32
  }
}

</mosaic_0001>

<llo_original>
// kernel: forward.3
$region0: #{forward.3}
  #allocation0 [shape = 'u32[]', space=smem, size = 0x4, offset = 0x4, fixed_abs, tag = 'smem constant byte address 0x4 - core index']
  #allocation1 [shape = 'u32[144,128]{1,0:T(1,128)}', space=vmem, size = 0x12000, scoped, tag = 'internal scratch']
  #allocation2 [shape = 'f32[64,128]{1,0:T(8,128)}', space=vmem, size = 0x8000, scoped, tag = 'scratch operand']
  %s0 = inlined_call_operand.vmem [shape: bf16[2,64,128], index: 0, kind: input, shape index: {}]
  %s1 = inlined_call_operand.hbm [shape: bf16[3,128,384], index: 1, kind: input, shape index: {}]
  %s2 = inlined_call_operand.vmem [shape: f32[3,1,384], index: 2, kind: input, shape index: {}]
  %s3 = inlined_call_operand.hbm [shape: bf16[3,128,128], index: 3, kind: input, shape index: {}]
  %s4 = inlined_call_operand.vmem [shape: f32[3,1,128], index: 4, kind: input, shape index: {}]
  %s5 = inlined_call_operand.vmem [shape: f32[3,1,128], index: 5, kind: input, shape index: {}]
  %s6 = inlined_call_operand.vmem [shape: f32[3,1,128], index: 6, kind: input, shape index: {}]
  %s7 = inlined_call_operand.vmem [shape: bf16[3,128,512], index: 7, kind: input, shape index: {}]
  %s8 = inlined_call_operand.vmem [shape: f32[3,1,512], index: 8, kind: input, shape index: {}]
  %s9 = inlined_call_operand.vmem [shape: bf16[3,512,128], index: 9, kind: input, shape index: {}]
  %s10 = inlined_call_operand.vmem [shape: f32[3,1,128], index: 10, kind: input, shape index: {}]
  %s11 = inlined_call_operand.vmem [shape: f32[3,1,128], index: 11, kind: input, shape index: {}]
  %s12 = inlined_call_operand.vmem [shape: f32[3,1,128], index: 12, kind: input, shape index: {}]
  %s13 = inlined_call_operand.hbm [shape: f32[3,2,64,128], index: 13, kind: output, shape index: {}]
  %s14 = sld [smem:[#allocation0]]
  $region97: #{forward.3} parent=0
    _
  %s16 = ssub.s32 1, %s14
  %s17 = scalar_select 0, %s16, %s14
  $region1: #{forward.3} parent=0
    #allocation3 [shape = 'u8[196608]{0}', space=vmem, size = 0x30000, scoped, tag = 'input window, operand 1']
    #allocation4 [shape = 's32[2]{0}', space=sflag, size = 0x8, scoped, tag = 'scoped memory for forward.3']
    #allocation5 [shape = 's32[2]{0}', space=sflag, size = 0x8, scoped, tag = 'scoped memory for forward.3']
    #allocation6 [shape = 'u8[65536]{0}', space=vmem, size = 0x10000, scoped, tag = 'input window, operand 3']
    #allocation7 [shape = 's32[2]{0}', space=sflag, size = 0x8, scoped, tag = 'scoped memory for forward.3']
    #allocation8 [shape = 'u8[65536]{0}', space=vmem, size = 0x10000, scoped, tag = 'output window, operand 0']
    %18 = vsyncpa [#allocation4], 0
    %s19 = scalar_lea.sflag [#allocation4], 1
    %20 = vsyncpa %s19, 0
    %21 = vsyncpa [#allocation7], 0
    %s22 = scalar_lea.sflag [#allocation7], 1
    %23 = vsyncpa %s22, 0
    %24 = vsyncpa [#allocation5], 0
    %s25 = scalar_lea.sflag [#allocation5], 1
    %26 = vsyncpa %s25, 0
    loop: start=0, step=1, limit=8
    $region2: #{forward.3} parent=1 // loop_pre_header
      _
    $region3: #{forward.3} parent=1 // loop_header
      %s28 = sphi 0, %s32
      %p29 = scmp.ge.s32.totalorder %s28, 8
      %s35 = sphi 0, %s47
      %s36 = sphi 0, %s43
      %s37 = sphi 0, %s35
      %s38 = sphi 0, %s36
      %s39 = sphi 0, %s37
      %s40 = sphi 0, %s38
      %s50 = sphi 0, %s52
      %s53 = sphi 0, %s50
      %s54 = sphi 0, %s53
      %s70 = sphi 0, %s54
      %s76 = sphi 0, %s78
      %s79 = sphi 0, %s76
      %s80 = sphi 0, %s79
      %s96 = sphi 0, %s80
      %s102 = sphi 0, %s104
      %s105 = sphi 0, %s102
      %s106 = sphi 0, %s105
      %s122 = sphi 0, %s106
      %s128 = sphi 0, %s130
      %s131 = sphi 0, %s128
      %s132 = sphi 0, %s131
      %s148 = sphi 0, %s132
      %s154 = sphi 0, %s156
      %s157 = sphi 0, %s154
      %s158 = sphi 0, %s157
      %s174 = sphi 0, %s158
      %s180 = sphi 0, %s182
      %s183 = sphi 0, %s180
      %s184 = sphi 0, %s183
      %s200 = sphi 0, %s184
      %s206 = sphi 0, %s208
      %s209 = sphi 0, %s206
      %s210 = sphi 0, %s209
      %s226 = sphi 0, %s210
      %s232 = sphi 0, %s234
      %s235 = sphi 0, %s232
      %s236 = sphi 0, %s235
      %s252 = sphi 0, %s236
      %s258 = sphi 0, %s260
      %s261 = sphi 0, %s258
      %s262 = sphi 0, %s261
      %s278 = sphi 0, %s262
      %s284 = sphi 0, %s286
      %s287 = sphi 0, %s284
      %s288 = sphi 0, %s287
      %s304 = sphi 0, %s288
      %s310 = sphi 0, %s312
      %s313 = sphi 0, %s310
      %s314 = sphi 0, %s313
      %s330 = sphi 0, %s314
      %s336 = sphi 0, %s338
      %s339 = sphi 0, %s336
      %s340 = sphi 0, %s339
      %s356 = sphi 0, %s340
      %s362 = sphi 0, %s364
      %s365 = sphi 0, %s362
      %s366 = sphi 0, %s365
      %s382 = sphi 0, %s366
      %s390 = sphi 0, %s392
      %s393 = sphi 0, %s390
      %s394 = sphi 0, %s393
      %s410 = sphi 0, %s394
    $region4: #{forward.3} parent=1 // loop_header_branch
      %31 = sbr.rel (%p29) target = $region8
    $region5: #{forward.3} parent=1 // loop_body
      %s33 = ssub.s32 %s28, 1
      %s34 = ssub.s32 %s28, 2
      %s41 = sadd.s32 1, %s36
      %p42 = scmp.ge.s32.totalorder %s41, 3
      %s43 = scalar_select %p42, 0, %s41
      %s44 = sadd.s32 1, %s35
      %s45 = scalar_select %p42, %s44, %s35
      %p46 = scmp.ge.s32.totalorder %s45, 2
      %s47 = scalar_select %p46, 0, %s45
      %s48 = ssub.s32 %s35, %s47
      %p49 = scmp.eq.s32.totalorder %s48, 0
      %s51 = sadd.s32 %s50, 1
      %s52 = scalar_select %p49, %s50, %s51
      %p55 = pneg %p49
      %p56 = scmp.eq.s32.totalorder %s28, 5
      %p57 = por %p55, %p56
      %p58 = scmp.ne.s32.totalorder %s50, %s53
      %p59 = scmp.eq.s32.totalorder %s28, 0
      %p60 = por %p58, %p59
      %p61 = scmp.ne.s32.totalorder %s50, %s53
      %p62 = scmp.eq.s32.totalorder %s33, 5
      %p63 = por %p61, %p62
      %p64 = scmp.ne.s32.totalorder %s53, %s54
      %p65 = scmp.eq.s32.totalorder %s33, 0
      %p66 = por %p64, %p65
      %p67 = scmp.ne.s32.totalorder %s53, %s54
      %p68 = scmp.eq.s32.totalorder %s34, 5
      %p69 = por %p67, %p68
      %p71 = scmp.ne.s32.totalorder %s54, %s70
      %p72 = scmp.eq.s32.totalorder %s34, 0
      %p73 = por %p71, %p72
      %s74 = ssub.s32 %s36, %s43
      %p75 = scmp.eq.s32.totalorder %s74, 0
      %s77 = sadd.s32 %s76, 1
      %s78 = scalar_select %p75, %s76, %s77
      %p81 = pneg %p75
      %p82 = scmp.eq.s32.totalorder %s28, 5
      %p83 = por %p81, %p82
      %p84 = scmp.ne.s32.totalorder %s76, %s79
      %p85 = scmp.eq.s32.totalorder %s28, 0
      %p86 = por %p84, %p85
      %p87 = scmp.ne.s32.totalorder %s76, %s79
      %p88 = scmp.eq.s32.totalorder %s33, 5
      %p89 = por %p87, %p88
      %p90 = scmp.ne.s32.totalorder %s79, %s80
      %p91 = scmp.eq.s32.totalorder %s33, 0
      %p92 = por %p90, %p91
      %p93 = scmp.ne.s32.totalorder %s79, %s80
      %p94 = scmp.eq.s32.totalorder %s34, 5
      %p95 = por %p93, %p94
      %p97 = scmp.ne.s32.totalorder %s80, %s96
      %p98 = scmp.eq.s32.totalorder %s34, 0
      %p99 = por %p97, %p98
      %s100 = ssub.s32 %s36, %s43
      %p101 = scmp.eq.s32.totalorder %s100, 0
      %s103 = sadd.s32 %s102, 1
      %s104 = scalar_select %p101, %s102, %s103
      %p107 = pneg %p101
      %p108 = scmp.eq.s32.totalorder %s28, 5
      %p109 = por %p107, %p108
      %p110 = scmp.ne.s32.totalorder %s102, %s105
      %p111 = scmp.eq.s32.totalorder %s28, 0
      %p112 = por %p110, %p111
      %p113 = scmp.ne.s32.totalorder %s102, %s105
      %p114 = scmp.eq.s32.totalorder %s33, 5
      %p115 = por %p113, %p114
      %p116 = scmp.ne.s32.totalorder %s105, %s106
      %p117 = scmp.eq.s32.totalorder %s33, 0
      %p118 = por %p116, %p117
      %p119 = scmp.ne.s32.totalorder %s105, %s106
      %p120 = scmp.eq.s32.totalorder %s34, 5
      %p121 = por %p119, %p120
      %p123 = scmp.ne.s32.totalorder %s106, %s122
      %p124 = scmp.eq.s32.totalorder %s34, 0
      %p125 = por %p123, %p124
      %s126 = ssub.s32 %s36, %s43
      %p127 = scmp.eq.s32.totalorder %s126, 0
      %s129 = sadd.s32 %s128, 1
      %s130 = scalar_select %p127, %s128, %s129
      %p133 = pneg %p127
      %p134 = scmp.eq.s32.totalorder %s28, 5
      %p135 = por %p133, %p134
      %p136 = scmp.ne.s32.totalorder %s128, %s131
      %p137 = scmp.eq.s32.totalorder %s28, 0
      %p138 = por %p136, %p137
      %p139 = scmp.ne.s32.totalorder %s128, %s131
      %p140 = scmp.eq.s32.totalorder %s33, 5
      %p141 = por %p139, %p140
      %p142 = scmp.ne.s32.totalorder %s131, %s132
      %p143 = scmp.eq.s32.totalorder %s33, 0
      %p144 = por %p142, %p143
      %p145 = scmp.ne.s32.totalorder %s131, %s132
      %p146 = scmp.eq.s32.totalorder %s34, 5
      %p147 = por %p145, %p146
      %p149 = scmp.ne.s32.totalorder %s132, %s148
      %p150 = scmp.eq.s32.totalorder %s34, 0
      %p151 = por %p149, %p150
      %s152 = ssub.s32 %s36, %s43
      %p153 = scmp.eq.s32.totalorder %s152, 0
      %s155 = sadd.s32 %s154, 1
      %s156 = scalar_select %p153, %s154, %s155
      %p159 = pneg %p153
      %p160 = scmp.eq.s32.totalorder %s28, 5
      %p161 = por %p159, %p160
      %p162 = scmp.ne.s32.totalorder %s154, %s157
      %p163 = scmp.eq.s32.totalorder %s28, 0
      %p164 = por %p162, %p163
      %p165 = scmp.ne.s32.totalorder %s154, %s157
      %p166 = scmp.eq.s32.totalorder %s33, 5
      %p167 = por %p165, %p166
      %p168 = scmp.ne.s32.totalorder %s157, %s158
      %p169 = scmp.eq.s32.totalorder %s33, 0
      %p170 = por %p168, %p169
      %p171 = scmp.ne.s32.totalorder %s157, %s158
      %p172 = scmp.eq.s32.totalorder %s34, 5
      %p173 = por %p171, %p172
      %p175 = scmp.ne.s32.totalorder %s158, %s174
      %p176 = scmp.eq.s32.totalorder %s34, 0
      %p177 = por %p175, %p176
      %s178 = ssub.s32 %s36, %s43
      %p179 = scmp.eq.s32.totalorder %s178, 0
      %s181 = sadd.s32 %s180, 1
      %s182 = scalar_select %p179, %s180, %s181
      %p185 = pneg %p179
      %p186 = scmp.eq.s32.totalorder %s28, 5
      %p187 = por %p185, %p186
      %p188 = scmp.ne.s32.totalorder %s180, %s183
      %p189 = scmp.eq.s32.totalorder %s28, 0
      %p190 = por %p188, %p189
      %p191 = scmp.ne.s32.totalorder %s180, %s183
      %p192 = scmp.eq.s32.totalorder %s33, 5
      %p193 = por %p191, %p192
      %p194 = scmp.ne.s32.totalorder %s183, %s184
      %p195 = scmp.eq.s32.totalorder %s33, 0
      %p196 = por %p194, %p195
      %p197 = scmp.ne.s32.totalorder %s183, %s184
      %p198 = scmp.eq.s32.totalorder %s34, 5
      %p199 = por %p197, %p198
      %p201 = scmp.ne.s32.totalorder %s184, %s200
      %p202 = scmp.eq.s32.totalorder %s34, 0
      %p203 = por %p201, %p202
      %s204 = ssub.s32 %s36, %s43
      %p205 = scmp.eq.s32.totalorder %s204, 0
      %s207 = sadd.s32 %s206, 1
      %s208 = scalar_select %p205, %s206, %s207
      %p211 = pneg %p205
      %p212 = scmp.eq.s32.totalorder %s28, 5
      %p213 = por %p211, %p212
      %p214 = scmp.ne.s32.totalorder %s206, %s209
      %p215 = scmp.eq.s32.totalorder %s28, 0
      %p216 = por %p214, %p215
      %p217 = scmp.ne.s32.totalorder %s206, %s209
      %p218 = scmp.eq.s32.totalorder %s33, 5
      %p219 = por %p217, %p218
      %p220 = scmp.ne.s32.totalorder %s209, %s210
      %p221 = scmp.eq.s32.totalorder %s33, 0
      %p222 = por %p220, %p221
      %p223 = scmp.ne.s32.totalorder %s209, %s210
      %p224 = scmp.eq.s32.totalorder %s34, 5
      %p225 = por %p223, %p224
      %p227 = scmp.ne.s32.totalorder %s210, %s226
      %p228 = scmp.eq.s32.totalorder %s34, 0
      %p229 = por %p227, %p228
      %s230 = ssub.s32 %s36, %s43
      %p231 = scmp.eq.s32.totalorder %s230, 0
      %s233 = sadd.s32 %s232, 1
      %s234 = scalar_select %p231, %s232, %s233
      %p237 = pneg %p231
      %p238 = scmp.eq.s32.totalorder %s28, 5
      %p239 = por %p237, %p238
      %p240 = scmp.ne.s32.totalorder %s232, %s235
      %p241 = scmp.eq.s32.totalorder %s28, 0
      %p242 = por %p240, %p241
      %p243 = scmp.ne.s32.totalorder %s232, %s235
      %p244 = scmp.eq.s32.totalorder %s33, 5
      %p245 = por %p243, %p244
      %p246 = scmp.ne.s32.totalorder %s235, %s236
      %p247 = scmp.eq.s32.totalorder %s33, 0
      %p248 = por %p246, %p247
      %p249 = scmp.ne.s32.totalorder %s235, %s236
      %p250 = scmp.eq.s32.totalorder %s34, 5
      %p251 = por %p249, %p250
      %p253 = scmp.ne.s32.totalorder %s236, %s252
      %p254 = scmp.eq.s32.totalorder %s34, 0
      %p255 = por %p253, %p254
      %s256 = ssub.s32 %s36, %s43
      %p257 = scmp.eq.s32.totalorder %s256, 0
      %s259 = sadd.s32 %s258, 1
      %s260 = scalar_select %p257, %s258, %s259
      %p263 = pneg %p257
      %p264 = scmp.eq.s32.totalorder %s28, 5
      %p265 = por %p263, %p264
      %p266 = scmp.ne.s32.totalorder %s258, %s261
      %p267 = scmp.eq.s32.totalorder %s28, 0
      %p268 = por %p266, %p267
      %p269 = scmp.ne.s32.totalorder %s258, %s261
      %p270 = scmp.eq.s32.totalorder %s33, 5
      %p271 = por %p269, %p270
      %p272 = scmp.ne.s32.totalorder %s261, %s262
      %p273 = scmp.eq.s32.totalorder %s33, 0
      %p274 = por %p272, %p273
      %p275 = scmp.ne.s32.totalorder %s261, %s262
      %p276 = scmp.eq.s32.totalorder %s34, 5
      %p277 = por %p275, %p276
      %p279 = scmp.ne.s32.totalorder %s262, %s278
      %p280 = scmp.eq.s32.totalorder %s34, 0
      %p281 = por %p279, %p280
      %s282 = ssub.s32 %s36, %s43
      %p283 = scmp.eq.s32.totalorder %s282, 0
      %s285 = sadd.s32 %s284, 1
      %s286 = scalar_select %p283, %s284, %s285
      %p289 = pneg %p283
      %p290 = scmp.eq.s32.totalorder %s28, 5
      %p291 = por %p289, %p290
      %p292 = scmp.ne.s32.totalorder %s284, %s287
      %p293 = scmp.eq.s32.totalorder %s28, 0
      %p294 = por %p292, %p293
      %p295 = scmp.ne.s32.totalorder %s284, %s287
      %p296 = scmp.eq.s32.totalorder %s33, 5
      %p297 = por %p295, %p296
      %p298 = scmp.ne.s32.totalorder %s287, %s288
      %p299 = scmp.eq.s32.totalorder %s33, 0
      %p300 = por %p298, %p299
      %p301 = scmp.ne.s32.totalorder %s287, %s288
      %p302 = scmp.eq.s32.totalorder %s34, 5
      %p303 = por %p301, %p302
      %p305 = scmp.ne.s32.totalorder %s288, %s304
      %p306 = scmp.eq.s32.totalorder %s34, 0
      %p307 = por %p305, %p306
      %s308 = ssub.s32 %s36, %s43
      %p309 = scmp.eq.s32.totalorder %s308, 0
      %s311 = sadd.s32 %s310, 1
      %s312 = scalar_select %p309, %s310, %s311
      %p315 = pneg %p309
      %p316 = scmp.eq.s32.totalorder %s28, 5
      %p317 = por %p315, %p316
      %p318 = scmp.ne.s32.totalorder %s310, %s313
      %p319 = scmp.eq.s32.totalorder %s28, 0
      %p320 = por %p318, %p319
      %p321 = scmp.ne.s32.totalorder %s310, %s313
      %p322 = scmp.eq.s32.totalorder %s33, 5
      %p323 = por %p321, %p322
      %p324 = scmp.ne.s32.totalorder %s313, %s314
      %p325 = scmp.eq.s32.totalorder %s33, 0
      %p326 = por %p324, %p325
      %p327 = scmp.ne.s32.totalorder %s313, %s314
      %p328 = scmp.eq.s32.totalorder %s34, 5
      %p329 = por %p327, %p328
      %p331 = scmp.ne.s32.totalorder %s314, %s330
      %p332 = scmp.eq.s32.totalorder %s34, 0
      %p333 = por %p331, %p332
      %s334 = ssub.s32 %s36, %s43
      %p335 = scmp.eq.s32.totalorder %s334, 0
      %s337 = sadd.s32 %s336, 1
      %s338 = scalar_select %p335, %s336, %s337
      %p341 = pneg %p335
      %p342 = scmp.eq.s32.totalorder %s28, 5
      %p343 = por %p341, %p342
      %p344 = scmp.ne.s32.totalorder %s336, %s339
      %p345 = scmp.eq.s32.totalorder %s28, 0
      %p346 = por %p344, %p345
      %p347 = scmp.ne.s32.totalorder %s336, %s339
      %p348 = scmp.eq.s32.totalorder %s33, 5
      %p349 = por %p347, %p348
      %p350 = scmp.ne.s32.totalorder %s339, %s340
      %p351 = scmp.eq.s32.totalorder %s33, 0
      %p352 = por %p350, %p351
      %p353 = scmp.ne.s32.totalorder %s339, %s340
      %p354 = scmp.eq.s32.totalorder %s34, 5
      %p355 = por %p353, %p354
      %p357 = scmp.ne.s32.totalorder %s340, %s356
      %p358 = scmp.eq.s32.totalorder %s34, 0
      %p359 = por %p357, %p358
      %s360 = ssub.s32 %s36, %s43
      %p361 = scmp.eq.s32.totalorder %s360, 0
      %s363 = sadd.s32 %s362, 1
      %s364 = scalar_select %p361, %s362, %s363
      %p367 = pneg %p361
      %p368 = scmp.eq.s32.totalorder %s28, 5
      %p369 = por %p367, %p368
      %p370 = scmp.ne.s32.totalorder %s362, %s365
      %p371 = scmp.eq.s32.totalorder %s28, 0
      %p372 = por %p370, %p371
      %p373 = scmp.ne.s32.totalorder %s362, %s365
      %p374 = scmp.eq.s32.totalorder %s33, 5
      %p375 = por %p373, %p374
      %p376 = scmp.ne.s32.totalorder %s365, %s366
      %p377 = scmp.eq.s32.totalorder %s33, 0
      %p378 = por %p376, %p377
      %p379 = scmp.ne.s32.totalorder %s365, %s366
      %p380 = scmp.eq.s32.totalorder %s34, 5
      %p381 = por %p379, %p380
      %p383 = scmp.ne.s32.totalorder %s366, %s382
      %p384 = scmp.eq.s32.totalorder %s34, 0
      %p385 = por %p383, %p384
      %s386 = ssub.s32 %s36, %s43
      %s387 = ssub.s32 %s35, %s47
      %s388 = sor.u32 %s386, %s387
      %p389 = scmp.eq.s32.totalorder %s388, 0
      %s391 = sadd.s32 %s390, 1
      %s392 = scalar_select %p389, %s390, %s391
      %p395 = pneg %p389
      %p396 = scmp.eq.s32.totalorder %s28, 5
      %p397 = por %p395, %p396
      %p398 = scmp.ne.s32.totalorder %s390, %s393
      %p399 = scmp.eq.s32.totalorder %s28, 0
      %p400 = por %p398, %p399
      %p401 = scmp.ne.s32.totalorder %s390, %s393
      %p402 = scmp.eq.s32.totalorder %s33, 5
      %p403 = por %p401, %p402
      %p404 = scmp.ne.s32.totalorder %s393, %s394
      %p405 = scmp.eq.s32.totalorder %s33, 0
      %p406 = por %p404, %p405
      %p407 = scmp.ne.s32.totalorder %s393, %s394
      %p408 = scmp.eq.s32.totalorder %s34, 5
      %p409 = por %p407, %p408
      %p411 = scmp.ne.s32.totalorder %s394, %s410
      %p412 = scmp.eq.s32.totalorder %s34, 0
      %p413 = por %p411, %p412
      %p414 = scmp.le.s32.totalorder 1, %s28
      %p415 = scmp.lt.s32.totalorder %s28, 7
      %p416 = pnand %p414, %p415
      %p417 = pneg %p416
      // Predicated region
      $region9: #{forward.3} parent=5 // pred_check
        _
      $region10: #{forward.3} parent=5 // pred_check_branch
        %419 = sbr.rel (%p416) target = $region12
      $region11: #{forward.3} parent=5 // pred_region
        %s420 = ssub.s32 %s28, 1
      $region12: #{forward.3} parent=5 // pred_fallthru
        _
      %p421 = scmp.lt.s32.totalorder %s28, 6
      // Predicated region
      $region13: #{forward.3} parent=5 // pred_check
        %p422 = pneg %p421
      $region14: #{forward.3} parent=5 // pred_check_branch
        %424 = sbr.rel (%p422) target = $region16
      $region15: #{forward.3} parent=5 // pred_region
        // Predicated region
        $region17: #{forward.3} parent=15 // pred_check
          %p425 = pneg %p60
        $region18: #{forward.3} parent=15 // pred_check_branch
          %427 = sbr.rel (%p425) target = $region20
        $region19: #{forward.3} parent=15 // pred_region
          %p428 = scmp.lt.s32.totalorder %s35, 1
          %s429 = scalar_select %p428, %s35, 1
          %s430 = smul.addr %s429, 8
          %s431 = smul.addr %s430, 4
          %s432 = scalar_lea.vmem %s0, %s431
        $region20: #{forward.3} parent=15 // pred_fallthru
          _
        // Predicated region
        $region21: #{forward.3} parent=15 // pred_check
          %p433 = pneg %p86
        $region22: #{forward.3} parent=15 // pred_check_branch
          %435 = sbr.rel (%p433) target = $region24
        $region23: #{forward.3} parent=15 // pred_region
          %s436 = sand.u32 %s76, 1
          %s437 = scalar_lea.sflag [#allocation4], %s436
          %s438 = sand.u32 %s76, 1
          %s439 = smul.addr %s438, 192
          %s440 = scalar_lea.vmem [#allocation3], %s439
          %s442 = ssub.s32 3072, 3072
          %443 = vsyncadd %s437, %s442
          %s444 = smul.addr %s36, 48
          %s445 = smul.addr %s444, 64
          %s446 = scalar_lea.hbm %s1, %s445
          %s447 = sshll.u32 %s440, 4
          %s448 = int_to_ptr.vmem [resolvable:$true] %s447
          %453 = dma.hbm_to_vmem [thread:$0]  %s446, 3072, %s448, %s437, 192, 192, 12
        $region24: #{forward.3} parent=15 // pred_fallthru
          _
        // Predicated region
        $region25: #{forward.3} parent=15 // pred_check
          %p454 = pneg %p112
        $region26: #{forward.3} parent=15 // pred_check_branch
          %456 = sbr.rel (%p454) target = $region28
        $region27: #{forward.3} parent=15 // pred_region
          %p457 = scmp.lt.s32.totalorder %s36, 2
          %s458 = scalar_select %p457, %s36, 2
          %s459 = smul.addr %s458, 3
          %s460 = scalar_lea.vmem %s2, %s459
        $region28: #{forward.3} parent=15 // pred_fallthru
          _
        // Predicated region
        $region29: #{forward.3} parent=15 // pred_check
          %p461 = pneg %p138
        $region30: #{forward.3} parent=15 // pred_check_branch
          %463 = sbr.rel (%p461) target = $region32
        $region31: #{forward.3} parent=15 // pred_region
          %s464 = sand.u32 %s128, 1
          %s465 = scalar_lea.sflag [#allocation7], %s464
          %s466 = sand.u32 %s128, 1
          %s467 = smul.addr %s466, 64
          %s468 = scalar_lea.vmem [#allocation6], %s467
          %s470 = ssub.s32 1024, 1024
          %471 = vsyncadd %s465, %s470
          %s472 = smul.addr %s36, 16
          %s473 = smul.addr %s472, 64
          %s474 = scalar_lea.hbm %s3, %s473
          %s475 = sshll.u32 %s468, 4
          %s476 = int_to_ptr.vmem [resolvable:$true] %s475
          %481 = dma.hbm_to_vmem [thread:$0]  %s474, 1024, %s476, %s465, 64, 64, 4
        $region32: #{forward.3} parent=15 // pred_fallthru
          _
        // Predicated region
        $region33: #{forward.3} parent=15 // pred_check
          %p482 = pneg %p164
        $region34: #{forward.3} parent=15 // pred_check_branch
          %484 = sbr.rel (%p482) target = $region36
        $region35: #{forward.3} parent=15 // pred_region
          %p485 = scmp.lt.s32.totalorder %s36, 2
          %s486 = scalar_select %p485, %s36, 2
          %s487 = scalar_lea.vmem %s4, %s486
        $region36: #{forward.3} parent=15 // pred_fallthru
          _
        // Predicated region
        $region37: #{forward.3} parent=15 // pred_check
          %p488 = pneg %p190
        $region38: #{forward.3} parent=15 // pred_check_branch
          %490 = sbr.rel (%p488) target = $region40
        $region39: #{forward.3} parent=15 // pred_region
          %p491 = scmp.lt.s32.totalorder %s36, 2
          %s492 = scalar_select %p491, %s36, 2
          %s493 = scalar_lea.vmem %s5, %s492
        $region40: #{forward.3} parent=15 // pred_fallthru
          _
        // Predicated region
        $region41: #{forward.3} parent=15 // pred_check
          %p494 = pneg %p216
        $region42: #{forward.3} parent=15 // pred_check_branch
          %496 = sbr.rel (%p494) target = $region44
        $region43: #{forward.3} parent=15 // pred_region
          %p497 = scmp.lt.s32.totalorder %s36, 2
          %s498 = scalar_select %p497, %s36, 2
          %s499 = scalar_lea.vmem %s6, %s498
        $region44: #{forward.3} parent=15 // pred_fallthru
          _
        // Predicated region
        $region45: #{forward.3} parent=15 // pred_check
          %p500 = pneg %p242
        $region46: #{forward.3} parent=15 // pred_check_branch
          %502 = sbr.rel (%p500) target = $region48
        $region47: #{forward.3} parent=15 // pred_region
          %p503 = scmp.lt.s32.totalorder %s36, 2
          %s504 = scalar_select %p503, %s36, 2
          %s505 = smul.addr %s504, 64
          %s506 = smul.addr %s505, 4
          %s507 = scalar_lea.vmem %s7, %s506
        $region48: #{forward.3} parent=15 // pred_fallthru
          _
        // Predicated region
        $region49: #{forward.3} parent=15 // pred_check
          %p508 = pneg %p268
        $region50: #{forward.3} parent=15 // pred_check_branch
          %510 = sbr.rel (%p508) target = $region52
        $region51: #{forward.3} parent=15 // pred_region
          %p511 = scmp.lt.s32.totalorder %s36, 2
          %s512 = scalar_select %p511, %s36, 2
          %s513 = smul.addr %s512, 4
          %s514 = scalar_lea.vmem %s8, %s513
        $region52: #{forward.3} parent=15 // pred_fallthru
          _
        // Predicated region
        $region53: #{forward.3} parent=15 // pred_check
          %p515 = pneg %p294
        $region54: #{forward.3} parent=15 // pred_check_branch
          %517 = sbr.rel (%p515) target = $region56
        $region55: #{forward.3} parent=15 // pred_region
          %p518 = scmp.lt.s32.totalorder %s36, 2
          %s519 = scalar_select %p518, %s36, 2
          %s520 = smul.addr %s519, 64
          %s521 = smul.addr %s520, 4
          %s522 = scalar_lea.vmem %s9, %s521
        $region56: #{forward.3} parent=15 // pred_fallthru
          _
        // Predicated region
        $region57: #{forward.3} parent=15 // pred_check
          %p523 = pneg %p320
        $region58: #{forward.3} parent=15 // pred_check_branch
          %525 = sbr.rel (%p523) target = $region60
        $region59: #{forward.3} parent=15 // pred_region
          %p526 = scmp.lt.s32.totalorder %s36, 2
          %s527 = scalar_select %p526, %s36, 2
          %s528 = scalar_lea.vmem %s10, %s527
        $region60: #{forward.3} parent=15 // pred_fallthru
          _
        // Predicated region
        $region61: #{forward.3} parent=15 // pred_check
          %p529 = pneg %p346
        $region62: #{forward.3} parent=15 // pred_check_branch
          %531 = sbr.rel (%p529) target = $region64
        $region63: #{forward.3} parent=15 // pred_region
          %p532 = scmp.lt.s32.totalorder %s36, 2
          %s533 = scalar_select %p532, %s36, 2
          %s534 = scalar_lea.vmem %s11, %s533
        $region64: #{forward.3} parent=15 // pred_fallthru
          _
        // Predicated region
        $region65: #{forward.3} parent=15 // pred_check
          %p535 = pneg %p372
        $region66: #{forward.3} parent=15 // pred_check_branch
          %537 = sbr.rel (%p535) target = $region68
        $region67: #{forward.3} parent=15 // pred_region
          %p538 = scmp.lt.s32.totalorder %s36, 2
          %s539 = scalar_select %p538, %s36, 2
          %s540 = scalar_lea.vmem %s12, %s539
        $region68: #{forward.3} parent=15 // pred_fallthru
          _
      $region16: #{forward.3} parent=5 // pred_fallthru
        _
      %p541 = scmp.le.s32.totalorder 1, %s28
      %p542 = scmp.lt.s32.totalorder %s28, 7
      %p543 = pnand %p541, %p542
      %p544 = pneg %p543
      // Predicated region
      $region69: #{forward.3} parent=5 // pred_check
        _
      $region70: #{forward.3} parent=5 // pred_check_branch
        %546 = sbr.rel (%p543) target = $region72
      $region71: #{forward.3} parent=5 // pred_region
        %s547 = ssub.s32 %s28, 1
        %s548 = sand.u32 %s79, 1
        %s549 = scalar_lea.sflag [#allocation4], %s548
        %s550 = sand.u32 %s79, 1
        %s551 = smul.addr %s550, 192
        %s552 = scalar_lea.vmem [#allocation3], %s551
        // Predicated region
        $region73: #{forward.3} parent=71 // pred_check
          %p553 = pneg %p92
        $region74: #{forward.3} parent=71 // pred_check_branch
          %555 = sbr.rel (%p553) target = $region76
        $region75: #{forward.3} parent=71 // pred_region
          %556 = dma.done %s549, 3072
        $region76: #{forward.3} parent=71 // pred_fallthru
          _
        %s557 = sand.u32 %s131, 1
        %s558 = scalar_lea.sflag [#allocation7], %s557
        %s559 = sand.u32 %s131, 1
        %s560 = smul.addr %s559, 64
        %s561 = scalar_lea.vmem [#allocation6], %s560
        // Predicated region
        $region77: #{forward.3} parent=71 // pred_check
          %p562 = pneg %p144
        $region78: #{forward.3} parent=71 // pred_check_branch
          %564 = sbr.rel (%p562) target = $region80
        $region79: #{forward.3} parent=71 // pred_region
          %565 = dma.done %s558, 1024
        $region80: #{forward.3} parent=71 // pred_fallthru
          _
        %p566 = scmp.lt.s32.totalorder %s37, 1
        %s567 = scalar_select %p566, %s37, 1
        %s568 = smul.addr %s567, 8
        %s569 = smul.addr %s568, 4
        %s570 = scalar_lea.vmem %s0, %s569
        %p571 = pneg %p66
        %p572 = pneg %p63
        %s573 = sand.u32 %s79, 1
        %s574 = scalar_lea.sflag [#allocation4], %s573
        %s575 = sand.u32 %s79, 1
        %s576 = smul.addr %s575, 192
        %s577 = scalar_lea.vmem [#allocation3], %s576
        %p578 = pneg %p92
        %p579 = pneg %p89
        %p580 = scmp.lt.s32.totalorder %s38, 2
        %s581 = scalar_select %p580, %s38, 2
        %s582 = smul.addr %s581, 3
        %s583 = scalar_lea.vmem %s2, %s582
        %p584 = pneg %p118
        %p585 = pneg %p115
        %s586 = sand.u32 %s131, 1
        %s587 = scalar_lea.sflag [#allocation7], %s586
        %s588 = sand.u32 %s131, 1
        %s589 = smul.addr %s588, 64
        %s590 = scalar_lea.vmem [#allocation6], %s589
        %p591 = pneg %p144
        %p592 = pneg %p141
        %p593 = scmp.lt.s32.totalorder %s38, 2
        %s594 = scalar_select %p593, %s38, 2
        %s595 = scalar_lea.vmem %s4, %s594
        %p596 = pneg %p170
        %p597 = pneg %p167
        %p598 = scmp.lt.s32.totalorder %s38, 2
        %s599 = scalar_select %p598, %s38, 2
        %s600 = scalar_lea.vmem %s5, %s599
        %p601 = pneg %p196
        %p602 = pneg %p193
        %p603 = scmp.lt.s32.totalorder %s38, 2
        %s604 = scalar_select %p603, %s38, 2
        %s605 = scalar_lea.vmem %s6, %s604
        %p606 = pneg %p222
        %p607 = pneg %p219
        %p608 = scmp.lt.s32.totalorder %s38, 2
        %s609 = scalar_select %p608, %s38, 2
        %s610 = smul.addr %s609, 64
        %s611 = smul.addr %s610, 4
        %s612 = scalar_lea.vmem %s7, %s611
        %p613 = pneg %p248
        %p614 = pneg %p245
        %p615 = scmp.lt.s32.totalorder %s38, 2
        %s616 = scalar_select %p615, %s38, 2
        %s617 = smul.addr %s616, 4
        %s618 = scalar_lea.vmem %s8, %s617
        %p619 = pneg %p274
        %p620 = pneg %p271
        %p621 = scmp.lt.s32.totalorder %s38, 2
        %s622 = scalar_select %p621, %s38, 2
        %s623 = smul.addr %s622, 64
        %s624 = smul.addr %s623, 4
        %s625 = scalar_lea.vmem %s9, %s624
        %p626 = pneg %p300
        %p627 = pneg %p297
        %p628 = scmp.lt.s32.totalorder %s38, 2
        %s629 = scalar_select %p628, %s38, 2
        %s630 = scalar_lea.vmem %s10, %s629
        %p631 = pneg %p326
        %p632 = pneg %p323
        %p633 = scmp.lt.s32.totalorder %s38, 2
        %s634 = scalar_select %p633, %s38, 2
        %s635 = scalar_lea.vmem %s11, %s634
        %p636 = pneg %p352
        %p637 = pneg %p349
        %p638 = scmp.lt.s32.totalorder %s38, 2
        %s639 = scalar_select %p638, %s38, 2
        %s640 = scalar_lea.vmem %s12, %s639
        %p641 = pneg %p378
        %p642 = pneg %p375
        %p643 = pneg %p406
        %p644 = pneg %p403
        %s645 = sand.u32 %s393, 1
        %s646 = scalar_lea.sflag [#allocation5], %s645
        %s647 = sand.u32 %s393, 1
        %s648 = smul.addr %s647, 64
        %s649 = scalar_lea.vmem [#allocation8], %s648
        %p650 = scmp.lt.s32.totalorder %s37, 1
        %s651 = scalar_select %p650, %s37, 1
        %s652 = smul.addr %s651, 8
        %s653 = smul.addr %s652, 4
        %s654 = scalar_lea.vmem %s0, %s653
        %p655 = scmp.lt.s32.totalorder %s38, 2
        %s656 = scalar_select %p655, %s38, 2
        %s657 = smul.addr %s656, 3
        %s658 = scalar_lea.vmem %s2, %s657
        %p659 = scmp.lt.s32.totalorder %s38, 2
        %s660 = scalar_select %p659, %s38, 2
        %s661 = scalar_lea.vmem %s4, %s660
        %p662 = scmp.lt.s32.totalorder %s38, 2
        %s663 = scalar_select %p662, %s38, 2
        %s664 = scalar_lea.vmem %s5, %s663
        %p665 = scmp.lt.s32.totalorder %s38, 2
        %s666 = scalar_select %p665, %s38, 2
        %s667 = scalar_lea.vmem %s6, %s666
        %p668 = scmp.lt.s32.totalorder %s38, 2
        %s669 = scalar_select %p668, %s38, 2
        %s670 = smul.addr %s669, 64
        %s671 = smul.addr %s670, 4
        %s672 = scalar_lea.vmem %s7, %s671
        %p673 = scmp.lt.s32.totalorder %s38, 2
        %s674 = scalar_select %p673, %s38, 2
        %s675 = smul.addr %s674, 4
        %s676 = scalar_lea.vmem %s8, %s675
        %p677 = scmp.lt.s32.totalorder %s38, 2
        %s678 = scalar_select %p677, %s38, 2
        %s679 = smul.addr %s678, 64
        %s680 = smul.addr %s679, 4
        %s681 = scalar_lea.vmem %s9, %s680
        %p682 = scmp.lt.s32.totalorder %s38, 2
        %s683 = scalar_select %p682, %s38, 2
        %s684 = scalar_lea.vmem %s10, %s683
        %p685 = scmp.lt.s32.totalorder %s38, 2
        %s686 = scalar_select %p685, %s38, 2
        %s687 = scalar_lea.vmem %s11, %s686
        %p688 = scmp.lt.s32.totalorder %s38, 2
        %s689 = scalar_select %p688, %s38, 2
        %s690 = scalar_lea.vmem %s12, %s689
        %p692 = scmp.eq.s32.totalorder %s38, 0
        // Predicated region
        $region81: #{forward.3} parent=71 // pred_check
          %p693 = pneg %p692
        $region82: #{forward.3} parent=71 // pred_check_branch
          %695 = sbr.rel (%p693) target = $region84
        $region83: #{forward.3} parent=71 // pred_region
          %v696 = vld [vmem:[%s654] sm:$0xf]
          %v697 = vld [vmem:[%s654 + $0x4] sm:$0xf]
          %v698 = vld [vmem:[%s654 + $0x8] sm:$0xf]
          %v699 = vld [vmem:[%s654 + $0xc] sm:$0xf]
          %v700 = vld [vmem:[%s654 + $0x10] sm:$0xf]
          %v701 = vld [vmem:[%s654 + $0x14] sm:$0xf]
          %v702 = vld [vmem:[%s654 + $0x18] sm:$0xf]
          %v703 = vld [vmem:[%s654 + $0x1c] sm:$0xf]
          %v704 = vunpack.c.l.bf16 %v696
          %v705 = vunpack.c.l.bf16 %v697
          %v706 = vunpack.c.l.bf16 %v698
          %v707 = vunpack.c.l.bf16 %v699
          %v708 = vunpack.c.l.bf16 %v700
          %v709 = vunpack.c.l.bf16 %v701
          %v710 = vunpack.c.l.bf16 %v702
          %v711 = vunpack.c.l.bf16 %v703
          %712 = vst [vmem:[#allocation2] sm:$0xff] %v704
          %713 = vst [vmem:[#allocation2 + $0x8] sm:$0xff] %v705
          %714 = vst [vmem:[#allocation2 + $0x10] sm:$0xff] %v706
          %715 = vst [vmem:[#allocation2 + $0x18] sm:$0xff] %v707
          %716 = vst [vmem:[#allocation2 + $0x20] sm:$0xff] %v708
          %717 = vst [vmem:[#allocation2 + $0x28] sm:$0xff] %v709
          %718 = vst [vmem:[#allocation2 + $0x30] sm:$0xff] %v710
          %719 = vst [vmem:[#allocation2 + $0x38] sm:$0xff] %v711
        $region84: #{forward.3} parent=71 // pred_fallthru
          _
        %v720 = vld [vmem:[#allocation2] sm:$0xff]
        %v721 = vld [vmem:[#allocation2 + $0x8] sm:$0xff]
        %v722 = vld [vmem:[#allocation2 + $0x10] sm:$0xff]
        %v723 = vld [vmem:[#allocation2 + $0x18] sm:$0xff]
        %v724 = vld [vmem:[#allocation2 + $0x20] sm:$0xff]
        %v725 = vld [vmem:[#allocation2 + $0x28] sm:$0xff]
        %v726 = vld [vmem:[#allocation2 + $0x30] sm:$0xff]
        %v727 = vld [vmem:[#allocation2 + $0x38] sm:$0xff]
        %v728 = vpack.c.bf16 %v721, %v720
        %v729 = vpack.c.bf16 %v723, %v722
        %v730 = vpack.c.bf16 %v725, %v724
        %v731 = vpack.c.bf16 %v727, %v726
        %v732 = vld [vmem:[%s552] sm:$0xff]
        %v733 = vld [vmem:[%s552 + $0x8] sm:$0xf]
        %v734 = vld [vmem:[%s552 + $0xc] sm:$0xff]
        %v735 = vld [vmem:[%s552 + $0x14] sm:$0xf]
        %v736 = vld [vmem:[%s552 + $0x18] sm:$0xff]
        %v737 = vld [vmem:[%s552 + $0x20] sm:$0xf]
        %v738 = vld [vmem:[%s552 + $0x24] sm:$0xff]
        %v739 = vld [vmem:[%s552 + $0x2c] sm:$0xf]
        %v740 = vld [vmem:[%s552 + $0x30] sm:$0xff]
        %v741 = vld [vmem:[%s552 + $0x38] sm:$0xf]
        %v742 = vld [vmem:[%s552 + $0x3c] sm:$0xff]
        %v743 = vld [vmem:[%s552 + $0x44] sm:$0xf]
        %v744 = vld [vmem:[%s552 + $0x48] sm:$0xff]
        %v745 = vld [vmem:[%s552 + $0x50] sm:$0xf]
        %v746 = vld [vmem:[%s552 + $0x54] sm:$0xff]
        %v747 = vld [vmem:[%s552 + $0x5c] sm:$0xf]
        %v748 = vld [vmem:[%s552 + $0x60] sm:$0xff]
        %v749 = vld [vmem:[%s552 + $0x68] sm:$0xf]
        %v750 = vld [vmem:[%s552 + $0x6c] sm:$0xff]
        %v751 = vld [vmem:[%s552 + $0x74] sm:$0xf]
        %v752 = vld [vmem:[%s552 + $0x78] sm:$0xff]
        %v753 = vld [vmem:[%s552 + $0x80] sm:$0xf]
        %v754 = vld [vmem:[%s552 + $0x84] sm:$0xff]
        %v755 = vld [vmem:[%s552 + $0x8c] sm:$0xf]
        %v756 = vld [vmem:[%s552 + $0x90] sm:$0xff]
        %v757 = vld [vmem:[%s552 + $0x98] sm:$0xf]
        %v758 = vld [vmem:[%s552 + $0x9c] sm:$0xff]
        %v759 = vld [vmem:[%s552 + $0xa4] sm:$0xf]
        %v760 = vld [vmem:[%s552 + $0xa8] sm:$0xff]
        %v761 = vld [vmem:[%s552 + $0xb0] sm:$0xf]
        %v762 = vld [vmem:[%s552 + $0xb4] sm:$0xff]
        %v763 = vld [vmem:[%s552 + $0xbc] sm:$0xf]
        %v764 = vld [vmem:[%s658] sm:$0x7]
        %v766 = vlaneseq
        %v767 = vshrl.u32 %v766, 7
        %v768 = vsub.s32 0, %v767
        %v769 = vrot.slane %v764, %v768
        %v770 = vlaneseq
        %v771 = vshrl.u32 %v770, 7
        %v772 = vsub.s32 1, %v771
        %v773 = vrot.slane %v764, %v772
        %v774 = vlaneseq
        %v775 = vshrl.u32 %v774, 7
        %v776 = vsub.s32 2, %v775
        %v777 = vrot.slane %v764, %v776
        %v813 = vunpack.c.l.b16 %v732
        %v814 = vunpack.c.h.b16 %v732
        %v815 = vunpack.c.l.b16 %v733
        %v816 = vunpack.c.l.b16 %v734
        %v817 = vunpack.c.h.b16 %v734
        %v818 = vunpack.c.l.b16 %v735
        %v819 = vunpack.c.l.b16 %v736
        %v820 = vunpack.c.h.b16 %v736
        %v821 = vunpack.c.l.b16 %v737
        %v822 = vunpack.c.l.b16 %v738
        %v823 = vunpack.c.h.b16 %v738
        %v824 = vunpack.c.l.b16 %v739
        %v825 = vunpack.c.l.b16 %v740
        %v826 = vunpack.c.h.b16 %v740
        %v827 = vunpack.c.l.b16 %v741
        %v828 = vunpack.c.l.b16 %v742
        %v829 = vunpack.c.h.b16 %v742
        %v830 = vunpack.c.l.b16 %v743
        %v831 = vunpack.c.l.b16 %v744
        %v832 = vunpack.c.h.b16 %v744
        %v833 = vunpack.c.l.b16 %v745
        %v834 = vunpack.c.l.b16 %v746
        %v835 = vunpack.c.h.b16 %v746
        %v836 = vunpack.c.l.b16 %v747
        %v837 = vunpack.c.l.b16 %v748
        %v838 = vunpack.c.h.b16 %v748
        %v839 = vunpack.c.l.b16 %v749
        %v840 = vunpack.c.l.b16 %v750
        %v841 = vunpack.c.h.b16 %v750
        %v842 = vunpack.c.l.b16 %v751
        %v843 = vunpack.c.l.b16 %v752
        %v844 = vunpack.c.h.b16 %v752
        %v845 = vunpack.c.l.b16 %v753
        %v846 = vunpack.c.l.b16 %v754
        %v847 = vunpack.c.h.b16 %v754
        %v848 = vunpack.c.l.b16 %v755
        %v849 = vunpack.c.l.b16 %v756
        %v850 = vunpack.c.h.b16 %v756
        %v851 = vunpack.c.l.b16 %v757
        %v852 = vunpack.c.l.b16 %v758
        %v853 = vunpack.c.h.b16 %v758
        %v854 = vunpack.c.l.b16 %v759
        %v855 = vunpack.c.l.b16 %v760
        %v856 = vunpack.c.h.b16 %v760
        %v857 = vunpack.c.l.b16 %v761
        %v858 = vunpack.c.l.b16 %v762
        %v859 = vunpack.c.h.b16 %v762
        %v860 = vunpack.c.l.b16 %v763
        %v861 = vpack.c.b16 %v816, %v813
        %v862 = vpack.c.b16 %v817, %v814
        %v863 = vpack.c.b16 %v818, %v815
        %v864 = vpack.c.b16 %v822, %v819
        %v865 = vpack.c.b16 %v823, %v820
        %v866 = vpack.c.b16 %v824, %v821
        %v867 = vpack.c.b16 %v828, %v825
        %v868 = vpack.c.b16 %v829, %v826
        %v869 = vpack.c.b16 %v830, %v827
        %v870 = vpack.c.b16 %v834, %v831
        %v871 = vpack.c.b16 %v835, %v832
        %v872 = vpack.c.b16 %v836, %v833
        %v873 = vpack.c.b16 %v840, %v837
        %v874 = vpack.c.b16 %v841, %v838
        %v875 = vpack.c.b16 %v842, %v839
        %v876 = vpack.c.b16 %v846, %v843
        %v877 = vpack.c.b16 %v847, %v844
        %v878 = vpack.c.b16 %v848, %v845
        %v879 = vpack.c.b16 %v852, %v849
        %v880 = vpack.c.b16 %v853, %v850
        %v881 = vpack.c.b16 %v854, %v851
        %v882 = vpack.c.b16 %v858, %v855
        %v883 = vpack.c.b16 %v859, %v856
        %v884 = vpack.c.b16 %v860, %v857
        %909 = vmatprep.subr.bf16.mxu0 %v862
        %910 = vmatpush1.bf16.msra.mxu0 %v861
        %911 = vmatprep.subr.bf16.mxu0 %v865
        %912 = vmatpush1.bf16.msra.mxu0 %v864
        %913 = vmatprep.subr.bf16.mxu0 %v868
        %914 = vmatpush1.bf16.msra.mxu0 %v867
        %915 = vmatprep.subr.bf16.mxu0 %v871
        %916 = vmatpush1.bf16.msra.mxu0 %v870
        %917 = vmatprep.subr.bf16.mxu0 %v874
        %918 = vmatpush1.bf16.msra.mxu0 %v873
        %919 = vmatprep.subr.bf16.mxu0 %v877
        %920 = vmatpush1.bf16.msra.mxu0 %v876
        %921 = vmatprep.subr.bf16.mxu0 %v880
        %922 = vmatpush1.bf16.msra.mxu0 %v879
        %923 = vmatprep.subr.bf16.mxu0 %v883
        %924 = vmatpush1.bf16.msra.mxu0 %v882
        %925 = vmatprep.subr.bf16.mxu0 0
        %926 = vmatpush1.bf16.msra.mxu0 0
        %927 = vmatprep.subr.bf16.mxu0 0
        %928 = vmatpush1.bf16.msra.mxu0 0
        %929 = vmatprep.subr.bf16.mxu0 0
        %930 = vmatpush1.bf16.msra.mxu0 0
        %931 = vmatprep.subr.bf16.mxu0 0
        %932 = vmatpush1.bf16.msra.mxu0 0
        %933 = vmatprep.subr.bf16.mxu0 0
        %934 = vmatpush1.bf16.msra.mxu0 0
        %935 = vmatprep.subr.bf16.mxu0 0
        %936 = vmatpush1.bf16.msra.mxu0 0
        %937 = vmatprep.subr.bf16.mxu0 0
        %938 = vmatpush1.bf16.msra.mxu0 0
        %939 = vmatprep.subr.bf16.mxu0 0
        %940 = vmatpush1.bf16.msra.mxu0 0
        %941 = vmatprep.mubr.bf16.mxu0 0
        %942 = vmatmul.mubr.bf16.gmra.mrb[0].mxu0 %v728
        %v943 = vpop.f32.mrb[0].mxu0
        %v944 = vadd.f32 %v769, %v943
        %v945 = vpop.f32.mrb[0].mxu0
        %v946 = vadd.f32 %v773, %v945
        %v947 = vpop.f32.mrb[0].mxu0
        %v948 = vadd.f32 %v769, %v947
        %v949 = vpop.f32.mrb[0].mxu0
        %v950 = vadd.f32 %v773, %v949
        %951 = vmatprep.mubr.bf16.mxu0 0
        %952 = vmatmul.mubr.bf16.gmra.mrb[0].mxu0 %v729
        %v953 = vpop.f32.mrb[0].mxu0
        %v954 = vadd.f32 %v769, %v953
        %v955 = vpop.f32.mrb[0].mxu0
        %v956 = vadd.f32 %v773, %v955
        %v957 = vpop.f32.mrb[0].mxu0
        %v958 = vadd.f32 %v769, %v957
        %v959 = vpop.f32.mrb[0].mxu0
        %v960 = vadd.f32 %v773, %v959
        %961 = vmatprep.mubr.bf16.mxu0 0
        %962 = vmatmul.mubr.bf16.gmra.mrb[0].mxu0 %v730
        %v963 = vpop.f32.mrb[0].mxu0
        %v964 = vadd.f32 %v769, %v963
        %v965 = vpop.f32.mrb[0].mxu0
        %v966 = vadd.f32 %v773, %v965
        %v967 = vpop.f32.mrb[0].mxu0
        %v968 = vadd.f32 %v769, %v967
        %v969 = vpop.f32.mrb[0].mxu0
        %v970 = vadd.f32 %v773, %v969
        %971 = vmatprep.mubr.bf16.mxu0 0
        %972 = vmatmul.mubr.bf16.gmra.mrb[0].mxu0 %v731
        %v973 = vpop.f32.mrb[0].mxu0
        %v974 = vadd.f32 %v769, %v973
        %v975 = vpop.f32.mrb[0].mxu0
        %v976 = vadd.f32 %v773, %v975
        %v977 = vpop.f32.mrb[0].mxu0
        %v978 = vadd.f32 %v769, %v977
        %v979 = vpop.f32.mrb[0].mxu0
        %v980 = vadd.f32 %v773, %v979
        %981 = vdwg.mxu0
        %982 = vmatprep.subr.bf16.mxu0 0
        %983 = vmatpush1.bf16.msra.mxu0 %v863
        %984 = vmatprep.subr.bf16.mxu0 0
        %985 = vmatpush1.bf16.msra.mxu0 %v866
        %986 = vmatprep.subr.bf16.mxu0 0
        %987 = vmatpush1.bf16.msra.mxu0 %v869
        %988 = vmatprep.subr.bf16.mxu0 0
        %989 = vmatpush1.bf16.msra.mxu0 %v872
        %990 = vmatprep.subr.bf16.mxu0 0
        %991 = vmatpush1.bf16.msra.mxu0 %v875
        %992 = vmatprep.subr.bf16.mxu0 0
        %993 = vmatpush1.bf16.msra.mxu0 %v878
        %994 = vmatprep.subr.bf16.mxu0 0
        %995 = vmatpush1.bf16.msra.mxu0 %v881
        %996 = vmatprep.subr.bf16.mxu0 0
        %997 = vmatpush1.bf16.msra.mxu0 %v884
        %998 = vmatprep.subr.bf16.mxu0 0
        %999 = vmatpush1.bf16.msra.mxu0 0
        %1000 = vmatprep.subr.bf16.mxu0 0
        %1001 = vmatpush1.bf16.msra.mxu0 0
        %1002 = vmatprep.subr.bf16.mxu0 0
        %1003 = vmatpush1.bf16.msra.mxu0 0
        %1004 = vmatprep.subr.bf16.mxu0 0
        %1005 = vmatpush1.bf16.msra.mxu0 0
        %1006 = vmatprep.subr.bf16.mxu0 0
        %1007 = vmatpush1.bf16.msra.mxu0 0
        %1008 = vmatprep.subr.bf16.mxu0 0
        %1009 = vmatpush1.bf16.msra.mxu0 0
        %1010 = vmatprep.subr.bf16.mxu0 0
        %1011 = vmatpush1.bf16.msra.mxu0 0
        %1012 = vmatprep.subr.bf16.mxu0 0
        %1013 = vmatpush1.bf16.msra.mxu0 0
        %1014 = vmatprep.mubr.bf16.mxu0 0
        %1015 = vmatmul.mubr.bf16.gmra.mrb[0].mxu0 %v728
        %v1016 = vpop.f32.mrb[0].mxu0
        %v1017 = vadd.f32 %v777, %v1016
        %v1018 = vpop.f32.mrb[0].mxu0
        %v1019 = vpop.f32.mrb[0].mxu0
        %v1020 = vadd.f32 %v777, %v1019
        %v1021 = vpop.f32.mrb[0].mxu0
        %1022 = vmatprep.mubr.bf16.mxu0 0
        %1023 = vmatmul.mubr.bf16.gmra.mrb[0].mxu0 %v729
        %v1024 = vpop.f32.mrb[0].mxu0
        %v1025 = vadd.f32 %v777, %v1024
        %v1026 = vpop.f32.mrb[0].mxu0
        %v1027 = vpop.f32.mrb[0].mxu0
        %v1028 = vadd.f32 %v777, %v1027
        %v1029 = vpop.f32.mrb[0].mxu0
        %1030 = vmatprep.mubr.bf16.mxu0 0
        %1031 = vmatmul.mubr.bf16.gmra.mrb[0].mxu0 %v730
        %v1032 = vpop.f32.mrb[0].mxu0
        %v1033 = vadd.f32 %v777, %v1032
        %v1034 = vpop.f32.mrb[0].mxu0
        %v1035 = vpop.f32.mrb[0].mxu0
        %v1036 = vadd.f32 %v777, %v1035
        %v1037 = vpop.f32.mrb[0].mxu0
        %1038 = vmatprep.mubr.bf16.mxu0 0
        %1039 = vmatmul.mubr.bf16.gmra.mrb[0].mxu0 %v731
        %v1040 = vpop.f32.mrb[0].mxu0
        %v1041 = vadd.f32 %v777, %v1040
        %v1042 = vpop.f32.mrb[0].mxu0
        %v1043 = vpop.f32.mrb[0].mxu0
        %v1044 = vadd.f32 %v777, %v1043
        %v1045 = vpop.f32.mrb[0].mxu0
        %1046 = vdwg.mxu0
        %v1047 = vpack.c.bf16 %v948, %v944
        %v1048 = vpack.c.bf16 %v958, %v954
        %v1049 = vpack.c.bf16 %v968, %v964
        %v1050 = vpack.c.bf16 %v978, %v974
        %v1051 = vpack.c.bf16 %v950, %v946
        %v1052 = vpack.c.bf16 %v960, %v956
        %v1053 = vpack.c.bf16 %v970, %v966
        %v1054 = vpack.c.bf16 %v980, %v976
        %v1055 = vpack.c.bf16 %v1020, %v1017
        %v1056 = vpack.c.bf16 %v1028, %v1025
        %v1057 = vpack.c.bf16 %v1036, %v1033
        %v1058 = vpack.c.bf16 %v1044, %v1041
        %1059 = vmatprep.subr.bf16.mxu0 0
        %1060 = vmatpush1.bf16.xpose.msra.mxu0 %v1051
        %1061 = vmatprep.subr.bf16.mxu0 0
        %1062 = vmatpush1.bf16.xpose.msra.mxu0 %v1052
        %1063 = vmatprep.subr.bf16.mxu0 0
        %1064 = vmatpush1.bf16.xpose.msra.mxu0 %v1053
        %1065 = vmatprep.subr.bf16.mxu0 0
        %1066 = vmatpush1.bf16.xpose.msra.mxu0 %v1054
        %1067 = vmatprep.subr.bf16.mxu0 0
        %1068 = vmatpush1.bf16.xpose.msra.mxu0 0
        %1069 = vmatprep.subr.bf16.mxu0 0
        %1070 = vmatpush1.bf16.xpose.msra.mxu0 0
        %1071 = vmatprep.subr.bf16.mxu0 0
        %1072 = vmatpush1.bf16.xpose.msra.mxu0 0
        %1073 = vmatprep.subr.bf16.mxu0 0
        %1074 = vmatpush1.bf16.xpose.msra.mxu0 0
        %1075 = vmatprep.subr.bf16.mxu0 0
        %1076 = vmatpush1.bf16.xpose.msra.mxu0 0
        %1077 = vmatprep.subr.bf16.mxu0 0
        %1078 = vmatpush1.bf16.xpose.msra.mxu0 0
        %1079 = vmatprep.subr.bf16.mxu0 0
        %1080 = vmatpush1.bf16.xpose.msra.mxu0 0
        %1081 = vmatprep.subr.bf16.mxu0 0
        %1082 = vmatpush1.bf16.xpose.msra.mxu0 0
        %1083 = vmatprep.subr.bf16.mxu0 0
        %1084 = vmatpush1.bf16.xpose.msra.mxu0 0
        %1085 = vmatprep.subr.bf16.mxu0 0
        %1086 = vmatpush1.bf16.xpose.msra.mxu0 0
        %1087 = vmatprep.subr.bf16.mxu0 0
        %1088 = vmatpush1.bf16.xpose.msra.mxu0 0
        %1089 = vmatprep.subr.bf16.mxu0 0
        %1090 = vmatpush1.bf16.xpose.msra.mxu0 0
        %1091 = vmatprep.mubr.bf16.mxu0 0
        %1092 = vmatmul.mubr.bf16.gmra.mrb[0].mxu0 %v1047
        %v1093 = vpop.f32.mrb[0].mxu0
        %v1094 = vadd.f32 0.0, %v1093
        %v1095 = vpop.f32.mrb[0].mxu0
        %v1096 = vpop.f32.mrb[0].mxu0
        %v1097 = vadd.f32 0.0, %v1096
        %v1098 = vpop.f32.mrb[0].mxu0
        %1099 = vmatprep.mubr.bf16.mxu0 0
        %1100 = vmatmul.mubr.bf16.gmra.mrb[0].mxu0 %v1048
        %v1101 = vpop.f32.mrb[0].mxu0
        %v1102 = vadd.f32 0.0, %v1101
        %v1103 = vpop.f32.mrb[0].mxu0
        %v1104 = vpop.f32.mrb[0].mxu0
        %v1105 = vadd.f32 0.0, %v1104
        %v1106 = vpop.f32.mrb[0].mxu0
        %1107 = vmatprep.mubr.bf16.mxu0 0
        %1108 = vmatmul.mubr.bf16.gmra.mrb[0].mxu0 %v1049
        %v1109 = vpop.f32.mrb[0].mxu0
        %v1110 = vadd.f32 0.0, %v1109
        %v1111 = vpop.f32.mrb[0].mxu0
        %v1112 = vpop.f32.mrb[0].mxu0
        %v1113 = vadd.f32 0.0, %v1112
        %v1114 = vpop.f32.mrb[0].mxu0
        %1115 = vmatprep.mubr.bf16.mxu0 0
        %1116 = vmatmul.mubr.bf16.gmra.mrb[0].mxu0 %v1050
        %v1117 = vpop.f32.mrb[0].mxu0
        %v1118 = vadd.f32 0.0, %v1117
        %v1119 = vpop.f32.mrb[0].mxu0
        %v1120 = vpop.f32.mrb[0].mxu0
        %v1121 = vadd.f32 0.0, %v1120
        %v1122 = vpop.f32.mrb[0].mxu0
        %1123 = vdwg.mxu0
        %vm1124 = vcmask 523264
        %v1125 = vsel %vm1124, %v1094, -inf
        %1126 = vmax.xlane.f32.xlu0 %v1125
        %v1127 = vpop.xlane.xlu0 %1126
        %v1128 = vsel %vm1124, %v1097, -inf
        %1129 = vmax.xlane.f32.xlu0 %v1128
        %v1130 = vpop.xlane.xlu0 %1129
        %v1131 = vsel %vm1124, %v1102, -inf
        %1132 = vmax.xlane.f32.xlu0 %v1131
        %v1133 = vpop.xlane.xlu0 %1132
        %v1134 = vsel %vm1124, %v1105, -inf
        %1135 = vmax.xlane.f32.xlu0 %v1134
        %v1136 = vpop.xlane.xlu0 %1135
        %v1137 = vsel %vm1124, %v1110, -inf
        %1138 = vmax.xlane.f32.xlu0 %v1137
        %v1139 = vpop.xlane.xlu0 %1138
        %v1140 = vsel %vm1124, %v1113, -inf
        %1141 = vmax.xlane.f32.xlu0 %v1140
        %v1142 = vpop.xlane.xlu0 %1141
        %v1143 = vsel %vm1124, %v1118, -inf
        %1144 = vmax.xlane.f32.xlu0 %v1143
        %v1145 = vpop.xlane.xlu0 %1144
        %v1146 = vsel %vm1124, %v1121, -inf
        %1147 = vmax.xlane.f32.xlu0 %v1146
        %v1148 = vpop.xlane.xlu0 %1147
        %v1149 = vsub.f32 %v1094, %v1127
        %v1150 = vsub.f32 %v1097, %v1130
        %v1151 = vsub.f32 %v1102, %v1133
        %v1152 = vsub.f32 %v1105, %v1136
        %v1153 = vsub.f32 %v1110, %v1139
        %v1154 = vsub.f32 %v1113, %v1142
        %v1155 = vsub.f32 %v1118, %v1145
        %v1156 = vsub.f32 %v1121, %v1148
        %v1157 = vmul.f32 %v1149, 1.442695
        %v1158 = vpow.pop %v1157
        %v1159 = vmul.f32 %v1150, 1.442695
        %v1160 = vpow.pop %v1159
        %v1161 = vmul.f32 %v1151, 1.442695
        %v1162 = vpow.pop %v1161
        %v1163 = vmul.f32 %v1152, 1.442695
        %v1164 = vpow.pop %v1163
        %v1165 = vmul.f32 %v1153, 1.442695
        %v1166 = vpow.pop %v1165
        %v1167 = vmul.f32 %v1154, 1.442695
        %v1168 = vpow.pop %v1167
        %v1169 = vmul.f32 %v1155, 1.442695
        %v1170 = vpow.pop %v1169
        %v1171 = vmul.f32 %v1156, 1.442695
        %v1172 = vpow.pop %v1171
        %v1173 = vsel %vm1124, %v1158, 0.0
        %1174 = vadd.xlane.f32.xlu0 %v1173
        %v1175 = vpop.xlane.xlu0 %1174
        %v1176 = vsel %vm1124, %v1160, 0.0
        %1177 = vadd.xlane.f32.xlu0 %v1176
        %v1178 = vpop.xlane.xlu0 %1177
        %v1179 = vsel %vm1124, %v1162, 0.0
        %1180 = vadd.xlane.f32.xlu0 %v1179
        %v1181 = vpop.xlane.xlu0 %1180
        %v1182 = vsel %vm1124, %v1164, 0.0
        %1183 = vadd.xlane.f32.xlu0 %v1182
        %v1184 = vpop.xlane.xlu0 %1183
        %v1185 = vsel %vm1124, %v1166, 0.0
        %1186 = vadd.xlane.f32.xlu0 %v1185
        %v1187 = vpop.xlane.xlu0 %1186
        %v1188 = vsel %vm1124, %v1168, 0.0
        %1189 = vadd.xlane.f32.xlu0 %v1188
        %v1190 = vpop.xlane.xlu0 %1189
        %v1191 = vsel %vm1124, %v1170, 0.0
        %1192 = vadd.xlane.f32.xlu0 %v1191
        %v1193 = vpop.xlane.xlu0 %1192
        %v1194 = vsel %vm1124, %v1172, 0.0
        %1195 = vadd.xlane.f32.xlu0 %v1194
        %v1196 = vpop.xlane.xlu0 %1195
        %v1197 = vrcp.pop %v1175
        %v1198 = vrcp.pop %v1178
        %v1199 = vrcp.pop %v1181
        %v1200 = vrcp.pop %v1184
        %v1201 = vrcp.pop %v1187
        %v1202 = vrcp.pop %v1190
        %v1203 = vrcp.pop %v1193
        %v1204 = vrcp.pop %v1196
        %v1205 = vmul.f32 %v1158, %v1197
        %v1206 = vmul.f32 %v1160, %v1198
        %v1207 = vmul.f32 %v1162, %v1199
        %v1208 = vmul.f32 %v1164, %v1200
        %v1209 = vmul.f32 %v1166, %v1201
        %v1210 = vmul.f32 %v1168, %v1202
        %v1211 = vmul.f32 %v1170, %v1203
        %v1212 = vmul.f32 %v1172, %v1204
        %v1213 = vpack.c.bf16 %v1206, %v1205
        %v1214 = vpack.c.bf16 %v1208, %v1207
        %v1215 = vpack.c.bf16 %v1210, %v1209
        %v1216 = vpack.c.bf16 %v1212, %v1211
        %v1218 = vsel %vm1124, %v1213, 0
        %v1221 = vsel %vm1124, %v1214, 0
        %v1224 = vsel %vm1124, %v1215, 0
        %v1227 = vsel %vm1124, %v1216, 0
        %1229 = vmatprep.subr.bf16.mxu0 0
        %1230 = vmatpush1.bf16.msra.mxu0 %v1055
        %1231 = vmatprep.subr.bf16.mxu0 0
        %1232 = vmatpush1.bf16.msra.mxu0 %v1056
        %1233 = vmatprep.subr.bf16.mxu0 0
        %1234 = vmatpush1.bf16.msra.mxu0 %v1057
        %1235 = vmatprep.subr.bf16.mxu0 0
        %1236 = vmatpush1.bf16.msra.mxu0 %v1058
        %1237 = vmatprep.subr.bf16.mxu0 0
        %1238 = vmatpush1.bf16.msra.mxu0 0
        %1239 = vmatprep.subr.bf16.mxu0 0
        %1240 = vmatpush1.bf16.msra.mxu0 0
        %1241 = vmatprep.subr.bf16.mxu0 0
        %1242 = vmatpush1.bf16.msra.mxu0 0
        %1243 = vmatprep.subr.bf16.mxu0 0
        %1244 = vmatpush1.bf16.msra.mxu0 0
        %1245 = vmatprep.subr.bf16.mxu0 0
        %1246 = vmatpush1.bf16.msra.mxu0 0
        %1247 = vmatprep.subr.bf16.mxu0 0
        %1248 = vmatpush1.bf16.msra.mxu0 0
        %1249 = vmatprep.subr.bf16.mxu0 0
        %1250 = vmatpush1.bf16.msra.mxu0 0
        %1251 = vmatprep.subr.bf16.mxu0 0
        %1252 = vmatpush1.bf16.msra.mxu0 0
        %1253 = vmatprep.subr.bf16.mxu0 0
        %1254 = vmatpush1.bf16.msra.mxu0 0
        %1255 = vmatprep.subr.bf16.mxu0 0
        %1256 = vmatpush1.bf16.msra.mxu0 0
        %1257 = vmatprep.subr.bf16.mxu0 0
        %1258 = vmatpush1.bf16.msra.mxu0 0
        %1259 = vmatprep.subr.bf16.mxu0 0
        %1260 = vmatpush1.bf16.msra.mxu0 0
        %1261 = vmatprep.mubr.bf16.mxu0 0
        %1262 = vmatmul.mubr.bf16.gmra.mrb[0].mxu0 %v1218
        %v1263 = vpop.f32.mrb[0].mxu0
        %v1264 = vadd.f32 0.0, %v1263
        %v1265 = vpop.f32.mrb[0].mxu0
        %v1266 = vpop.f32.mrb[0].mxu0
        %v1267 = vadd.f32 0.0, %v1266
        %v1268 = vpop.f32.mrb[0].mxu0
        %1269 = vmatprep.mubr.bf16.mxu0 0
        %1270 = vmatmul.mubr.bf16.gmra.mrb[0].mxu0 %v1221
        %v1271 = vpop.f32.mrb[0].mxu0
        %v1272 = vadd.f32 0.0, %v1271
        %v1273 = vpop.f32.mrb[0].mxu0
        %v1274 = vpop.f32.mrb[0].mxu0
        %v1275 = vadd.f32 0.0, %v1274
        %v1276 = vpop.f32.mrb[0].mxu0
        %1277 = vmatprep.mubr.bf16.mxu0 0
        %1278 = vmatmul.mubr.bf16.gmra.mrb[0].mxu0 %v1224
        %v1279 = vpop.f32.mrb[0].mxu0
        %v1280 = vadd.f32 0.0, %v1279
        %v1281 = vpop.f32.mrb[0].mxu0
        %v1282 = vpop.f32.mrb[0].mxu0
        %v1283 = vadd.f32 0.0, %v1282
        %v1284 = vpop.f32.mrb[0].mxu0
        %1285 = vmatprep.mubr.bf16.mxu0 0
        %1286 = vmatmul.mubr.bf16.gmra.mrb[0].mxu0 %v1227
        %v1287 = vpop.f32.mrb[0].mxu0
        %v1288 = vadd.f32 0.0, %v1287
        %v1289 = vpop.f32.mrb[0].mxu0
        %v1290 = vpop.f32.mrb[0].mxu0
        %v1291 = vadd.f32 0.0, %v1290
        %v1292 = vpop.f32.mrb[0].mxu0
        %1293 = vdwg.mxu0
        %v1294 = vpack.c.bf16 %v1267, %v1264
        %v1295 = vpack.c.bf16 %v1275, %v1272
        %v1296 = vpack.c.bf16 %v1283, %v1280
        %v1297 = vpack.c.bf16 %v1291, %v1288
        %v1298 = vld [vmem:[%s561] sm:$0xf]
        %v1299 = vld [vmem:[%s561 + $0x4] sm:$0xf]
        %v1300 = vld [vmem:[%s561 + $0x8] sm:$0xf]
        %v1301 = vld [vmem:[%s561 + $0xc] sm:$0xf]
        %v1302 = vld [vmem:[%s561 + $0x10] sm:$0xf]
        %v1303 = vld [vmem:[%s561 + $0x14] sm:$0xf]
        %v1304 = vld [vmem:[%s561 + $0x18] sm:$0xf]
        %v1305 = vld [vmem:[%s561 + $0x1c] sm:$0xf]
        %v1306 = vld [vmem:[%s561 + $0x20] sm:$0xf]
        %v1307 = vld [vmem:[%s561 + $0x24] sm:$0xf]
        %v1308 = vld [vmem:[%s561 + $0x28] sm:$0xf]
        %v1309 = vld [vmem:[%s561 + $0x2c] sm:$0xf]
        %v1310 = vld [vmem:[%s561 + $0x30] sm:$0xf]
        %v1311 = vld [vmem:[%s561 + $0x34] sm:$0xf]
        %v1312 = vld [vmem:[%s561 + $0x38] sm:$0xf]
        %v1313 = vld [vmem:[%s561 + $0x3c] sm:$0xf]
        %v1314 = vld [vmem:[%s661] sm:$0x1]
        %v1316 = vlaneseq
        %v1317 = vshrl.u32 %v1316, 7
        %v1318 = vsub.s32 0, %v1317
        %v1319 = vrot.slane %v1314, %v1318
        %v1337 = vunpack.c.l.b16 %v1298
        %v1338 = vunpack.c.l.b16 %v1299
        %v1339 = vunpack.c.l.b16 %v1300
        %v1340 = vunpack.c.l.b16 %v1301
        %v1341 = vunpack.c.l.b16 %v1302
        %v1342 = vunpack.c.l.b16 %v1303
        %v1343 = vunpack.c.l.b16 %v1304
        %v1344 = vunpack.c.l.b16 %v1305
        %v1345 = vunpack.c.l.b16 %v1306
        %v1346 = vunpack.c.l.b16 %v1307
        %v1347 = vunpack.c.l.b16 %v1308
        %v1348 = vunpack.c.l.b16 %v1309
        %v1349 = vunpack.c.l.b16 %v1310
        %v1350 = vunpack.c.l.b16 %v1311
        %v1351 = vunpack.c.l.b16 %v1312
        %v1352 = vunpack.c.l.b16 %v1313
        %v1353 = vpack.c.b16 %v1338, %v1337
        %v1354 = vpack.c.b16 %v1340, %v1339
        %v1355 = vpack.c.b16 %v1342, %v1341
        %v1356 = vpack.c.b16 %v1344, %v1343
        %v1357 = vpack.c.b16 %v1346, %v1345
        %v1358 = vpack.c.b16 %v1348, %v1347
        %v1359 = vpack.c.b16 %v1350, %v1349
        %v1360 = vpack.c.b16 %v1352, %v1351
        %1369 = vmatprep.subr.bf16.mxu0 0
        %1370 = vmatpush1.bf16.msra.mxu0 %v1353
        %1371 = vmatprep.subr.bf16.mxu0 0
        %1372 = vmatpush1.bf16.msra.mxu0 %v1354
        %1373 = vmatprep.subr.bf16.mxu0 0
        %1374 = vmatpush1.bf16.msra.mxu0 %v1355
        %1375 = vmatprep.subr.bf16.mxu0 0
        %1376 = vmatpush1.bf16.msra.mxu0 %v1356
        %1377 = vmatprep.subr.bf16.mxu0 0
        %1378 = vmatpush1.bf16.msra.mxu0 %v1357
        %1379 = vmatprep.subr.bf16.mxu0 0
        %1380 = vmatpush1.bf16.msra.mxu0 %v1358
        %1381 = vmatprep.subr.bf16.mxu0 0
        %1382 = vmatpush1.bf16.msra.mxu0 %v1359
        %1383 = vmatprep.subr.bf16.mxu0 0
        %1384 = vmatpush1.bf16.msra.mxu0 %v1360
        %1385 = vmatprep.subr.bf16.mxu0 0
        %1386 = vmatpush1.bf16.msra.mxu0 0
        %1387 = vmatprep.subr.bf16.mxu0 0
        %1388 = vmatpush1.bf16.msra.mxu0 0
        %1389 = vmatprep.subr.bf16.mxu0 0
        %1390 = vmatpush1.bf16.msra.mxu0 0
        %1391 = vmatprep.subr.bf16.mxu0 0
        %1392 = vmatpush1.bf16.msra.mxu0 0
        %1393 = vmatprep.subr.bf16.mxu0 0
        %1394 = vmatpush1.bf16.msra.mxu0 0
        %1395 = vmatprep.subr.bf16.mxu0 0
        %1396 = vmatpush1.bf16.msra.mxu0 0
        %1397 = vmatprep.subr.bf16.mxu0 0
        %1398 = vmatpush1.bf16.msra.mxu0 0
        %1399 = vmatprep.subr.bf16.mxu0 0
        %1400 = vmatpush1.bf16.msra.mxu0 0
        %1401 = vmatprep.mubr.bf16.mxu0 0
        %1402 = vmatmul.mubr.bf16.gmra.mrb[0].mxu0 %v1294
        %v1403 = vpop.f32.mrb[0].mxu0
        %v1404 = vadd.f32 %v1319, %v1403
        %v1405 = vpop.f32.mrb[0].mxu0
        %v1406 = vpop.f32.mrb[0].mxu0
        %v1407 = vadd.f32 %v1319, %v1406
        %v1408 = vpop.f32.mrb[0].mxu0
        %1409 = vmatprep.mubr.bf16.mxu0 0
        %1410 = vmatmul.mubr.bf16.gmra.mrb[0].mxu0 %v1295
        %v1411 = vpop.f32.mrb[0].mxu0
        %v1412 = vadd.f32 %v1319, %v1411
        %v1413 = vpop.f32.mrb[0].mxu0
        %v1414 = vpop.f32.mrb[0].mxu0
        %v1415 = vadd.f32 %v1319, %v1414
        %v1416 = vpop.f32.mrb[0].mxu0
        %1417 = vmatprep.mubr.bf16.mxu0 0
        %1418 = vmatmul.mubr.bf16.gmra.mrb[0].mxu0 %v1296
        %v1419 = vpop.f32.mrb[0].mxu0
        %v1420 = vadd.f32 %v1319, %v1419
        %v1421 = vpop.f32.mrb[0].mxu0
        %v1422 = vpop.f32.mrb[0].mxu0
        %v1423 = vadd.f32 %v1319, %v1422
        %v1424 = vpop.f32.mrb[0].mxu0
        %1425 = vmatprep.mubr.bf16.mxu0 0
        %1426 = vmatmul.mubr.bf16.gmra.mrb[0].mxu0 %v1297
        %v1427 = vpop.f32.mrb[0].mxu0
        %v1428 = vadd.f32 %v1319, %v1427
        %v1429 = vpop.f32.mrb[0].mxu0
        %v1430 = vpop.f32.mrb[0].mxu0
        %v1431 = vadd.f32 %v1319, %v1430
        %v1432 = vpop.f32.mrb[0].mxu0
        %1433 = vdwg.mxu0
        %v1434 = vadd.f32 %v720, %v1404
        %v1435 = vadd.f32 %v721, %v1407
        %v1436 = vadd.f32 %v722, %v1412
        %v1437 = vadd.f32 %v723, %v1415
        %v1438 = vadd.f32 %v724, %v1420
        %v1439 = vadd.f32 %v725, %v1423
        %v1440 = vadd.f32 %v726, %v1428
        %v1441 = vadd.f32 %v727, %v1431
        %v1442 = vld [vmem:[%s664] sm:$0x1]
        %v1443 = vld [vmem:[%s667] sm:$0x1]
        %1444 = vadd.xlane.f32.xlu0 %v1434
        %v1445 = vpop.xlane.xlu0 %1444
        %1446 = vadd.xlane.f32.xlu0 %v1435
        %v1447 = vpop.xlane.xlu0 %1446
        %1448 = vadd.xlane.f32.xlu0 %v1436
        %v1449 = vpop.xlane.xlu0 %1448
        %1450 = vadd.xlane.f32.xlu0 %v1437
        %v1451 = vpop.xlane.xlu0 %1450
        %1452 = vadd.xlane.f32.xlu0 %v1438
        %v1453 = vpop.xlane.xlu0 %1452
        %1454 = vadd.xlane.f32.xlu0 %v1439
        %v1455 = vpop.xlane.xlu0 %1454
        %1456 = vadd.xlane.f32.xlu0 %v1440
        %v1457 = vpop.xlane.xlu0 %1456
        %1458 = vadd.xlane.f32.xlu0 %v1441
        %v1459 = vpop.xlane.xlu0 %1458
        %v1460 = vrcp.pop 128.0
        %v1461 = vmul.f32 %v1445, %v1460
        %v1462 = vmul.f32 %v1447, %v1460
        %v1463 = vmul.f32 %v1449, %v1460
        %v1464 = vmul.f32 %v1451, %v1460
        %v1465 = vmul.f32 %v1453, %v1460
        %v1466 = vmul.f32 %v1455, %v1460
        %v1467 = vmul.f32 %v1457, %v1460
        %v1468 = vmul.f32 %v1459, %v1460
        %v1469 = vsub.f32 %v1434, %v1461
        %v1470 = vsub.f32 %v1435, %v1462
        %v1471 = vsub.f32 %v1436, %v1463
        %v1472 = vsub.f32 %v1437, %v1464
        %v1473 = vsub.f32 %v1438, %v1465
        %v1474 = vsub.f32 %v1439, %v1466
        %v1475 = vsub.f32 %v1440, %v1467
        %v1476 = vsub.f32 %v1441, %v1468
        %v1477 = vmul.f32 %v1469, %v1469
        %v1478 = vmul.f32 %v1470, %v1470
        %v1479 = vmul.f32 %v1471, %v1471
        %v1480 = vmul.f32 %v1472, %v1472
        %v1481 = vmul.f32 %v1473, %v1473
        %v1482 = vmul.f32 %v1474, %v1474
        %v1483 = vmul.f32 %v1475, %v1475
        %v1484 = vmul.f32 %v1476, %v1476
        %1485 = vadd.xlane.f32.xlu0 %v1477
        %v1486 = vpop.xlane.xlu0 %1485
        %1487 = vadd.xlane.f32.xlu0 %v1478
        %v1488 = vpop.xlane.xlu0 %1487
        %1489 = vadd.xlane.f32.xlu0 %v1479
        %v1490 = vpop.xlane.xlu0 %1489
        %1491 = vadd.xlane.f32.xlu0 %v1480
        %v1492 = vpop.xlane.xlu0 %1491
        %1493 = vadd.xlane.f32.xlu0 %v1481
        %v1494 = vpop.xlane.xlu0 %1493
        %1495 = vadd.xlane.f32.xlu0 %v1482
        %v1496 = vpop.xlane.xlu0 %1495
        %1497 = vadd.xlane.f32.xlu0 %v1483
        %v1498 = vpop.xlane.xlu0 %1497
        %1499 = vadd.xlane.f32.xlu0 %v1484
        %v1500 = vpop.xlane.xlu0 %1499
        %v1501 = vmul.f32 %v1486, %v1460
        %v1502 = vmul.f32 %v1488, %v1460
        %v1503 = vmul.f32 %v1490, %v1460
        %v1504 = vmul.f32 %v1492, %v1460
        %v1505 = vmul.f32 %v1494, %v1460
        %v1506 = vmul.f32 %v1496, %v1460
        %v1507 = vmul.f32 %v1498, %v1460
        %v1508 = vmul.f32 %v1500, %v1460
        %v1509 = vadd.f32 %v1501, 1e-05
        %v1510 = vadd.f32 %v1502, 1e-05
        %v1511 = vadd.f32 %v1503, 1e-05
        %v1512 = vadd.f32 %v1504, 1e-05
        %v1513 = vadd.f32 %v1505, 1e-05
        %v1514 = vadd.f32 %v1506, 1e-05
        %v1515 = vadd.f32 %v1507, 1e-05
        %v1516 = vadd.f32 %v1508, 1e-05
        %v1517 = vrsqrt.pop %v1509
        %v1518 = vrsqrt.pop %v1510
        %v1519 = vrsqrt.pop %v1511
        %v1520 = vrsqrt.pop %v1512
        %v1521 = vrsqrt.pop %v1513
        %v1522 = vrsqrt.pop %v1514
        %v1523 = vrsqrt.pop %v1515
        %v1524 = vrsqrt.pop %v1516
        %v1525 = vmul.f32 %v1469, %v1517
        %v1526 = vmul.f32 %v1470, %v1518
        %v1527 = vmul.f32 %v1471, %v1519
        %v1528 = vmul.f32 %v1472, %v1520
        %v1529 = vmul.f32 %v1473, %v1521
        %v1530 = vmul.f32 %v1474, %v1522
        %v1531 = vmul.f32 %v1475, %v1523
        %v1532 = vmul.f32 %v1476, %v1524
        %v1534 = vlaneseq
        %v1535 = vshrl.u32 %v1534, 7
        %v1536 = vsub.s32 0, %v1535
        %v1537 = vrot.slane %v1442, %v1536
        %v1539 = vmul.f32 %v1525, %v1537
        %v1540 = vmul.f32 %v1526, %v1537
        %v1541 = vmul.f32 %v1527, %v1537
        %v1542 = vmul.f32 %v1528, %v1537
        %v1543 = vmul.f32 %v1529, %v1537
        %v1544 = vmul.f32 %v1530, %v1537
        %v1545 = vmul.f32 %v1531, %v1537
        %v1546 = vmul.f32 %v1532, %v1537
        %v1548 = vlaneseq
        %v1549 = vshrl.u32 %v1548, 7
        %v1550 = vsub.s32 0, %v1549
        %v1551 = vrot.slane %v1443, %v1550
        %v1553 = vadd.f32 %v1539, %v1551
        %v1554 = vadd.f32 %v1540, %v1551
        %v1555 = vadd.f32 %v1541, %v1551
        %v1556 = vadd.f32 %v1542, %v1551
        %v1557 = vadd.f32 %v1543, %v1551
        %v1558 = vadd.f32 %v1544, %v1551
        %v1559 = vadd.f32 %v1545, %v1551
        %v1560 = vadd.f32 %v1546, %v1551
        %v1561 = vpack.c.bf16 %v1554, %v1553
        %v1562 = vpack.c.bf16 %v1556, %v1555
        %v1563 = vpack.c.bf16 %v1558, %v1557
        %v1564 = vpack.c.bf16 %v1560, %v1559
        %v1565 = vld [vmem:[%s672] sm:$0xff]
        %v1566 = vld [vmem:[%s672 + $0x8] sm:$0xff]
        %v1567 = vld [vmem:[%s672 + $0x10] sm:$0xff]
        %v1568 = vld [vmem:[%s672 + $0x18] sm:$0xff]
        %v1569 = vld [vmem:[%s672 + $0x20] sm:$0xff]
        %v1570 = vld [vmem:[%s672 + $0x28] sm:$0xff]
        %v1571 = vld [vmem:[%s672 + $0x30] sm:$0xff]
        %v1572 = vld [vmem:[%s672 + $0x38] sm:$0xff]
        %v1573 = vld [vmem:[%s672 + $0x40] sm:$0xff]
        %v1574 = vld [vmem:[%s672 + $0x48] sm:$0xff]
        %v1575 = vld [vmem:[%s672 + $0x50] sm:$0xff]
        %v1576 = vld [vmem:[%s672 + $0x58] sm:$0xff]
        %v1577 = vld [vmem:[%s672 + $0x60] sm:$0xff]
        %v1578 = vld [vmem:[%s672 + $0x68] sm:$0xff]
        %v1579 = vld [vmem:[%s672 + $0x70] sm:$0xff]
        %v1580 = vld [vmem:[%s672 + $0x78] sm:$0xff]
        %v1581 = vld [vmem:[%s672 + $0x80] sm:$0xff]
        %v1582 = vld [vmem:[%s672 + $0x88] sm:$0xff]
        %v1583 = vld [vmem:[%s672 + $0x90] sm:$0xff]
        %v1584 = vld [vmem:[%s672 + $0x98] sm:$0xff]
        %v1585 = vld [vmem:[%s672 + $0xa0] sm:$0xff]
        %v1586 = vld [vmem:[%s672 + $0xa8] sm:$0xff]
        %v1587 = vld [vmem:[%s672 + $0xb0] sm:$0xff]
        %v1588 = vld [vmem:[%s672 + $0xb8] sm:$0xff]
        %v1589 = vld [vmem:[%s672 + $0xc0] sm:$0xff]
        %v1590 = vld [vmem:[%s672 + $0xc8] sm:$0xff]
        %v1591 = vld [vmem:[%s672 + $0xd0] sm:$0xff]
        %v1592 = vld [vmem:[%s672 + $0xd8] sm:$0xff]
        %v1593 = vld [vmem:[%s672 + $0xe0] sm:$0xff]
        %v1594 = vld [vmem:[%s672 + $0xe8] sm:$0xff]
        %v1595 = vld [vmem:[%s672 + $0xf0] sm:$0xff]
        %v1596 = vld [vmem:[%s672 + $0xf8] sm:$0xff]
        %v1597 = vld [vmem:[%s676] sm:$0xf]
        %v1599 = vlaneseq
        %v1600 = vshrl.u32 %v1599, 7
        %v1601 = vsub.s32 0, %v1600
        %v1602 = vrot.slane %v1597, %v1601
        %v1603 = vlaneseq
        %v1604 = vshrl.u32 %v1603, 7
        %v1605 = vsub.s32 1, %v1604
        %v1606 = vrot.slane %v1597, %v1605
        %v1607 = vlaneseq
        %v1608 = vshrl.u32 %v1607, 7
        %v1609 = vsub.s32 2, %v1608
        %v1610 = vrot.slane %v1597, %v1609
        %v1611 = vlaneseq
        %v1612 = vshrl.u32 %v1611, 7
        %v1613 = vsub.s32 3, %v1612
        %v1614 = vrot.slane %v1597, %v1613
        %v1651 = vunpack.c.l.b16 %v1565
        %v1652 = vunpack.c.h.b16 %v1565
        %v1653 = vunpack.c.l.b16 %v1566
        %v1654 = vunpack.c.h.b16 %v1566
        %v1655 = vunpack.c.l.b16 %v1567
        %v1656 = vunpack.c.h.b16 %v1567
        %v1657 = vunpack.c.l.b16 %v1568
        %v1658 = vunpack.c.h.b16 %v1568
        %v1659 = vunpack.c.l.b16 %v1569
        %v1660 = vunpack.c.h.b16 %v1569
        %v1661 = vunpack.c.l.b16 %v1570
        %v1662 = vunpack.c.h.b16 %v1570
        %v1663 = vunpack.c.l.b16 %v1571
        %v1664 = vunpack.c.h.b16 %v1571
        %v1665 = vunpack.c.l.b16 %v1572
        %v1666 = vunpack.c.h.b16 %v1572
        %v1667 = vunpack.c.l.b16 %v1573
        %v1668 = vunpack.c.h.b16 %v1573
        %v1669 = vunpack.c.l.b16 %v1574
        %v1670 = vunpack.c.h.b16 %v1574
        %v1671 = vunpack.c.l.b16 %v1575
        %v1672 = vunpack.c.h.b16 %v1575
        %v1673 = vunpack.c.l.b16 %v1576
        %v1674 = vunpack.c.h.b16 %v1576
        %v1675 = vunpack.c.l.b16 %v1577
        %v1676 = vunpack.c.h.b16 %v1577
        %v1677 = vunpack.c.l.b16 %v1578
        %v1678 = vunpack.c.h.b16 %v1578
        %v1679 = vunpack.c.l.b16 %v1579
        %v1680 = vunpack.c.h.b16 %v1579
        %v1681 = vunpack.c.l.b16 %v1580
        %v1682 = vunpack.c.h.b16 %v1580
        %v1683 = vunpack.c.l.b16 %v1581
        %v1684 = vunpack.c.h.b16 %v1581
        %v1685 = vunpack.c.l.b16 %v1582
        %v1686 = vunpack.c.h.b16 %v1582
        %v1687 = vunpack.c.l.b16 %v1583
        %v1688 = vunpack.c.h.b16 %v1583
        %v1689 = vunpack.c.l.b16 %v1584
        %v1690 = vunpack.c.h.b16 %v1584
        %v1691 = vunpack.c.l.b16 %v1585
        %v1692 = vunpack.c.h.b16 %v1585
        %v1693 = vunpack.c.l.b16 %v1586
        %v1694 = vunpack.c.h.b16 %v1586
        %v1695 = vunpack.c.l.b16 %v1587
        %v1696 = vunpack.c.h.b16 %v1587
        %v1697 = vunpack.c.l.b16 %v1588
        %v1698 = vunpack.c.h.b16 %v1588
        %v1699 = vunpack.c.l.b16 %v1589
        %v1700 = vunpack.c.h.b16 %v1589
        %v1701 = vunpack.c.l.b16 %v1590
        %v1702 = vunpack.c.h.b16 %v1590
        %v1703 = vunpack.c.l.b16 %v1591
        %v1704 = vunpack.c.h.b16 %v1591
        %v1705 = vunpack.c.l.b16 %v1592
        %v1706 = vunpack.c.h.b16 %v1592
        %v1707 = vunpack.c.l.b16 %v1593
        %v1708 = vunpack.c.h.b16 %v1593
        %v1709 = vunpack.c.l.b16 %v1594
        %v1710 = vunpack.c.h.b16 %v1594
        %v1711 = vunpack.c.l.b16 %v1595
        %v1712 = vunpack.c.h.b16 %v1595
        %v1713 = vunpack.c.l.b16 %v1596
        %v1714 = vunpack.c.h.b16 %v1596
        %v1715 = vpack.c.b16 %v1655, %v1651
        %v1716 = vpack.c.b16 %v1656, %v1652
        %v1717 = vpack.c.b16 %v1657, %v1653
        %v1718 = vpack.c.b16 %v1658, %v1654
        %v1719 = vpack.c.b16 %v1663, %v1659
        %v1720 = vpack.c.b16 %v1664, %v1660
        %v1721 = vpack.c.b16 %v1665, %v1661
        %v1722 = vpack.c.b16 %v1666, %v1662
        %v1723 = vpack.c.b16 %v1671, %v1667
        %v1724 = vpack.c.b16 %v1672, %v1668
        %v1725 = vpack.c.b16 %v1673, %v1669
        %v1726 = vpack.c.b16 %v1674, %v1670
        %v1727 = vpack.c.b16 %v1679, %v1675
        %v1728 = vpack.c.b16 %v1680, %v1676
        %v1729 = vpack.c.b16 %v1681, %v1677
        %v1730 = vpack.c.b16 %v1682, %v1678
        %v1731 = vpack.c.b16 %v1687, %v1683
        %v1732 = vpack.c.b16 %v1688, %v1684
        %v1733 = vpack.c.b16 %v1689, %v1685
        %v1734 = vpack.c.b16 %v1690, %v1686
        %v1735 = vpack.c.b16 %v1695, %v1691
        %v1736 = vpack.c.b16 %v1696, %v1692
        %v1737 = vpack.c.b16 %v1697, %v1693
        %v1738 = vpack.c.b16 %v1698, %v1694
        %v1739 = vpack.c.b16 %v1703, %v1699
        %v1740 = vpack.c.b16 %v1704, %v1700
        %v1741 = vpack.c.b16 %v1705, %v1701
        %v1742 = vpack.c.b16 %v1706, %v1702
        %v1743 = vpack.c.b16 %v1711, %v1707
        %v1744 = vpack.c.b16 %v1712, %v1708
        %v1745 = vpack.c.b16 %v1713, %v1709
        %v1746 = vpack.c.b16 %v1714, %v1710
        %1779 = vmatprep.subr.bf16.mxu0 %v1716
        %1780 = vmatpush1.bf16.msra.mxu0 %v1715
        %1781 = vmatprep.subr.bf16.mxu0 %v1720
        %1782 = vmatpush1.bf16.msra.mxu0 %v1719
        %1783 = vmatprep.subr.bf16.mxu0 %v1724
        %1784 = vmatpush1.bf16.msra.mxu0 %v1723
        %1785 = vmatprep.subr.bf16.mxu0 %v1728
        %1786 = vmatpush1.bf16.msra.mxu0 %v1727
        %1787 = vmatprep.subr.bf16.mxu0 %v1732
        %1788 = vmatpush1.bf16.msra.mxu0 %v1731
        %1789 = vmatprep.subr.bf16.mxu0 %v1736
        %1790 = vmatpush1.bf16.msra.mxu0 %v1735
        %1791 = vmatprep.subr.bf16.mxu0 %v1740
        %1792 = vmatpush1.bf16.msra.mxu0 %v1739
        %1793 = vmatprep.subr.bf16.mxu0 %v1744
        %1794 = vmatpush1.bf16.msra.mxu0 %v1743
        %1795 = vmatprep.subr.bf16.mxu0 0
        %1796 = vmatpush1.bf16.msra.mxu0 0
        %1797 = vmatprep.subr.bf16.mxu0 0
        %1798 = vmatpush1.bf16.msra.mxu0 0
        %1799 = vmatprep.subr.bf16.mxu0 0
        %1800 = vmatpush1.bf16.msra.mxu0 0
        %1801 = vmatprep.subr.bf16.mxu0 0
        %1802 = vmatpush1.bf16.msra.mxu0 0
        %1803 = vmatprep.subr.bf16.mxu0 0
        %1804 = vmatpush1.bf16.msra.mxu0 0
        %1805 = vmatprep.subr.bf16.mxu0 0
        %1806 = vmatpush1.bf16.msra.mxu0 0
        %1807 = vmatprep.subr.bf16.mxu0 0
        %1808 = vmatpush1.bf16.msra.mxu0 0
        %1809 = vmatprep.subr.bf16.mxu0 0
        %1810 = vmatpush1.bf16.msra.mxu0 0
        %1811 = vmatprep.mubr.bf16.mxu0 0
        %1812 = vmatmul.mubr.bf16.gmra.mrb[0].mxu0 %v1561
        %v1813 = vpop.f32.mrb[0].mxu0
        %v1814 = vadd.f32 %v1602, %v1813
        %v1815 = vpop.f32.mrb[0].mxu0
        %v1816 = vadd.f32 %v1606, %v1815
        %v1817 = vpop.f32.mrb[0].mxu0
        %v1818 = vadd.f32 %v1602, %v1817
        %v1819 = vpop.f32.mrb[0].mxu0
        %v1820 = vadd.f32 %v1606, %v1819
        %1821 = vmatprep.mubr.bf16.mxu0 0
        %1822 = vmatmul.mubr.bf16.gmra.mrb[0].mxu0 %v1562
        %v1823 = vpop.f32.mrb[0].mxu0
        %v1824 = vadd.f32 %v1602, %v1823
        %v1825 = vpop.f32.mrb[0].mxu0
        %v1826 = vadd.f32 %v1606, %v1825
        %v1827 = vpop.f32.mrb[0].mxu0
        %v1828 = vadd.f32 %v1602, %v1827
        %v1829 = vpop.f32.mrb[0].mxu0
        %v1830 = vadd.f32 %v1606, %v1829
        %1831 = vmatprep.mubr.bf16.mxu0 0
        %1832 = vmatmul.mubr.bf16.gmra.mrb[0].mxu0 %v1563
        %v1833 = vpop.f32.mrb[0].mxu0
        %v1834 = vadd.f32 %v1602, %v1833
        %v1835 = vpop.f32.mrb[0].mxu0
        %v1836 = vadd.f32 %v1606, %v1835
        %v1837 = vpop.f32.mrb[0].mxu0
        %v1838 = vadd.f32 %v1602, %v1837
        %v1839 = vpop.f32.mrb[0].mxu0
        %v1840 = vadd.f32 %v1606, %v1839
        %1841 = vmatprep.mubr.bf16.mxu0 0
        %1842 = vmatmul.mubr.bf16.gmra.mrb[0].mxu0 %v1564
        %v1843 = vpop.f32.mrb[0].mxu0
        %v1844 = vadd.f32 %v1602, %v1843
        %v1845 = vpop.f32.mrb[0].mxu0
        %v1846 = vadd.f32 %v1606, %v1845
        %v1847 = vpop.f32.mrb[0].mxu0
        %v1848 = vadd.f32 %v1602, %v1847
        %v1849 = vpop.f32.mrb[0].mxu0
        %v1850 = vadd.f32 %v1606, %v1849
        %1851 = vdwg.mxu0
        %1852 = vmatprep.subr.bf16.mxu0 %v1718
        %1853 = vmatpush1.bf16.msra.mxu0 %v1717
        %1854 = vmatprep.subr.bf16.mxu0 %v1722
        %1855 = vmatpush1.bf16.msra.mxu0 %v1721
        %1856 = vmatprep.subr.bf16.mxu0 %v1726
        %1857 = vmatpush1.bf16.msra.mxu0 %v1725
        %1858 = vmatprep.subr.bf16.mxu0 %v1730
        %1859 = vmatpush1.bf16.msra.mxu0 %v1729
        %1860 = vmatprep.subr.bf16.mxu0 %v1734
        %1861 = vmatpush1.bf16.msra.mxu0 %v1733
        %1862 = vmatprep.subr.bf16.mxu0 %v1738
        %1863 = vmatpush1.bf16.msra.mxu0 %v1737
        %1864 = vmatprep.subr.bf16.mxu0 %v1742
        %1865 = vmatpush1.bf16.msra.mxu0 %v1741
        %1866 = vmatprep.subr.bf16.mxu0 %v1746
        %1867 = vmatpush1.bf16.msra.mxu0 %v1745
        %1868 = vmatprep.subr.bf16.mxu0 0
        %1869 = vmatpush1.bf16.msra.mxu0 0
        %1870 = vmatprep.subr.bf16.mxu0 0
        %1871 = vmatpush1.bf16.msra.mxu0 0
        %1872 = vmatprep.subr.bf16.mxu0 0
        %1873 = vmatpush1.bf16.msra.mxu0 0
        %1874 = vmatprep.subr.bf16.mxu0 0
        %1875 = vmatpush1.bf16.msra.mxu0 0
        %1876 = vmatprep.subr.bf16.mxu0 0
        %1877 = vmatpush1.bf16.msra.mxu0 0
        %1878 = vmatprep.subr.bf16.mxu0 0
        %1879 = vmatpush1.bf16.msra.mxu0 0
        %1880 = vmatprep.subr.bf16.mxu0 0
        %1881 = vmatpush1.bf16.msra.mxu0 0
        %1882 = vmatprep.subr.bf16.mxu0 0
        %1883 = vmatpush1.bf16.msra.mxu0 0
        %1884 = vmatprep.mubr.bf16.mxu0 0
        %1885 = vmatmul.mubr.bf16.gmra.mrb[0].mxu0 %v1561
        %v1886 = vpop.f32.mrb[0].mxu0
        %v1887 = vadd.f32 %v1610, %v1886
        %v1888 = vpop.f32.mrb[0].mxu0
        %v1889 = vadd.f32 %v1614, %v1888
        %v1890 = vpop.f32.mrb[0].mxu0
        %v1891 = vadd.f32 %v1610, %v1890
        %v1892 = vpop.f32.mrb[0].mxu0
        %v1893 = vadd.f32 %v1614, %v1892
        %1894 = vmatprep.mubr.bf16.mxu0 0
        %1895 = vmatmul.mubr.bf16.gmra.mrb[0].mxu0 %v1562
        %v1896 = vpop.f32.mrb[0].mxu0
        %v1897 = vadd.f32 %v1610, %v1896
        %v1898 = vpop.f32.mrb[0].mxu0
        %v1899 = vadd.f32 %v1614, %v1898
        %v1900 = vpop.f32.mrb[0].mxu0
        %v1901 = vadd.f32 %v1610, %v1900
        %v1902 = vpop.f32.mrb[0].mxu0
        %v1903 = vadd.f32 %v1614, %v1902
        %1904 = vmatprep.mubr.bf16.mxu0 0
        %1905 = vmatmul.mubr.bf16.gmra.mrb[0].mxu0 %v1563
        %v1906 = vpop.f32.mrb[0].mxu0
        %v1907 = vadd.f32 %v1610, %v1906
        %v1908 = vpop.f32.mrb[0].mxu0
        %v1909 = vadd.f32 %v1614, %v1908
        %v1910 = vpop.f32.mrb[0].mxu0
        %v1911 = vadd.f32 %v1610, %v1910
        %v1912 = vpop.f32.mrb[0].mxu0
        %v1913 = vadd.f32 %v1614, %v1912
        %1914 = vmatprep.mubr.bf16.mxu0 0
        %1915 = vmatmul.mubr.bf16.gmra.mrb[0].mxu0 %v1564
        %v1916 = vpop.f32.mrb[0].mxu0
        %v1917 = vadd.f32 %v1610, %v1916
        %v1918 = vpop.f32.mrb[0].mxu0
        %v1919 = vadd.f32 %v1614, %v1918
        %v1920 = vpop.f32.mrb[0].mxu0
        %v1921 = vadd.f32 %v1610, %v1920
        %v1922 = vpop.f32.mrb[0].mxu0
        %v1923 = vadd.f32 %v1614, %v1922
        %1924 = vdwg.mxu0
        %v1925 = vmul.f32 %v1814, 0.5
        %v1926 = vmul.f32 %v1816, 0.5
        %v1927 = vmul.f32 %v1887, 0.5
        %v1928 = vmul.f32 %v1889, 0.5
        %v1929 = vmul.f32 %v1818, 0.5
        %v1930 = vmul.f32 %v1820, 0.5
        %v1931 = vmul.f32 %v1891, 0.5
        %v1932 = vmul.f32 %v1893, 0.5
        %v1933 = vmul.f32 %v1824, 0.5
        %v1934 = vmul.f32 %v1826, 0.5
        %v1935 = vmul.f32 %v1897, 0.5
        %v1936 = vmul.f32 %v1899, 0.5
        %v1937 = vmul.f32 %v1828, 0.5
        %v1938 = vmul.f32 %v1830, 0.5
        %v1939 = vmul.f32 %v1901, 0.5
        %v1940 = vmul.f32 %v1903, 0.5
        %v1941 = vmul.f32 %v1834, 0.5
        %v1942 = vmul.f32 %v1836, 0.5
        %v1943 = vmul.f32 %v1907, 0.5
        %v1944 = vmul.f32 %v1909, 0.5
        %v1945 = vmul.f32 %v1838, 0.5
        %v1946 = vmul.f32 %v1840, 0.5
        %v1947 = vmul.f32 %v1911, 0.5
        %v1948 = vmul.f32 %v1913, 0.5
        %v1949 = vmul.f32 %v1844, 0.5
        %v1950 = vmul.f32 %v1846, 0.5
        %v1951 = vmul.f32 %v1917, 0.5
        %v1952 = vmul.f32 %v1919, 0.5
        %v1953 = vmul.f32 %v1848, 0.5
        %v1954 = vmul.f32 %v1850, 0.5
        %v1955 = vmul.f32 %v1921, 0.5
        %v1956 = vmul.f32 %v1923, 0.5
        %v1957 = vmul.f32 %v1814, 0.044715
        %v1958 = vmul.f32 %v1816, 0.044715
        %v1959 = vmul.f32 %v1887, 0.044715
        %v1960 = vmul.f32 %v1889, 0.044715
        %v1961 = vmul.f32 %v1818, 0.044715
        %v1962 = vmul.f32 %v1820, 0.044715
        %v1963 = vmul.f32 %v1891, 0.044715
        %v1964 = vmul.f32 %v1893, 0.044715
        %v1965 = vmul.f32 %v1824, 0.044715
        %v1966 = vmul.f32 %v1826, 0.044715
        %v1967 = vmul.f32 %v1897, 0.044715
        %v1968 = vmul.f32 %v1899, 0.044715
        %v1969 = vmul.f32 %v1828, 0.044715
        %v1970 = vmul.f32 %v1830, 0.044715
        %v1971 = vmul.f32 %v1901, 0.044715
        %v1972 = vmul.f32 %v1903, 0.044715
        %v1973 = vmul.f32 %v1834, 0.044715
        %v1974 = vmul.f32 %v1836, 0.044715
        %v1975 = vmul.f32 %v1907, 0.044715
        %v1976 = vmul.f32 %v1909, 0.044715
        %v1977 = vmul.f32 %v1838, 0.044715
        %v1978 = vmul.f32 %v1840, 0.044715
        %v1979 = vmul.f32 %v1911, 0.044715
        %v1980 = vmul.f32 %v1913, 0.044715
        %v1981 = vmul.f32 %v1844, 0.044715
        %v1982 = vmul.f32 %v1846, 0.044715
        %v1983 = vmul.f32 %v1917, 0.044715
        %v1984 = vmul.f32 %v1919, 0.044715
        %v1985 = vmul.f32 %v1848, 0.044715
        %v1986 = vmul.f32 %v1850, 0.044715
        %v1987 = vmul.f32 %v1921, 0.044715
        %v1988 = vmul.f32 %v1923, 0.044715
        %v1989 = vmul.f32 %v1957, %v1814
        %v1990 = vmul.f32 %v1958, %v1816
        %v1991 = vmul.f32 %v1959, %v1887
        %v1992 = vmul.f32 %v1960, %v1889
        %v1993 = vmul.f32 %v1961, %v1818
        %v1994 = vmul.f32 %v1962, %v1820
        %v1995 = vmul.f32 %v1963, %v1891
        %v1996 = vmul.f32 %v1964, %v1893
        %v1997 = vmul.f32 %v1965, %v1824
        %v1998 = vmul.f32 %v1966, %v1826
        %v1999 = vmul.f32 %v1967, %v1897
        %v2000 = vmul.f32 %v1968, %v1899
        %v2001 = vmul.f32 %v1969, %v1828
        %v2002 = vmul.f32 %v1970, %v1830
        %v2003 = vmul.f32 %v1971, %v1901
        %v2004 = vmul.f32 %v1972, %v1903
        %v2005 = vmul.f32 %v1973, %v1834
        %v2006 = vmul.f32 %v1974, %v1836
        %v2007 = vmul.f32 %v1975, %v1907
        %v2008 = vmul.f32 %v1976, %v1909
        %v2009 = vmul.f32 %v1977, %v1838
        %v2010 = vmul.f32 %v1978, %v1840
        %v2011 = vmul.f32 %v1979, %v1911
        %v2012 = vmul.f32 %v1980, %v1913
        %v2013 = vmul.f32 %v1981, %v1844
        %v2014 = vmul.f32 %v1982, %v1846
        %v2015 = vmul.f32 %v1983, %v1917
        %v2016 = vmul.f32 %v1984, %v1919
        %v2017 = vmul.f32 %v1985, %v1848
        %v2018 = vmul.f32 %v1986, %v1850
        %v2019 = vmul.f32 %v1987, %v1921
        %v2020 = vmul.f32 %v1988, %v1923
        %v2021 = vmul.f32 %v1989, %v1814
        %v2022 = vmul.f32 %v1990, %v1816
        %v2023 = vmul.f32 %v1991, %v1887
        %v2024 = vmul.f32 %v1992, %v1889
        %v2025 = vmul.f32 %v1993, %v1818
        %v2026 = vmul.f32 %v1994, %v1820
        %v2027 = vmul.f32 %v1995, %v1891
        %v2028 = vmul.f32 %v1996, %v1893
        %v2029 = vmul.f32 %v1997, %v1824
        %v2030 = vmul.f32 %v1998, %v1826
        %v2031 = vmul.f32 %v1999, %v1897
        %v2032 = vmul.f32 %v2000, %v1899
        %v2033 = vmul.f32 %v2001, %v1828
        %v2034 = vmul.f32 %v2002, %v1830
        %v2035 = vmul.f32 %v2003, %v1901
        %v2036 = vmul.f32 %v2004, %v1903
        %v2037 = vmul.f32 %v2005, %v1834
        %v2038 = vmul.f32 %v2006, %v1836
        %v2039 = vmul.f32 %v2007, %v1907
        %v2040 = vmul.f32 %v2008, %v1909
        %v2041 = vmul.f32 %v2009, %v1838
        %v2042 = vmul.f32 %v2010, %v1840
        %v2043 = vmul.f32 %v2011, %v1911
        %v2044 = vmul.f32 %v2012, %v1913
        %v2045 = vmul.f32 %v2013, %v1844
        %v2046 = vmul.f32 %v2014, %v1846
        %v2047 = vmul.f32 %v2015, %v1917
        %v2048 = vmul.f32 %v2016, %v1919
        %v2049 = vmul.f32 %v2017, %v1848
        %v2050 = vmul.f32 %v2018, %v1850
        %v2051 = vmul.f32 %v2019, %v1921
        %v2052 = vmul.f32 %v2020, %v1923
        %v2053 = vadd.f32 %v1814, %v2021
        %v2054 = vadd.f32 %v1816, %v2022
        %v2055 = vadd.f32 %v1887, %v2023
        %v2056 = vadd.f32 %v1889, %v2024
        %v2057 = vadd.f32 %v1818, %v2025
        %v2058 = vadd.f32 %v1820, %v2026
        %v2059 = vadd.f32 %v1891, %v2027
        %v2060 = vadd.f32 %v1893, %v2028
        %v2061 = vadd.f32 %v1824, %v2029
        %v2062 = vadd.f32 %v1826, %v2030
        %v2063 = vadd.f32 %v1897, %v2031
        %v2064 = vadd.f32 %v1899, %v2032
        %v2065 = vadd.f32 %v1828, %v2033
        %v2066 = vadd.f32 %v1830, %v2034
        %v2067 = vadd.f32 %v1901, %v2035
        %v2068 = vadd.f32 %v1903, %v2036
        %v2069 = vadd.f32 %v1834, %v2037
        %v2070 = vadd.f32 %v1836, %v2038
        %v2071 = vadd.f32 %v1907, %v2039
        %v2072 = vadd.f32 %v1909, %v2040
        %v2073 = vadd.f32 %v1838, %v2041
        %v2074 = vadd.f32 %v1840, %v2042
        %v2075 = vadd.f32 %v1911, %v2043
        %v2076 = vadd.f32 %v1913, %v2044
        %v2077 = vadd.f32 %v1844, %v2045
        %v2078 = vadd.f32 %v1846, %v2046
        %v2079 = vadd.f32 %v1917, %v2047
        %v2080 = vadd.f32 %v1919, %v2048
        %v2081 = vadd.f32 %v1848, %v2049
        %v2082 = vadd.f32 %v1850, %v2050
        %v2083 = vadd.f32 %v1921, %v2051
        %v2084 = vadd.f32 %v1923, %v2052
        %v2085 = vmul.f32 %v2053, 0.7978846
        %v2086 = vmul.f32 %v2054, 0.7978846
        %v2087 = vmul.f32 %v2055, 0.7978846
        %v2088 = vmul.f32 %v2056, 0.7978846
        %v2089 = vmul.f32 %v2057, 0.7978846
        %v2090 = vmul.f32 %v2058, 0.7978846
        %v2091 = vmul.f32 %v2059, 0.7978846
        %v2092 = vmul.f32 %v2060, 0.7978846
        %v2093 = vmul.f32 %v2061, 0.7978846
        %v2094 = vmul.f32 %v2062, 0.7978846
        %v2095 = vmul.f32 %v2063, 0.7978846
        %v2096 = vmul.f32 %v2064, 0.7978846
        %v2097 = vmul.f32 %v2065, 0.7978846
        %v2098 = vmul.f32 %v2066, 0.7978846
        %v2099 = vmul.f32 %v2067, 0.7978846
        %v2100 = vmul.f32 %v2068, 0.7978846
        %v2101 = vmul.f32 %v2069, 0.7978846
        %v2102 = vmul.f32 %v2070, 0.7978846
        %v2103 = vmul.f32 %v2071, 0.7978846
        %v2104 = vmul.f32 %v2072, 0.7978846
        %v2105 = vmul.f32 %v2073, 0.7978846
        %v2106 = vmul.f32 %v2074, 0.7978846
        %v2107 = vmul.f32 %v2075, 0.7978846
        %v2108 = vmul.f32 %v2076, 0.7978846
        %v2109 = vmul.f32 %v2077, 0.7978846
        %v2110 = vmul.f32 %v2078, 0.7978846
        %v2111 = vmul.f32 %v2079, 0.7978846
        %v2112 = vmul.f32 %v2080, 0.7978846
        %v2113 = vmul.f32 %v2081, 0.7978846
        %v2114 = vmul.f32 %v2082, 0.7978846
        %v2115 = vmul.f32 %v2083, 0.7978846
        %v2116 = vmul.f32 %v2084, 0.7978846
        %v2117 = vtanh.pop %v2085
        %v2118 = vtanh.pop %v2086
        %v2119 = vtanh.pop %v2087
        %v2120 = vtanh.pop %v2088
        %v2121 = vtanh.pop %v2089
        %v2122 = vtanh.pop %v2090
        %v2123 = vtanh.pop %v2091
        %v2124 = vtanh.pop %v2092
        %v2125 = vtanh.pop %v2093
        %v2126 = vtanh.pop %v2094
        %v2127 = vtanh.pop %v2095
        %v2128 = vtanh.pop %v2096
        %v2129 = vtanh.pop %v2097
        %v2130 = vtanh.pop %v2098
        %v2131 = vtanh.pop %v2099
        %v2132 = vtanh.pop %v2100
        %v2133 = vtanh.pop %v2101
        %v2134 = vtanh.pop %v2102
        %v2135 = vtanh.pop %v2103
        %v2136 = vtanh.pop %v2104
        %v2137 = vtanh.pop %v2105
        %v2138 = vtanh.pop %v2106
        %v2139 = vtanh.pop %v2107
        %v2140 = vtanh.pop %v2108
        %v2141 = vtanh.pop %v2109
        %v2142 = vtanh.pop %v2110
        %v2143 = vtanh.pop %v2111
        %v2144 = vtanh.pop %v2112
        %v2145 = vtanh.pop %v2113
        %v2146 = vtanh.pop %v2114
        %v2147 = vtanh.pop %v2115
        %v2148 = vtanh.pop %v2116
        %v2149 = vadd.f32 %v2117, 1.0
        %v2150 = vadd.f32 %v2118, 1.0
        %v2151 = vadd.f32 %v2119, 1.0
        %v2152 = vadd.f32 %v2120, 1.0
        %v2153 = vadd.f32 %v2121, 1.0
        %v2154 = vadd.f32 %v2122, 1.0
        %v2155 = vadd.f32 %v2123, 1.0
        %v2156 = vadd.f32 %v2124, 1.0
        %v2157 = vadd.f32 %v2125, 1.0
        %v2158 = vadd.f32 %v2126, 1.0
        %v2159 = vadd.f32 %v2127, 1.0
        %v2160 = vadd.f32 %v2128, 1.0
        %v2161 = vadd.f32 %v2129, 1.0
        %v2162 = vadd.f32 %v2130, 1.0
        %v2163 = vadd.f32 %v2131, 1.0
        %v2164 = vadd.f32 %v2132, 1.0
        %v2165 = vadd.f32 %v2133, 1.0
        %v2166 = vadd.f32 %v2134, 1.0
        %v2167 = vadd.f32 %v2135, 1.0
        %v2168 = vadd.f32 %v2136, 1.0
        %v2169 = vadd.f32 %v2137, 1.0
        %v2170 = vadd.f32 %v2138, 1.0
        %v2171 = vadd.f32 %v2139, 1.0
        %v2172 = vadd.f32 %v2140, 1.0
        %v2173 = vadd.f32 %v2141, 1.0
        %v2174 = vadd.f32 %v2142, 1.0
        %v2175 = vadd.f32 %v2143, 1.0
        %v2176 = vadd.f32 %v2144, 1.0
        %v2177 = vadd.f32 %v2145, 1.0
        %v2178 = vadd.f32 %v2146, 1.0
        %v2179 = vadd.f32 %v2147, 1.0
        %v2180 = vadd.f32 %v2148, 1.0
        %v2181 = vmul.f32 %v1925, %v2149
        %v2182 = vmul.f32 %v1926, %v2150
        %v2183 = vmul.f32 %v1927, %v2151
        %v2184 = vmul.f32 %v1928, %v2152
        %v2185 = vmul.f32 %v1929, %v2153
        %v2186 = vmul.f32 %v1930, %v2154
        %v2187 = vmul.f32 %v1931, %v2155
        %v2188 = vmul.f32 %v1932, %v2156
        %v2189 = vmul.f32 %v1933, %v2157
        %v2190 = vmul.f32 %v1934, %v2158
        %v2191 = vmul.f32 %v1935, %v2159
        %v2192 = vmul.f32 %v1936, %v2160
        %v2193 = vmul.f32 %v1937, %v2161
        %v2194 = vmul.f32 %v1938, %v2162
        %v2195 = vmul.f32 %v1939, %v2163
        %v2196 = vmul.f32 %v1940, %v2164
        %v2197 = vmul.f32 %v1941, %v2165
        %v2198 = vmul.f32 %v1942, %v2166
        %v2199 = vmul.f32 %v1943, %v2167
        %v2200 = vmul.f32 %v1944, %v2168
        %v2201 = vmul.f32 %v1945, %v2169
        %v2202 = vmul.f32 %v1946, %v2170
        %v2203 = vmul.f32 %v1947, %v2171
        %v2204 = vmul.f32 %v1948, %v2172
        %v2205 = vmul.f32 %v1949, %v2173
        %v2206 = vmul.f32 %v1950, %v2174
        %v2207 = vmul.f32 %v1951, %v2175
        %v2208 = vmul.f32 %v1952, %v2176
        %v2209 = vmul.f32 %v1953, %v2177
        %v2210 = vmul.f32 %v1954, %v2178
        %v2211 = vmul.f32 %v1955, %v2179
        %v2212 = vmul.f32 %v1956, %v2180
        %v2213 = vpack.c.bf16 %v2185, %v2181
        %v2214 = vpack.c.bf16 %v2186, %v2182
        %v2215 = vpack.c.bf16 %v2187, %v2183
        %v2216 = vpack.c.bf16 %v2188, %v2184
        %v2217 = vpack.c.bf16 %v2193, %v2189
        %v2218 = vpack.c.bf16 %v2194, %v2190
        %v2219 = vpack.c.bf16 %v2195, %v2191
        %v2220 = vpack.c.bf16 %v2196, %v2192
        %v2221 = vpack.c.bf16 %v2201, %v2197
        %v2222 = vpack.c.bf16 %v2202, %v2198
        %v2223 = vpack.c.bf16 %v2203, %v2199
        %v2224 = vpack.c.bf16 %v2204, %v2200
        %v2225 = vpack.c.bf16 %v2209, %v2205
        %v2226 = vpack.c.bf16 %v2210, %v2206
        %v2227 = vpack.c.bf16 %v2211, %v2207
        %v2228 = vpack.c.bf16 %v2212, %v2208
        %v2229 = vld [vmem:[%s681] sm:$0xf]
        %v2230 = vld [vmem:[%s681 + $0x4] sm:$0xf]
        %v2231 = vld [vmem:[%s681 + $0x8] sm:$0xf]
        %v2232 = vld [vmem:[%s681 + $0xc] sm:$0xf]
        %v2233 = vld [vmem:[%s681 + $0x10] sm:$0xf]
        %v2234 = vld [vmem:[%s681 + $0x14] sm:$0xf]
        %v2235 = vld [vmem:[%s681 + $0x18] sm:$0xf]
        %v2236 = vld [vmem:[%s681 + $0x1c] sm:$0xf]
        %v2237 = vld [vmem:[%s681 + $0x20] sm:$0xf]
        %v2238 = vld [vmem:[%s681 + $0x24] sm:$0xf]
        %v2239 = vld [vmem:[%s681 + $0x28] sm:$0xf]
        %v2240 = vld [vmem:[%s681 + $0x2c] sm:$0xf]
        %v2241 = vld [vmem:[%s681 + $0x30] sm:$0xf]
        %v2242 = vld [vmem:[%s681 + $0x34] sm:$0xf]
        %v2243 = vld [vmem:[%s681 + $0x38] sm:$0xf]
        %v2244 = vld [vmem:[%s681 + $0x3c] sm:$0xf]
        %v2245 = vld [vmem:[%s681 + $0x40] sm:$0xf]
        %v2246 = vld [vmem:[%s681 + $0x44] sm:$0xf]
        %v2247 = vld [vmem:[%s681 + $0x48] sm:$0xf]
        %v2248 = vld [vmem:[%s681 + $0x4c] sm:$0xf]
        %v2249 = vld [vmem:[%s681 + $0x50] sm:$0xf]
        %v2250 = vld [vmem:[%s681 + $0x54] sm:$0xf]
        %v2251 = vld [vmem:[%s681 + $0x58] sm:$0xf]
        %v2252 = vld [vmem:[%s681 + $0x5c] sm:$0xf]
        %v2253 = vld [vmem:[%s681 + $0x60] sm:$0xf]
        %v2254 = vld [vmem:[%s681 + $0x64] sm:$0xf]
        %v2255 = vld [vmem:[%s681 + $0x68] sm:$0xf]
        %v2256 = vld [vmem:[%s681 + $0x6c] sm:$0xf]
        %v2257 = vld [vmem:[%s681 + $0x70] sm:$0xf]
        %v2258 = vld [vmem:[%s681 + $0x74] sm:$0xf]
        %v2259 = vld [vmem:[%s681 + $0x78] sm:$0xf]
        %v2260 = vld [vmem:[%s681 + $0x7c] sm:$0xf]
        %v2261 = vld [vmem:[%s681 + $0x80] sm:$0xf]
        %v2262 = vld [vmem:[%s681 + $0x84] sm:$0xf]
        %v2263 = vld [vmem:[%s681 + $0x88] sm:$0xf]
        %v2264 = vld [vmem:[%s681 + $0x8c] sm:$0xf]
        %v2265 = vld [vmem:[%s681 + $0x90] sm:$0xf]
        %v2266 = vld [vmem:[%s681 + $0x94] sm:$0xf]
        %v2267 = vld [vmem:[%s681 + $0x98] sm:$0xf]
        %v2268 = vld [vmem:[%s681 + $0x9c] sm:$0xf]
        %v2269 = vld [vmem:[%s681 + $0xa0] sm:$0xf]
        %v2270 = vld [vmem:[%s681 + $0xa4] sm:$0xf]
        %v2271 = vld [vmem:[%s681 + $0xa8] sm:$0xf]
        %v2272 = vld [vmem:[%s681 + $0xac] sm:$0xf]
        %v2273 = vld [vmem:[%s681 + $0xb0] sm:$0xf]
        %v2274 = vld [vmem:[%s681 + $0xb4] sm:$0xf]
        %v2275 = vld [vmem:[%s681 + $0xb8] sm:$0xf]
        %v2276 = vld [vmem:[%s681 + $0xbc] sm:$0xf]
        %v2277 = vld [vmem:[%s681 + $0xc0] sm:$0xf]
        %v2278 = vld [vmem:[%s681 + $0xc4] sm:$0xf]
        %v2279 = vld [vmem:[%s681 + $0xc8] sm:$0xf]
        %v2280 = vld [vmem:[%s681 + $0xcc] sm:$0xf]
        %v2281 = vld [vmem:[%s681 + $0xd0] sm:$0xf]
        %v2282 = vld [vmem:[%s681 + $0xd4] sm:$0xf]
        %v2283 = vld [vmem:[%s681 + $0xd8] sm:$0xf]
        %v2284 = vld [vmem:[%s681 + $0xdc] sm:$0xf]
        %v2285 = vld [vmem:[%s681 + $0xe0] sm:$0xf]
        %v2286 = vld [vmem:[%s681 + $0xe4] sm:$0xf]
        %v2287 = vld [vmem:[%s681 + $0xe8] sm:$0xf]
        %v2288 = vld [vmem:[%s681 + $0xec] sm:$0xf]
        %v2289 = vld [vmem:[%s681 + $0xf0] sm:$0xf]
        %v2290 = vld [vmem:[%s681 + $0xf4] sm:$0xf]
        %v2291 = vld [vmem:[%s681 + $0xf8] sm:$0xf]
        %v2292 = vld [vmem:[%s681 + $0xfc] sm:$0xf]
        %v2293 = vld [vmem:[%s684] sm:$0x1]
        %v2295 = vlaneseq
        %v2296 = vshrl.u32 %v2295, 7
        %v2297 = vsub.s32 0, %v2296
        %v2298 = vrot.slane %v2293, %v2297
        %v2364 = vunpack.c.l.b16 %v2229
        %v2365 = vunpack.c.l.b16 %v2230
        %v2366 = vunpack.c.l.b16 %v2231
        %v2367 = vunpack.c.l.b16 %v2232
        %v2368 = vunpack.c.l.b16 %v2233
        %v2369 = vunpack.c.l.b16 %v2234
        %v2370 = vunpack.c.l.b16 %v2235
        %v2371 = vunpack.c.l.b16 %v2236
        %v2372 = vunpack.c.l.b16 %v2237
        %v2373 = vunpack.c.l.b16 %v2238
        %v2374 = vunpack.c.l.b16 %v2239
        %v2375 = vunpack.c.l.b16 %v2240
        %v2376 = vunpack.c.l.b16 %v2241
        %v2377 = vunpack.c.l.b16 %v2242
        %v2378 = vunpack.c.l.b16 %v2243
        %v2379 = vunpack.c.l.b16 %v2244
        %v2380 = vunpack.c.l.b16 %v2245
        %v2381 = vunpack.c.l.b16 %v2246
        %v2382 = vunpack.c.l.b16 %v2247
        %v2383 = vunpack.c.l.b16 %v2248
        %v2384 = vunpack.c.l.b16 %v2249
        %v2385 = vunpack.c.l.b16 %v2250
        %v2386 = vunpack.c.l.b16 %v2251
        %v2387 = vunpack.c.l.b16 %v2252
        %v2388 = vunpack.c.l.b16 %v2253
        %v2389 = vunpack.c.l.b16 %v2254
        %v2390 = vunpack.c.l.b16 %v2255
        %v2391 = vunpack.c.l.b16 %v2256
        %v2392 = vunpack.c.l.b16 %v2257
        %v2393 = vunpack.c.l.b16 %v2258
        %v2394 = vunpack.c.l.b16 %v2259
        %v2395 = vunpack.c.l.b16 %v2260
        %v2396 = vunpack.c.l.b16 %v2261
        %v2397 = vunpack.c.l.b16 %v2262
        %v2398 = vunpack.c.l.b16 %v2263
        %v2399 = vunpack.c.l.b16 %v2264
        %v2400 = vunpack.c.l.b16 %v2265
        %v2401 = vunpack.c.l.b16 %v2266
        %v2402 = vunpack.c.l.b16 %v2267
        %v2403 = vunpack.c.l.b16 %v2268
        %v2404 = vunpack.c.l.b16 %v2269
        %v2405 = vunpack.c.l.b16 %v2270
        %v2406 = vunpack.c.l.b16 %v2271
        %v2407 = vunpack.c.l.b16 %v2272
        %v2408 = vunpack.c.l.b16 %v2273
        %v2409 = vunpack.c.l.b16 %v2274
        %v2410 = vunpack.c.l.b16 %v2275
        %v2411 = vunpack.c.l.b16 %v2276
        %v2412 = vunpack.c.l.b16 %v2277
        %v2413 = vunpack.c.l.b16 %v2278
        %v2414 = vunpack.c.l.b16 %v2279
        %v2415 = vunpack.c.l.b16 %v2280
        %v2416 = vunpack.c.l.b16 %v2281
        %v2417 = vunpack.c.l.b16 %v2282
        %v2418 = vunpack.c.l.b16 %v2283
        %v2419 = vunpack.c.l.b16 %v2284
        %v2420 = vunpack.c.l.b16 %v2285
        %v2421 = vunpack.c.l.b16 %v2286
        %v2422 = vunpack.c.l.b16 %v2287
        %v2423 = vunpack.c.l.b16 %v2288
        %v2424 = vunpack.c.l.b16 %v2289
        %v2425 = vunpack.c.l.b16 %v2290
        %v2426 = vunpack.c.l.b16 %v2291
        %v2427 = vunpack.c.l.b16 %v2292
        %v2428 = vpack.c.b16 %v2365, %v2364
        %v2429 = vpack.c.b16 %v2367, %v2366
        %v2430 = vpack.c.b16 %v2369, %v2368
        %v2431 = vpack.c.b16 %v2371, %v2370
        %v2432 = vpack.c.b16 %v2373, %v2372
        %v2433 = vpack.c.b16 %v2375, %v2374
        %v2434 = vpack.c.b16 %v2377, %v2376
        %v2435 = vpack.c.b16 %v2379, %v2378
        %v2436 = vpack.c.b16 %v2381, %v2380
        %v2437 = vpack.c.b16 %v2383, %v2382
        %v2438 = vpack.c.b16 %v2385, %v2384
        %v2439 = vpack.c.b16 %v2387, %v2386
        %v2440 = vpack.c.b16 %v2389, %v2388
        %v2441 = vpack.c.b16 %v2391, %v2390
        %v2442 = vpack.c.b16 %v2393, %v2392
        %v2443 = vpack.c.b16 %v2395, %v2394
        %v2444 = vpack.c.b16 %v2397, %v2396
        %v2445 = vpack.c.b16 %v2399, %v2398
        %v2446 = vpack.c.b16 %v2401, %v2400
        %v2447 = vpack.c.b16 %v2403, %v2402
        %v2448 = vpack.c.b16 %v2405, %v2404
        %v2449 = vpack.c.b16 %v2407, %v2406
        %v2450 = vpack.c.b16 %v2409, %v2408
        %v2451 = vpack.c.b16 %v2411, %v2410
        %v2452 = vpack.c.b16 %v2413, %v2412
        %v2453 = vpack.c.b16 %v2415, %v2414
        %v2454 = vpack.c.b16 %v2417, %v2416
        %v2455 = vpack.c.b16 %v2419, %v2418
        %v2456 = vpack.c.b16 %v2421, %v2420
        %v2457 = vpack.c.b16 %v2423, %v2422
        %v2458 = vpack.c.b16 %v2425, %v2424
        %v2459 = vpack.c.b16 %v2427, %v2426
        %2492 = vmatprep.subr.bf16.mxu0 0
        %2493 = vmatpush1.bf16.msra.mxu0 %v2428
        %2494 = vmatprep.subr.bf16.mxu0 0
        %2495 = vmatpush1.bf16.msra.mxu0 %v2429
        %2496 = vmatprep.subr.bf16.mxu0 0
        %2497 = vmatpush1.bf16.msra.mxu0 %v2430
        %2498 = vmatprep.subr.bf16.mxu0 0
        %2499 = vmatpush1.bf16.msra.mxu0 %v2431
        %2500 = vmatprep.subr.bf16.mxu0 0
        %2501 = vmatpush1.bf16.msra.mxu0 %v2432
        %2502 = vmatprep.subr.bf16.mxu0 0
        %2503 = vmatpush1.bf16.msra.mxu0 %v2433
        %2504 = vmatprep.subr.bf16.mxu0 0
        %2505 = vmatpush1.bf16.msra.mxu0 %v2434
        %2506 = vmatprep.subr.bf16.mxu0 0
        %2507 = vmatpush1.bf16.msra.mxu0 %v2435
        %2508 = vmatprep.subr.bf16.mxu0 0
        %2509 = vmatpush1.bf16.msra.mxu0 %v2436
        %2510 = vmatprep.subr.bf16.mxu0 0
        %2511 = vmatpush1.bf16.msra.mxu0 %v2437
        %2512 = vmatprep.subr.bf16.mxu0 0
        %2513 = vmatpush1.bf16.msra.mxu0 %v2438
        %2514 = vmatprep.subr.bf16.mxu0 0
        %2515 = vmatpush1.bf16.msra.mxu0 %v2439
        %2516 = vmatprep.subr.bf16.mxu0 0
        %2517 = vmatpush1.bf16.msra.mxu0 %v2440
        %2518 = vmatprep.subr.bf16.mxu0 0
        %2519 = vmatpush1.bf16.msra.mxu0 %v2441
        %2520 = vmatprep.subr.bf16.mxu0 0
        %2521 = vmatpush1.bf16.msra.mxu0 %v2442
        %2522 = vmatprep.subr.bf16.mxu0 0
        %2523 = vmatpush1.bf16.msra.mxu0 %v2443
        %2524 = vmatprep.mubr.bf16.mxu0 %v2214
        %2525 = vmatmul.mubr.bf16.gmra.mrb[0].mxu0 %v2213
        %v2526 = vpop.f32.mrb[0].mxu0
        %v2527 = vadd.f32 %v2298, %v2526
        %v2528 = vpop.f32.mrb[0].mxu0
        %v2529 = vpop.f32.mrb[0].mxu0
        %v2530 = vadd.f32 %v2298, %v2529
        %v2531 = vpop.f32.mrb[0].mxu0
        %2532 = vmatprep.mubr.bf16.mxu0 %v2218
        %2533 = vmatmul.mubr.bf16.gmra.mrb[0].mxu0 %v2217
        %v2534 = vpop.f32.mrb[0].mxu0
        %v2535 = vadd.f32 %v2298, %v2534
        %v2536 = vpop.f32.mrb[0].mxu0
        %v2537 = vpop.f32.mrb[0].mxu0
        %v2538 = vadd.f32 %v2298, %v2537
        %v2539 = vpop.f32.mrb[0].mxu0
        %2540 = vmatprep.mubr.bf16.mxu0 %v2222
        %2541 = vmatmul.mubr.bf16.gmra.mrb[0].mxu0 %v2221
        %v2542 = vpop.f32.mrb[0].mxu0
        %v2543 = vadd.f32 %v2298, %v2542
        %v2544 = vpop.f32.mrb[0].mxu0
        %v2545 = vpop.f32.mrb[0].mxu0
        %v2546 = vadd.f32 %v2298, %v2545
        %v2547 = vpop.f32.mrb[0].mxu0
        %2548 = vmatprep.mubr.bf16.mxu0 %v2226
        %2549 = vmatmul.mubr.bf16.gmra.mrb[0].mxu0 %v2225
        %v2550 = vpop.f32.mrb[0].mxu0
        %v2551 = vadd.f32 %v2298, %v2550
        %v2552 = vpop.f32.mrb[0].mxu0
        %v2553 = vpop.f32.mrb[0].mxu0
        %v2554 = vadd.f32 %v2298, %v2553
        %v2555 = vpop.f32.mrb[0].mxu0
        %2556 = vdwg.mxu0
        %2557 = vmatprep.subr.bf16.mxu0 0
        %2558 = vmatpush1.bf16.msra.mxu0 %v2444
        %2559 = vmatprep.subr.bf16.mxu0 0
        %2560 = vmatpush1.bf16.msra.mxu0 %v2445
        %2561 = vmatprep.subr.bf16.mxu0 0
        %2562 = vmatpush1.bf16.msra.mxu0 %v2446
        %2563 = vmatprep.subr.bf16.mxu0 0
        %2564 = vmatpush1.bf16.msra.mxu0 %v2447
        %2565 = vmatprep.subr.bf16.mxu0 0
        %2566 = vmatpush1.bf16.msra.mxu0 %v2448
        %2567 = vmatprep.subr.bf16.mxu0 0
        %2568 = vmatpush1.bf16.msra.mxu0 %v2449
        %2569 = vmatprep.subr.bf16.mxu0 0
        %2570 = vmatpush1.bf16.msra.mxu0 %v2450
        %2571 = vmatprep.subr.bf16.mxu0 0
        %2572 = vmatpush1.bf16.msra.mxu0 %v2451
        %2573 = vmatprep.subr.bf16.mxu0 0
        %2574 = vmatpush1.bf16.msra.mxu0 %v2452
        %2575 = vmatprep.subr.bf16.mxu0 0
        %2576 = vmatpush1.bf16.msra.mxu0 %v2453
        %2577 = vmatprep.subr.bf16.mxu0 0
        %2578 = vmatpush1.bf16.msra.mxu0 %v2454
        %2579 = vmatprep.subr.bf16.mxu0 0
        %2580 = vmatpush1.bf16.msra.mxu0 %v2455
        %2581 = vmatprep.subr.bf16.mxu0 0
        %2582 = vmatpush1.bf16.msra.mxu0 %v2456
        %2583 = vmatprep.subr.bf16.mxu0 0
        %2584 = vmatpush1.bf16.msra.mxu0 %v2457
        %2585 = vmatprep.subr.bf16.mxu0 0
        %2586 = vmatpush1.bf16.msra.mxu0 %v2458
        %2587 = vmatprep.subr.bf16.mxu0 0
        %2588 = vmatpush1.bf16.msra.mxu0 %v2459
        %2589 = vmatprep.mubr.bf16.mxu0 %v2216
        %2590 = vmatmul.mubr.bf16.gmra.mrb[0].mxu0 %v2215
        %v2591 = vpop.f32.mrb[0].mxu0
        %v2592 = vadd.f32 %v2527, %v2591
        %v2593 = vpop.f32.mrb[0].mxu0
        %v2594 = vpop.f32.mrb[0].mxu0
        %v2595 = vadd.f32 %v2530, %v2594
        %v2596 = vpop.f32.mrb[0].mxu0
        %2597 = vmatprep.mubr.bf16.mxu0 %v2220
        %2598 = vmatmul.mubr.bf16.gmra.mrb[0].mxu0 %v2219
        %v2599 = vpop.f32.mrb[0].mxu0
        %v2600 = vadd.f32 %v2535, %v2599
        %v2601 = vpop.f32.mrb[0].mxu0
        %v2602 = vpop.f32.mrb[0].mxu0
        %v2603 = vadd.f32 %v2538, %v2602
        %v2604 = vpop.f32.mrb[0].mxu0
        %2605 = vmatprep.mubr.bf16.mxu0 %v2224
        %2606 = vmatmul.mubr.bf16.gmra.mrb[0].mxu0 %v2223
        %v2607 = vpop.f32.mrb[0].mxu0
        %v2608 = vadd.f32 %v2543, %v2607
        %v2609 = vpop.f32.mrb[0].mxu0
        %v2610 = vpop.f32.mrb[0].mxu0
        %v2611 = vadd.f32 %v2546, %v2610
        %v2612 = vpop.f32.mrb[0].mxu0
        %2613 = vmatprep.mubr.bf16.mxu0 %v2228
        %2614 = vmatmul.mubr.bf16.gmra.mrb[0].mxu0 %v2227
        %v2615 = vpop.f32.mrb[0].mxu0
        %v2616 = vadd.f32 %v2551, %v2615
        %v2617 = vpop.f32.mrb[0].mxu0
        %v2618 = vpop.f32.mrb[0].mxu0
        %v2619 = vadd.f32 %v2554, %v2618
        %v2620 = vpop.f32.mrb[0].mxu0
        %2621 = vdwg.mxu0
        %v2622 = vadd.f32 %v1553, %v2592
        %v2623 = vadd.f32 %v1554, %v2595
        %v2624 = vadd.f32 %v1555, %v2600
        %v2625 = vadd.f32 %v1556, %v2603
        %v2626 = vadd.f32 %v1557, %v2608
        %v2627 = vadd.f32 %v1558, %v2611
        %v2628 = vadd.f32 %v1559, %v2616
        %v2629 = vadd.f32 %v1560, %v2619
        %v2630 = vld [vmem:[%s687] sm:$0x1]
        %v2631 = vld [vmem:[%s690] sm:$0x1]
        %2632 = vadd.xlane.f32.xlu0 %v2622
        %v2633 = vpop.xlane.xlu0 %2632
        %2634 = vadd.xlane.f32.xlu0 %v2623
        %v2635 = vpop.xlane.xlu0 %2634
        %2636 = vadd.xlane.f32.xlu0 %v2624
        %v2637 = vpop.xlane.xlu0 %2636
        %2638 = vadd.xlane.f32.xlu0 %v2625
        %v2639 = vpop.xlane.xlu0 %2638
        %2640 = vadd.xlane.f32.xlu0 %v2626
        %v2641 = vpop.xlane.xlu0 %2640
        %2642 = vadd.xlane.f32.xlu0 %v2627
        %v2643 = vpop.xlane.xlu0 %2642
        %2644 = vadd.xlane.f32.xlu0 %v2628
        %v2645 = vpop.xlane.xlu0 %2644
        %2646 = vadd.xlane.f32.xlu0 %v2629
        %v2647 = vpop.xlane.xlu0 %2646
        %v2648 = vmul.f32 %v2633, %v1460
        %v2649 = vmul.f32 %v2635, %v1460
        %v2650 = vmul.f32 %v2637, %v1460
        %v2651 = vmul.f32 %v2639, %v1460
        %v2652 = vmul.f32 %v2641, %v1460
        %v2653 = vmul.f32 %v2643, %v1460
        %v2654 = vmul.f32 %v2645, %v1460
        %v2655 = vmul.f32 %v2647, %v1460
        %v2656 = vsub.f32 %v2622, %v2648
        %v2657 = vsub.f32 %v2623, %v2649
        %v2658 = vsub.f32 %v2624, %v2650
        %v2659 = vsub.f32 %v2625, %v2651
        %v2660 = vsub.f32 %v2626, %v2652
        %v2661 = vsub.f32 %v2627, %v2653
        %v2662 = vsub.f32 %v2628, %v2654
        %v2663 = vsub.f32 %v2629, %v2655
        %v2664 = vmul.f32 %v2656, %v2656
        %v2665 = vmul.f32 %v2657, %v2657
        %v2666 = vmul.f32 %v2658, %v2658
        %v2667 = vmul.f32 %v2659, %v2659
        %v2668 = vmul.f32 %v2660, %v2660
        %v2669 = vmul.f32 %v2661, %v2661
        %v2670 = vmul.f32 %v2662, %v2662
        %v2671 = vmul.f32 %v2663, %v2663
        %2672 = vadd.xlane.f32.xlu0 %v2664
        %v2673 = vpop.xlane.xlu0 %2672
        %2674 = vadd.xlane.f32.xlu0 %v2665
        %v2675 = vpop.xlane.xlu0 %2674
        %2676 = vadd.xlane.f32.xlu0 %v2666
        %v2677 = vpop.xlane.xlu0 %2676
        %2678 = vadd.xlane.f32.xlu0 %v2667
        %v2679 = vpop.xlane.xlu0 %2678
        %2680 = vadd.xlane.f32.xlu0 %v2668
        %v2681 = vpop.xlane.xlu0 %2680
        %2682 = vadd.xlane.f32.xlu0 %v2669
        %v2683 = vpop.xlane.xlu0 %2682
        %2684 = vadd.xlane.f32.xlu0 %v2670
        %v2685 = vpop.xlane.xlu0 %2684
        %2686 = vadd.xlane.f32.xlu0 %v2671
        %v2687 = vpop.xlane.xlu0 %2686
        %v2688 = vmul.f32 %v2673, %v1460
        %v2689 = vmul.f32 %v2675, %v1460
        %v2690 = vmul.f32 %v2677, %v1460
        %v2691 = vmul.f32 %v2679, %v1460
        %v2692 = vmul.f32 %v2681, %v1460
        %v2693 = vmul.f32 %v2683, %v1460
        %v2694 = vmul.f32 %v2685, %v1460
        %v2695 = vmul.f32 %v2687, %v1460
        %v2696 = vadd.f32 %v2688, 1e-05
        %v2697 = vadd.f32 %v2689, 1e-05
        %v2698 = vadd.f32 %v2690, 1e-05
        %v2699 = vadd.f32 %v2691, 1e-05
        %v2700 = vadd.f32 %v2692, 1e-05
        %v2701 = vadd.f32 %v2693, 1e-05
        %v2702 = vadd.f32 %v2694, 1e-05
        %v2703 = vadd.f32 %v2695, 1e-05
        %v2704 = vrsqrt.pop %v2696
        %v2705 = vrsqrt.pop %v2697
        %v2706 = vrsqrt.pop %v2698
        %v2707 = vrsqrt.pop %v2699
        %v2708 = vrsqrt.pop %v2700
        %v2709 = vrsqrt.pop %v2701
        %v2710 = vrsqrt.pop %v2702
        %v2711 = vrsqrt.pop %v2703
        %v2712 = vmul.f32 %v2656, %v2704
        %v2713 = vmul.f32 %v2657, %v2705
        %v2714 = vmul.f32 %v2658, %v2706
        %v2715 = vmul.f32 %v2659, %v2707
        %v2716 = vmul.f32 %v2660, %v2708
        %v2717 = vmul.f32 %v2661, %v2709
        %v2718 = vmul.f32 %v2662, %v2710
        %v2719 = vmul.f32 %v2663, %v2711
        %v2721 = vlaneseq
        %v2722 = vshrl.u32 %v2721, 7
        %v2723 = vsub.s32 0, %v2722
        %v2724 = vrot.slane %v2630, %v2723
        %v2726 = vmul.f32 %v2712, %v2724
        %v2727 = vmul.f32 %v2713, %v2724
        %v2728 = vmul.f32 %v2714, %v2724
        %v2729 = vmul.f32 %v2715, %v2724
        %v2730 = vmul.f32 %v2716, %v2724
        %v2731 = vmul.f32 %v2717, %v2724
        %v2732 = vmul.f32 %v2718, %v2724
        %v2733 = vmul.f32 %v2719, %v2724
        %v2735 = vlaneseq
        %v2736 = vshrl.u32 %v2735, 7
        %v2737 = vsub.s32 0, %v2736
        %v2738 = vrot.slane %v2631, %v2737
        %v2740 = vadd.f32 %v2726, %v2738
        %v2741 = vadd.f32 %v2727, %v2738
        %v2742 = vadd.f32 %v2728, %v2738
        %v2743 = vadd.f32 %v2729, %v2738
        %v2744 = vadd.f32 %v2730, %v2738
        %v2745 = vadd.f32 %v2731, %v2738
        %v2746 = vadd.f32 %v2732, %v2738
        %v2747 = vadd.f32 %v2733, %v2738
        %2748 = vst [vmem:[#allocation2] sm:$0xff] %v2740
        %2749 = vst [vmem:[#allocation2 + $0x8] sm:$0xff] %v2741
        %2750 = vst [vmem:[#allocation2 + $0x10] sm:$0xff] %v2742
        %2751 = vst [vmem:[#allocation2 + $0x18] sm:$0xff] %v2743
        %2752 = vst [vmem:[#allocation2 + $0x20] sm:$0xff] %v2744
        %2753 = vst [vmem:[#allocation2 + $0x28] sm:$0xff] %v2745
        %2754 = vst [vmem:[#allocation2 + $0x30] sm:$0xff] %v2746
        %2755 = vst [vmem:[#allocation2 + $0x38] sm:$0xff] %v2747
        %2756 = vst [vmem:[%s649] sm:$0xff] %v2740
        %2757 = vst [vmem:[%s649 + $0x8] sm:$0xff] %v2741
        %2758 = vst [vmem:[%s649 + $0x10] sm:$0xff] %v2742
        %2759 = vst [vmem:[%s649 + $0x18] sm:$0xff] %v2743
        %2760 = vst [vmem:[%s649 + $0x20] sm:$0xff] %v2744
        %2761 = vst [vmem:[%s649 + $0x28] sm:$0xff] %v2745
        %2762 = vst [vmem:[%s649 + $0x30] sm:$0xff] %v2746
        %2763 = vst [vmem:[%s649 + $0x38] sm:$0xff] %v2747
        %s2764 = sand.u32 %s393, 1
        %s2765 = scalar_lea.sflag [#allocation5], %s2764
        %s2766 = sand.u32 %s393, 1
        %s2767 = smul.addr %s2766, 64
        %s2768 = scalar_lea.vmem [#allocation8], %s2767
        // Predicated region
        $region85: #{forward.3} parent=71 // pred_check
          %p2769 = pneg %p403
        $region86: #{forward.3} parent=71 // pred_check_branch
          %2771 = sbr.rel (%p2769) target = $region88
        $region87: #{forward.3} parent=71 // pred_region
          %s2773 = ssub.s32 1024, 1024
          %2774 = vsyncadd %s2765, %s2773
          %s2775 = smul.addr %s37, 8
          %s2776 = smul.addr %s38, 16
          %s2777 = sadd.s32 %s2775, %s2776
          %s2778 = smul.addr %s2777, 128
          %s2779 = scalar_lea.hbm %s13, %s2778
          %s2780 = sshll.u32 %s2768, 4
          %s2781 = int_to_ptr.vmem [resolvable:$true] %s2780
          %2786 = dma.vmem_to_hbm [thread:$0]  %s2781, 1024, %s2779, %s2765, 128, 128, 8
        $region88: #{forward.3} parent=71 // pred_fallthru
          _
      $region72: #{forward.3} parent=5 // pred_fallthru
        _
      %p2787 = scmp.le.s32.totalorder 2, %s28
      // Predicated region
      $region89: #{forward.3} parent=5 // pred_check
        %p2788 = pneg %p2787
      $region90: #{forward.3} parent=5 // pred_check_branch
        %2790 = sbr.rel (%p2788) target = $region92
      $region91: #{forward.3} parent=5 // pred_region
        %s2791 = ssub.s32 %s28, 2
        // Predicated region
        $region93: #{forward.3} parent=91 // pred_check
          %p2792 = pneg %p409
        $region94: #{forward.3} parent=91 // pred_check_branch
          %2794 = sbr.rel (%p2792) target = $region96
        $region95: #{forward.3} parent=91 // pred_region
          %s2795 = sand.u32 %s394, 1
          %s2796 = scalar_lea.sflag [#allocation5], %s2795
          %s2797 = sand.u32 %s394, 1
          %s2798 = smul.addr %s2797, 64
          %s2799 = scalar_lea.vmem [#allocation8], %s2798
          %2800 = dma.done %s2796, 1024
        $region96: #{forward.3} parent=91 // pred_fallthru
          _
      $region92: #{forward.3} parent=5 // pred_fallthru
        _
    $region6: #{forward.3} parent=1 // loop_footer
      %s32 = sadd.s32 1, %s28
    $region7: #{forward.3} parent=1 // loop_footer_branch
      %27 = sbr.rel target = $region3
    $region8: #{forward.3} parent=1 // loop_exit
      _
    %2801 = vsyncpa [#allocation4], 1
    %s2802 = scalar_lea.sflag [#allocation4], 1
    %2803 = vsyncpa %s2802, 1
    %2804 = vsyncpa [#allocation7], 1
    %s2805 = scalar_lea.sflag [#allocation7], 1
    %2806 = vsyncpa %s2805, 1
    %2807 = vsyncpa [#allocation5], 1
    %s2808 = scalar_lea.sflag [#allocation5], 1
    %2809 = vsyncpa %s2808, 1

// kernel: forward.2
$region0: #{forward.2}
  #allocation0 [shape = 'u32[]', space=smem, size = 0x4, offset = 0x4, fixed_abs, tag = 'smem constant byte address 0x4 - core index']
  #allocation1 [shape = 'u32[144,128]{1,0:T(1,128)}', space=vmem, size = 0x12000, scoped, tag = 'internal scratch']
  %s0 = inlined_call_operand.vmem [shape: bf16[2,64,64], index: 0, kind: input, shape index: {}]
  %s1 = inlined_call_operand.vmem [shape: bf16[64,1024], index: 1, kind: input, shape index: {}]
  %s2 = inlined_call_operand.hbm [shape: f32[1,1024], index: 2, kind: input, shape index: {}]
  %s3 = inlined_call_operand.hbm [shape: bf16[1024,256], index: 3, kind: input, shape index: {}]
  %s4 = inlined_call_operand.vmem [shape: f32[1,256], index: 4, kind: input, shape index: {}]
  %s5 = inlined_call_operand.hbm [shape: bf16[256,128], index: 5, kind: input, shape index: {}]
  %s6 = inlined_call_operand.vmem [shape: f32[1,128], index: 6, kind: input, shape index: {}]
  %s7 = inlined_call_operand.vmem [shape: f32[1,128], index: 7, kind: input, shape index: {}]
  %s8 = inlined_call_operand.vmem [shape: f32[1,128], index: 8, kind: input, shape index: {}]
  %s9 = inlined_call_operand.hbm [shape: bf16[128,128], index: 9, kind: input, shape index: {}]
  %s10 = inlined_call_operand.vmem [shape: f32[1,128], index: 10, kind: input, shape index: {}]
  %s11 = inlined_call_operand.vmem [shape: bf16[2,64,128], index: 11, kind: output, shape index: {}]
  %s12 = sld [smem:[#allocation0]]
  $region93: #{forward.2} parent=0
    _
  %s14 = ssub.s32 1, %s12
  %s15 = scalar_select 0, %s14, %s12
  $region1: #{forward.2} parent=0
    #allocation2 [shape = 'u8[4096]{0}', space=vmem, size = 0x1000, scoped, tag = 'input window, operand 2, single buffered']
    #allocation3 [shape = 's32[2]{0}', space=sflag, size = 0x8, scoped, tag = 'scoped memory for forward.2']
    #allocation4 [shape = 'u8[524288]{0}', space=vmem, size = 0x80000, scoped, tag = 'input window, operand 3, single buffered']
    #allocation5 [shape = 's32[1]{0}', space=sflag, size = 0x4, scoped, tag = 'scoped memory for forward.2']
    #allocation6 [shape = 'u8[65536]{0}', space=vmem, size = 0x10000, scoped, tag = 'input window, operand 5, single buffered']
    #allocation7 [shape = 'u8[32768]{0}', space=vmem, size = 0x8000, scoped, tag = 'input window, operand 9, single buffered']
    #allocation8 [shape = 's32[1]{0}', space=sflag, size = 0x4, scoped, tag = 'scoped memory for forward.2']
    %16 = vsyncpa [#allocation3], 0
    %17 = vsyncpa [#allocation5], 0
    %18 = vsyncpa [#allocation8], 0
    loop: start=0, step=1, limit=4
    $region2: #{forward.2} parent=1 // loop_pre_header
      _
    $region3: #{forward.2} parent=1 // loop_header
      %s20 = sphi 0, %s24
      %p21 = scmp.ge.s32.totalorder %s20, 4
      %s30 = sphi 0, %s32
      %s33 = sphi 0, %s30
      %s34 = sphi 0, %s33
      %s50 = sphi 0, %s34
      %s54 = sphi 0, %s54
      %s56 = sphi 0, %s54
      %s57 = sphi 0, %s56
      %s71 = sphi 0, %s57
      %s75 = sphi 0, %s75
      %s77 = sphi 0, %s75
      %s78 = sphi 0, %s77
      %s92 = sphi 0, %s78
      %s96 = sphi 0, %s96
      %s98 = sphi 0, %s96
      %s99 = sphi 0, %s98
      %s113 = sphi 0, %s99
      %s117 = sphi 0, %s117
      %s119 = sphi 0, %s117
      %s120 = sphi 0, %s119
      %s134 = sphi 0, %s120
      %s138 = sphi 0, %s138
      %s140 = sphi 0, %s138
      %s141 = sphi 0, %s140
      %s155 = sphi 0, %s141
      %s159 = sphi 0, %s159
      %s161 = sphi 0, %s159
      %s162 = sphi 0, %s161
      %s176 = sphi 0, %s162
      %s180 = sphi 0, %s180
      %s182 = sphi 0, %s180
      %s183 = sphi 0, %s182
      %s197 = sphi 0, %s183
      %s201 = sphi 0, %s201
      %s203 = sphi 0, %s201
      %s204 = sphi 0, %s203
      %s218 = sphi 0, %s204
      %s222 = sphi 0, %s222
      %s224 = sphi 0, %s222
      %s225 = sphi 0, %s224
      %s239 = sphi 0, %s225
      %s243 = sphi 0, %s243
      %s245 = sphi 0, %s243
      %s246 = sphi 0, %s245
      %s260 = sphi 0, %s246
      %s266 = sphi 0, %s268
      %s269 = sphi 0, %s266
      %s270 = sphi 0, %s269
      %s286 = sphi 0, %s270
    $region4: #{forward.2} parent=1 // loop_header_branch
      %23 = sbr.rel (%p21) target = $region8
    $region5: #{forward.2} parent=1 // loop_body
      %s25 = ssub.s32 %s20, 1
      %s26 = ssub.s32 %s20, 2
      %s27 = sadd.s32 %s20, 1
      %s28 = ssub.s32 %s20, %s27
      %p29 = scmp.eq.s32.totalorder %s28, 0
      %s31 = sadd.s32 %s30, 1
      %s32 = scalar_select %p29, %s30, %s31
      %p35 = pneg %p29
      %p36 = scmp.eq.s32.totalorder %s20, 1
      %p37 = por %p35, %p36
      %p38 = scmp.ne.s32.totalorder %s30, %s33
      %p39 = scmp.eq.s32.totalorder %s20, 0
      %p40 = por %p38, %p39
      %p41 = scmp.ne.s32.totalorder %s30, %s33
      %p42 = scmp.eq.s32.totalorder %s25, 1
      %p43 = por %p41, %p42
      %p44 = scmp.ne.s32.totalorder %s33, %s34
      %p45 = scmp.eq.s32.totalorder %s25, 0
      %p46 = por %p44, %p45
      %p47 = scmp.ne.s32.totalorder %s33, %s34
      %p48 = scmp.eq.s32.totalorder %s26, 1
      %p49 = por %p47, %p48
      %p51 = scmp.ne.s32.totalorder %s34, %s50
      %p52 = scmp.eq.s32.totalorder %s26, 0
      %p53 = por %p51, %p52
      %s55 = sadd.s32 %s54, 1
      %p58 = scmp.eq.s32.totalorder %s20, 1
      %p59 = scmp.ne.s32.totalorder %s54, %s56
      %p60 = scmp.eq.s32.totalorder %s20, 0
      %p61 = por %p59, %p60
      %p62 = scmp.ne.s32.totalorder %s54, %s56
      %p63 = scmp.eq.s32.totalorder %s25, 1
      %p64 = por %p62, %p63
      %p65 = scmp.ne.s32.totalorder %s56, %s57
      %p66 = scmp.eq.s32.totalorder %s25, 0
      %p67 = por %p65, %p66
      %p68 = scmp.ne.s32.totalorder %s56, %s57
      %p69 = scmp.eq.s32.totalorder %s26, 1
      %p70 = por %p68, %p69
      %p72 = scmp.ne.s32.totalorder %s57, %s71
      %p73 = scmp.eq.s32.totalorder %s26, 0
      %p74 = por %p72, %p73
      %s76 = sadd.s32 %s75, 1
      %p79 = scmp.eq.s32.totalorder %s20, 1
      %p80 = scmp.ne.s32.totalorder %s75, %s77
      %p81 = scmp.eq.s32.totalorder %s20, 0
      %p82 = por %p80, %p81
      %p83 = scmp.ne.s32.totalorder %s75, %s77
      %p84 = scmp.eq.s32.totalorder %s25, 1
      %p85 = por %p83, %p84
      %p86 = scmp.ne.s32.totalorder %s77, %s78
      %p87 = scmp.eq.s32.totalorder %s25, 0
      %p88 = por %p86, %p87
      %p89 = scmp.ne.s32.totalorder %s77, %s78
      %p90 = scmp.eq.s32.totalorder %s26, 1
      %p91 = por %p89, %p90
      %p93 = scmp.ne.s32.totalorder %s78, %s92
      %p94 = scmp.eq.s32.totalorder %s26, 0
      %p95 = por %p93, %p94
      %s97 = sadd.s32 %s96, 1
      %p100 = scmp.eq.s32.totalorder %s20, 1
      %p101 = scmp.ne.s32.totalorder %s96, %s98
      %p102 = scmp.eq.s32.totalorder %s20, 0
      %p103 = por %p101, %p102
      %p104 = scmp.ne.s32.totalorder %s96, %s98
      %p105 = scmp.eq.s32.totalorder %s25, 1
      %p106 = por %p104, %p105
      %p107 = scmp.ne.s32.totalorder %s98, %s99
      %p108 = scmp.eq.s32.totalorder %s25, 0
      %p109 = por %p107, %p108
      %p110 = scmp.ne.s32.totalorder %s98, %s99
      %p111 = scmp.eq.s32.totalorder %s26, 1
      %p112 = por %p110, %p111
      %p114 = scmp.ne.s32.totalorder %s99, %s113
      %p115 = scmp.eq.s32.totalorder %s26, 0
      %p116 = por %p114, %p115
      %s118 = sadd.s32 %s117, 1
      %p121 = scmp.eq.s32.totalorder %s20, 1
      %p122 = scmp.ne.s32.totalorder %s117, %s119
      %p123 = scmp.eq.s32.totalorder %s20, 0
      %p124 = por %p122, %p123
      %p125 = scmp.ne.s32.totalorder %s117, %s119
      %p126 = scmp.eq.s32.totalorder %s25, 1
      %p127 = por %p125, %p126
      %p128 = scmp.ne.s32.totalorder %s119, %s120
      %p129 = scmp.eq.s32.totalorder %s25, 0
      %p130 = por %p128, %p129
      %p131 = scmp.ne.s32.totalorder %s119, %s120
      %p132 = scmp.eq.s32.totalorder %s26, 1
      %p133 = por %p131, %p132
      %p135 = scmp.ne.s32.totalorder %s120, %s134
      %p136 = scmp.eq.s32.totalorder %s26, 0
      %p137 = por %p135, %p136
      %s139 = sadd.s32 %s138, 1
      %p142 = scmp.eq.s32.totalorder %s20, 1
      %p143 = scmp.ne.s32.totalorder %s138, %s140
      %p144 = scmp.eq.s32.totalorder %s20, 0
      %p145 = por %p143, %p144
      %p146 = scmp.ne.s32.totalorder %s138, %s140
      %p147 = scmp.eq.s32.totalorder %s25, 1
      %p148 = por %p146, %p147
      %p149 = scmp.ne.s32.totalorder %s140, %s141
      %p150 = scmp.eq.s32.totalorder %s25, 0
      %p151 = por %p149, %p150
      %p152 = scmp.ne.s32.totalorder %s140, %s141
      %p153 = scmp.eq.s32.totalorder %s26, 1
      %p154 = por %p152, %p153
      %p156 = scmp.ne.s32.totalorder %s141, %s155
      %p157 = scmp.eq.s32.totalorder %s26, 0
      %p158 = por %p156, %p157
      %s160 = sadd.s32 %s159, 1
      %p163 = scmp.eq.s32.totalorder %s20, 1
      %p164 = scmp.ne.s32.totalorder %s159, %s161
      %p165 = scmp.eq.s32.totalorder %s20, 0
      %p166 = por %p164, %p165
      %p167 = scmp.ne.s32.totalorder %s159, %s161
      %p168 = scmp.eq.s32.totalorder %s25, 1
      %p169 = por %p167, %p168
      %p170 = scmp.ne.s32.totalorder %s161, %s162
      %p171 = scmp.eq.s32.totalorder %s25, 0
      %p172 = por %p170, %p171
      %p173 = scmp.ne.s32.totalorder %s161, %s162
      %p174 = scmp.eq.s32.totalorder %s26, 1
      %p175 = por %p173, %p174
      %p177 = scmp.ne.s32.totalorder %s162, %s176
      %p178 = scmp.eq.s32.totalorder %s26, 0
      %p179 = por %p177, %p178
      %s181 = sadd.s32 %s180, 1
      %p184 = scmp.eq.s32.totalorder %s20, 1
      %p185 = scmp.ne.s32.totalorder %s180, %s182
      %p186 = scmp.eq.s32.totalorder %s20, 0
      %p187 = por %p185, %p186
      %p188 = scmp.ne.s32.totalorder %s180, %s182
      %p189 = scmp.eq.s32.totalorder %s25, 1
      %p190 = por %p188, %p189
      %p191 = scmp.ne.s32.totalorder %s182, %s183
      %p192 = scmp.eq.s32.totalorder %s25, 0
      %p193 = por %p191, %p192
      %p194 = scmp.ne.s32.totalorder %s182, %s183
      %p195 = scmp.eq.s32.totalorder %s26, 1
      %p196 = por %p194, %p195
      %p198 = scmp.ne.s32.totalorder %s183, %s197
      %p199 = scmp.eq.s32.totalorder %s26, 0
      %p200 = por %p198, %p199
      %s202 = sadd.s32 %s201, 1
      %p205 = scmp.eq.s32.totalorder %s20, 1
      %p206 = scmp.ne.s32.totalorder %s201, %s203
      %p207 = scmp.eq.s32.totalorder %s20, 0
      %p208 = por %p206, %p207
      %p209 = scmp.ne.s32.totalorder %s201, %s203
      %p210 = scmp.eq.s32.totalorder %s25, 1
      %p211 = por %p209, %p210
      %p212 = scmp.ne.s32.totalorder %s203, %s204
      %p213 = scmp.eq.s32.totalorder %s25, 0
      %p214 = por %p212, %p213
      %p215 = scmp.ne.s32.totalorder %s203, %s204
      %p216 = scmp.eq.s32.totalorder %s26, 1
      %p217 = por %p215, %p216
      %p219 = scmp.ne.s32.totalorder %s204, %s218
      %p220 = scmp.eq.s32.totalorder %s26, 0
      %p221 = por %p219, %p220
      %s223 = sadd.s32 %s222, 1
      %p226 = scmp.eq.s32.totalorder %s20, 1
      %p227 = scmp.ne.s32.totalorder %s222, %s224
      %p228 = scmp.eq.s32.totalorder %s20, 0
      %p229 = por %p227, %p228
      %p230 = scmp.ne.s32.totalorder %s222, %s224
      %p231 = scmp.eq.s32.totalorder %s25, 1
      %p232 = por %p230, %p231
      %p233 = scmp.ne.s32.totalorder %s224, %s225
      %p234 = scmp.eq.s32.totalorder %s25, 0
      %p235 = por %p233, %p234
      %p236 = scmp.ne.s32.totalorder %s224, %s225
      %p237 = scmp.eq.s32.totalorder %s26, 1
      %p238 = por %p236, %p237
      %p240 = scmp.ne.s32.totalorder %s225, %s239
      %p241 = scmp.eq.s32.totalorder %s26, 0
      %p242 = por %p240, %p241
      %s244 = sadd.s32 %s243, 1
      %p247 = scmp.eq.s32.totalorder %s20, 1
      %p248 = scmp.ne.s32.totalorder %s243, %s245
      %p249 = scmp.eq.s32.totalorder %s20, 0
      %p250 = por %p248, %p249
      %p251 = scmp.ne.s32.totalorder %s243, %s245
      %p252 = scmp.eq.s32.totalorder %s25, 1
      %p253 = por %p251, %p252
      %p254 = scmp.ne.s32.totalorder %s245, %s246
      %p255 = scmp.eq.s32.totalorder %s25, 0
      %p256 = por %p254, %p255
      %p257 = scmp.ne.s32.totalorder %s245, %s246
      %p258 = scmp.eq.s32.totalorder %s26, 1
      %p259 = por %p257, %p258
      %p261 = scmp.ne.s32.totalorder %s246, %s260
      %p262 = scmp.eq.s32.totalorder %s26, 0
      %p263 = por %p261, %p262
      %s264 = ssub.s32 %s20, %s27
      %p265 = scmp.eq.s32.totalorder %s264, 0
      %s267 = sadd.s32 %s266, 1
      %s268 = scalar_select %p265, %s266, %s267
      %p271 = pneg %p265
      %p272 = scmp.eq.s32.totalorder %s20, 1
      %p273 = por %p271, %p272
      %p274 = scmp.ne.s32.totalorder %s266, %s269
      %p275 = scmp.eq.s32.totalorder %s20, 0
      %p276 = por %p274, %p275
      %p277 = scmp.ne.s32.totalorder %s266, %s269
      %p278 = scmp.eq.s32.totalorder %s25, 1
      %p279 = por %p277, %p278
      %p280 = scmp.ne.s32.totalorder %s269, %s270
      %p281 = scmp.eq.s32.totalorder %s25, 0
      %p282 = por %p280, %p281
      %p283 = scmp.ne.s32.totalorder %s269, %s270
      %p284 = scmp.eq.s32.totalorder %s26, 1
      %p285 = por %p283, %p284
      %p287 = scmp.ne.s32.totalorder %s270, %s286
      %p288 = scmp.eq.s32.totalorder %s26, 0
      %p289 = por %p287, %p288
      %p290 = scmp.le.s32.totalorder 1, %s20
      %p291 = scmp.lt.s32.totalorder %s20, 3
      %p292 = pnand %p290, %p291
      %p293 = pneg %p292
      // Predicated region
      $region9: #{forward.2} parent=5 // pred_check
        _
      $region10: #{forward.2} parent=5 // pred_check_branch
        %295 = sbr.rel (%p292) target = $region12
      $region11: #{forward.2} parent=5 // pred_region
        %s296 = ssub.s32 %s20, 1
        // Predicated region
        $region13: #{forward.2} parent=11 // pred_check
          %p297 = pneg %p67
        $region14: #{forward.2} parent=11 // pred_check_branch
          %299 = sbr.rel (%p297) target = $region16
        $region15: #{forward.2} parent=11 // pred_region
          _
        $region16: #{forward.2} parent=11 // pred_fallthru
          _
        // Predicated region
        $region17: #{forward.2} parent=11 // pred_check
          %p300 = pneg %p88
        $region18: #{forward.2} parent=11 // pred_check_branch
          %302 = sbr.rel (%p300) target = $region20
        $region19: #{forward.2} parent=11 // pred_region
          %s304 = ssub.s32 128, 128
          %305 = vsyncadd [#allocation3], %s304
          %s307 = sshll.u32 [#allocation2], 4
          %s308 = int_to_ptr.vmem [resolvable:$true] %s307
          %310 = dma.hbm_to_vmem [thread:$0]  %s2, 128, %s308, [#allocation3]
        $region20: #{forward.2} parent=11 // pred_fallthru
          _
        // Predicated region
        $region21: #{forward.2} parent=11 // pred_check
          %p311 = pneg %p109
        $region22: #{forward.2} parent=11 // pred_check_branch
          %313 = sbr.rel (%p311) target = $region24
        $region23: #{forward.2} parent=11 // pred_region
          %s315 = ssub.s32 16384, 16384
          %316 = vsyncadd [#allocation5], %s315
          %s317 = sshll.u32 [#allocation4], 4
          %s318 = int_to_ptr.vmem [resolvable:$true] %s317
          %323 = dma.hbm_to_vmem [thread:$0]  %s3, 16384, %s318, [#allocation5], 128, 128, 8
        $region24: #{forward.2} parent=11 // pred_fallthru
          _
        // Predicated region
        $region25: #{forward.2} parent=11 // pred_check
          %p324 = pneg %p130
        $region26: #{forward.2} parent=11 // pred_check_branch
          %326 = sbr.rel (%p324) target = $region28
        $region27: #{forward.2} parent=11 // pred_region
          _
        $region28: #{forward.2} parent=11 // pred_fallthru
          _
        // Predicated region
        $region29: #{forward.2} parent=11 // pred_check
          %p327 = pneg %p151
        $region30: #{forward.2} parent=11 // pred_check_branch
          %329 = sbr.rel (%p327) target = $region32
        $region31: #{forward.2} parent=11 // pred_region
          %s331 = ssub.s32 2048, 2048
          %332 = vsyncadd [#allocation5], %s331
          %s333 = sshll.u32 [#allocation6], 4
          %s334 = int_to_ptr.vmem [resolvable:$true] %s333
          %339 = dma.hbm_to_vmem [thread:$0]  %s5, 2048, %s334, [#allocation5], 64, 64, 4
        $region32: #{forward.2} parent=11 // pred_fallthru
          _
        // Predicated region
        $region33: #{forward.2} parent=11 // pred_check
          %p340 = pneg %p172
        $region34: #{forward.2} parent=11 // pred_check_branch
          %342 = sbr.rel (%p340) target = $region36
        $region35: #{forward.2} parent=11 // pred_region
          _
        $region36: #{forward.2} parent=11 // pred_fallthru
          _
        // Predicated region
        $region37: #{forward.2} parent=11 // pred_check
          %p343 = pneg %p193
        $region38: #{forward.2} parent=11 // pred_check_branch
          %345 = sbr.rel (%p343) target = $region40
        $region39: #{forward.2} parent=11 // pred_region
          _
        $region40: #{forward.2} parent=11 // pred_fallthru
          _
        // Predicated region
        $region41: #{forward.2} parent=11 // pred_check
          %p346 = pneg %p214
        $region42: #{forward.2} parent=11 // pred_check_branch
          %348 = sbr.rel (%p346) target = $region44
        $region43: #{forward.2} parent=11 // pred_region
          _
        $region44: #{forward.2} parent=11 // pred_fallthru
          _
        // Predicated region
        $region45: #{forward.2} parent=11 // pred_check
          %p349 = pneg %p235
        $region46: #{forward.2} parent=11 // pred_check_branch
          %351 = sbr.rel (%p349) target = $region48
        $region47: #{forward.2} parent=11 // pred_region
          %s353 = ssub.s32 1024, 1024
          %354 = vsyncadd [#allocation8], %s353
          %s355 = sshll.u32 [#allocation7], 4
          %s356 = int_to_ptr.vmem [resolvable:$true] %s355
          %361 = dma.hbm_to_vmem [thread:$0]  %s9, 1024, %s356, [#allocation8], 64, 64, 4
        $region48: #{forward.2} parent=11 // pred_fallthru
          _
        // Predicated region
        $region49: #{forward.2} parent=11 // pred_check
          %p362 = pneg %p256
        $region50: #{forward.2} parent=11 // pred_check_branch
          %364 = sbr.rel (%p362) target = $region52
        $region51: #{forward.2} parent=11 // pred_region
          _
        $region52: #{forward.2} parent=11 // pred_fallthru
          _
      $region12: #{forward.2} parent=5 // pred_fallthru
        _
      %p365 = scmp.lt.s32.totalorder %s20, 2
      // Predicated region
      $region53: #{forward.2} parent=5 // pred_check
        %p366 = pneg %p365
      $region54: #{forward.2} parent=5 // pred_check_branch
        %368 = sbr.rel (%p366) target = $region56
      $region55: #{forward.2} parent=5 // pred_region
        // Predicated region
        $region57: #{forward.2} parent=55 // pred_check
          %p369 = pneg %p40
        $region58: #{forward.2} parent=55 // pred_check_branch
          %371 = sbr.rel (%p369) target = $region60
        $region59: #{forward.2} parent=55 // pred_region
          %p372 = scmp.lt.s32.totalorder %s20, 1
          %s373 = scalar_select %p372, %s20, 1
          %s374 = smul.addr %s373, 8
          %s375 = smul.addr %s374, 4
          %s376 = scalar_lea.vmem %s0, %s375
        $region60: #{forward.2} parent=55 // pred_fallthru
          _
      $region56: #{forward.2} parent=5 // pred_fallthru
        _
      %p377 = scmp.le.s32.totalorder 1, %s20
      %p378 = scmp.lt.s32.totalorder %s20, 3
      %p379 = pnand %p377, %p378
      %p380 = pneg %p379
      // Predicated region
      $region61: #{forward.2} parent=5 // pred_check
        _
      $region62: #{forward.2} parent=5 // pred_check_branch
        %382 = sbr.rel (%p379) target = $region64
      $region63: #{forward.2} parent=5 // pred_region
        %s383 = ssub.s32 %s20, 1
        // Predicated region
        $region65: #{forward.2} parent=63 // pred_check
          %p384 = pneg %p88
        $region66: #{forward.2} parent=63 // pred_check_branch
          %386 = sbr.rel (%p384) target = $region68
        $region67: #{forward.2} parent=63 // pred_region
          %387 = dma.done [#allocation3], 128
        $region68: #{forward.2} parent=63 // pred_fallthru
          _
        // Predicated region
        $region69: #{forward.2} parent=63 // pred_check
          %p388 = pneg %p109
        $region70: #{forward.2} parent=63 // pred_check_branch
          %390 = sbr.rel (%p388) target = $region72
        $region71: #{forward.2} parent=63 // pred_region
          %391 = dma.done [#allocation5], 16384
        $region72: #{forward.2} parent=63 // pred_fallthru
          _
        // Predicated region
        $region73: #{forward.2} parent=63 // pred_check
          %p392 = pneg %p151
        $region74: #{forward.2} parent=63 // pred_check_branch
          %394 = sbr.rel (%p392) target = $region76
        $region75: #{forward.2} parent=63 // pred_region
          %395 = dma.done [#allocation5], 2048
        $region76: #{forward.2} parent=63 // pred_fallthru
          _
        // Predicated region
        $region77: #{forward.2} parent=63 // pred_check
          %p396 = pneg %p235
        $region78: #{forward.2} parent=63 // pred_check_branch
          %398 = sbr.rel (%p396) target = $region80
        $region79: #{forward.2} parent=63 // pred_region
          %399 = dma.done [#allocation8], 1024
        $region80: #{forward.2} parent=63 // pred_fallthru
          _
        %p400 = scmp.lt.s32.totalorder %s25, 1
        %s401 = scalar_select %p400, %s25, 1
        %s402 = smul.addr %s401, 8
        %s403 = smul.addr %s402, 4
        %s404 = scalar_lea.vmem %s0, %s403
        %p405 = pneg %p46
        %p406 = pneg %p43
        %p407 = pneg %p67
        %p408 = pneg %p64
        %p409 = pneg %p88
        %p410 = pneg %p85
        %p411 = pneg %p109
        %p412 = pneg %p106
        %p413 = pneg %p130
        %p414 = pneg %p127
        %p415 = pneg %p151
        %p416 = pneg %p148
        %p417 = pneg %p172
        %p418 = pneg %p169
        %p419 = pneg %p193
        %p420 = pneg %p190
        %p421 = pneg %p214
        %p422 = pneg %p211
        %p423 = pneg %p235
        %p424 = pneg %p232
        %p425 = pneg %p256
        %p426 = pneg %p253
        %p427 = pneg %p282
        %p428 = pneg %p279
        %p429 = scmp.lt.s32.totalorder %s25, 1
        %s430 = scalar_select %p429, %s25, 1
        %s431 = smul.addr %s430, 8
        %s432 = smul.addr %s431, 4
        %s433 = scalar_lea.vmem %s11, %s432
        %p434 = scmp.lt.s32.totalorder %s25, 1
        %s435 = scalar_select %p434, %s25, 1
        %s436 = smul.addr %s435, 8
        %s437 = smul.addr %s436, 4
        %s438 = scalar_lea.vmem %s0, %s437
        %p439 = scmp.lt.s32.totalorder %s25, 1
        %s440 = scalar_select %p439, %s25, 1
        %s441 = smul.addr %s440, 8
        %s442 = smul.addr %s441, 4
        %s443 = scalar_lea.vmem %s11, %s442
        %v445 = vld [vmem:[%s438] sm:$0xf]
        %v446 = vld [vmem:[%s438 + $0x4] sm:$0xf]
        %v447 = vld [vmem:[%s438 + $0x8] sm:$0xf]
        %v448 = vld [vmem:[%s438 + $0xc] sm:$0xf]
        %v449 = vld [vmem:[%s438 + $0x10] sm:$0xf]
        %v450 = vld [vmem:[%s438 + $0x14] sm:$0xf]
        %v451 = vld [vmem:[%s438 + $0x18] sm:$0xf]
        %v452 = vld [vmem:[%s438 + $0x1c] sm:$0xf]
        %v453 = vld [vmem:[%s1] sm:$0xff]
        %v454 = vld [vmem:[%s1 + $0x8] sm:$0xff]
        %v455 = vld [vmem:[%s1 + $0x10] sm:$0xff]
        %v456 = vld [vmem:[%s1 + $0x18] sm:$0xff]
        %v457 = vld [vmem:[%s1 + $0x20] sm:$0xff]
        %v458 = vld [vmem:[%s1 + $0x28] sm:$0xff]
        %v459 = vld [vmem:[%s1 + $0x30] sm:$0xff]
        %v460 = vld [vmem:[%s1 + $0x38] sm:$0xff]
        %v461 = vld [vmem:[%s1 + $0x40] sm:$0xff]
        %v462 = vld [vmem:[%s1 + $0x48] sm:$0xff]
        %v463 = vld [vmem:[%s1 + $0x50] sm:$0xff]
        %v464 = vld [vmem:[%s1 + $0x58] sm:$0xff]
        %v465 = vld [vmem:[%s1 + $0x60] sm:$0xff]
        %v466 = vld [vmem:[%s1 + $0x68] sm:$0xff]
        %v467 = vld [vmem:[%s1 + $0x70] sm:$0xff]
        %v468 = vld [vmem:[%s1 + $0x78] sm:$0xff]
        %v469 = vld [vmem:[%s1 + $0x80] sm:$0xff]
        %v470 = vld [vmem:[%s1 + $0x88] sm:$0xff]
        %v471 = vld [vmem:[%s1 + $0x90] sm:$0xff]
        %v472 = vld [vmem:[%s1 + $0x98] sm:$0xff]
        %v473 = vld [vmem:[%s1 + $0xa0] sm:$0xff]
        %v474 = vld [vmem:[%s1 + $0xa8] sm:$0xff]
        %v475 = vld [vmem:[%s1 + $0xb0] sm:$0xff]
        %v476 = vld [vmem:[%s1 + $0xb8] sm:$0xff]
        %v477 = vld [vmem:[%s1 + $0xc0] sm:$0xff]
        %v478 = vld [vmem:[%s1 + $0xc8] sm:$0xff]
        %v479 = vld [vmem:[%s1 + $0xd0] sm:$0xff]
        %v480 = vld [vmem:[%s1 + $0xd8] sm:$0xff]
        %v481 = vld [vmem:[%s1 + $0xe0] sm:$0xff]
        %v482 = vld [vmem:[%s1 + $0xe8] sm:$0xff]
        %v483 = vld [vmem:[%s1 + $0xf0] sm:$0xff]
        %v484 = vld [vmem:[%s1 + $0xf8] sm:$0xff]
        %v485 = vld [vmem:[#allocation2] sm:$0xff]
        %v487 = vlaneseq
        %v488 = vshrl.u32 %v487, 7
        %v489 = vsub.s32 0, %v488
        %v490 = vrot.slane %v485, %v489
        %v491 = vlaneseq
        %v492 = vshrl.u32 %v491, 7
        %v493 = vsub.s32 1, %v492
        %v494 = vrot.slane %v485, %v493
        %v495 = vlaneseq
        %v496 = vshrl.u32 %v495, 7
        %v497 = vsub.s32 2, %v496
        %v498 = vrot.slane %v485, %v497
        %v499 = vlaneseq
        %v500 = vshrl.u32 %v499, 7
        %v501 = vsub.s32 3, %v500
        %v502 = vrot.slane %v485, %v501
        %v503 = vlaneseq
        %v504 = vshrl.u32 %v503, 7
        %v505 = vsub.s32 4, %v504
        %v506 = vrot.slane %v485, %v505
        %v507 = vlaneseq
        %v508 = vshrl.u32 %v507, 7
        %v509 = vsub.s32 5, %v508
        %v510 = vrot.slane %v485, %v509
        %v511 = vlaneseq
        %v512 = vshrl.u32 %v511, 7
        %v513 = vsub.s32 6, %v512
        %v514 = vrot.slane %v485, %v513
        %v515 = vlaneseq
        %v516 = vshrl.u32 %v515, 7
        %v517 = vsub.s32 7, %v516
        %v518 = vrot.slane %v485, %v517
        %v535 = vunpack.c.l.b16 %v445
        %v536 = vunpack.c.l.b16 %v446
        %v537 = vunpack.c.l.b16 %v447
        %v538 = vunpack.c.l.b16 %v448
        %v539 = vunpack.c.l.b16 %v449
        %v540 = vunpack.c.l.b16 %v450
        %v541 = vunpack.c.l.b16 %v451
        %v542 = vunpack.c.l.b16 %v452
        %v543 = vpack.c.b16 %v536, %v535
        %v544 = vpack.c.b16 %v538, %v537
        %v545 = vpack.c.b16 %v540, %v539
        %v546 = vpack.c.b16 %v542, %v541
        %v579 = vunpack.c.l.b16 %v453
        %v580 = vunpack.c.h.b16 %v453
        %v581 = vunpack.c.l.b16 %v454
        %v582 = vunpack.c.h.b16 %v454
        %v583 = vunpack.c.l.b16 %v455
        %v584 = vunpack.c.h.b16 %v455
        %v585 = vunpack.c.l.b16 %v456
        %v586 = vunpack.c.h.b16 %v456
        %v587 = vunpack.c.l.b16 %v457
        %v588 = vunpack.c.h.b16 %v457
        %v589 = vunpack.c.l.b16 %v458
        %v590 = vunpack.c.h.b16 %v458
        %v591 = vunpack.c.l.b16 %v459
        %v592 = vunpack.c.h.b16 %v459
        %v593 = vunpack.c.l.b16 %v460
        %v594 = vunpack.c.h.b16 %v460
        %v595 = vunpack.c.l.b16 %v461
        %v596 = vunpack.c.h.b16 %v461
        %v597 = vunpack.c.l.b16 %v462
        %v598 = vunpack.c.h.b16 %v462
        %v599 = vunpack.c.l.b16 %v463
        %v600 = vunpack.c.h.b16 %v463
        %v601 = vunpack.c.l.b16 %v464
        %v602 = vunpack.c.h.b16 %v464
        %v603 = vunpack.c.l.b16 %v465
        %v604 = vunpack.c.h.b16 %v465
        %v605 = vunpack.c.l.b16 %v466
        %v606 = vunpack.c.h.b16 %v466
        %v607 = vunpack.c.l.b16 %v467
        %v608 = vunpack.c.h.b16 %v467
        %v609 = vunpack.c.l.b16 %v468
        %v610 = vunpack.c.h.b16 %v468
        %v611 = vunpack.c.l.b16 %v469
        %v612 = vunpack.c.h.b16 %v469
        %v613 = vunpack.c.l.b16 %v470
        %v614 = vunpack.c.h.b16 %v470
        %v615 = vunpack.c.l.b16 %v471
        %v616 = vunpack.c.h.b16 %v471
        %v617 = vunpack.c.l.b16 %v472
        %v618 = vunpack.c.h.b16 %v472
        %v619 = vunpack.c.l.b16 %v473
        %v620 = vunpack.c.h.b16 %v473
        %v621 = vunpack.c.l.b16 %v474
        %v622 = vunpack.c.h.b16 %v474
        %v623 = vunpack.c.l.b16 %v475
        %v624 = vunpack.c.h.b16 %v475
        %v625 = vunpack.c.l.b16 %v476
        %v626 = vunpack.c.h.b16 %v476
        %v627 = vunpack.c.l.b16 %v477
        %v628 = vunpack.c.h.b16 %v477
        %v629 = vunpack.c.l.b16 %v478
        %v630 = vunpack.c.h.b16 %v478
        %v631 = vunpack.c.l.b16 %v479
        %v632 = vunpack.c.h.b16 %v479
        %v633 = vunpack.c.l.b16 %v480
        %v634 = vunpack.c.h.b16 %v480
        %v635 = vunpack.c.l.b16 %v481
        %v636 = vunpack.c.h.b16 %v481
        %v637 = vunpack.c.l.b16 %v482
        %v638 = vunpack.c.h.b16 %v482
        %v639 = vunpack.c.l.b16 %v483
        %v640 = vunpack.c.h.b16 %v483
        %v641 = vunpack.c.l.b16 %v484
        %v642 = vunpack.c.h.b16 %v484
        %v643 = vpack.c.b16 %v587, %v579
        %v644 = vpack.c.b16 %v588, %v580
        %v645 = vpack.c.b16 %v589, %v581
        %v646 = vpack.c.b16 %v590, %v582
        %v647 = vpack.c.b16 %v591, %v583
        %v648 = vpack.c.b16 %v592, %v584
        %v649 = vpack.c.b16 %v593, %v585
        %v650 = vpack.c.b16 %v594, %v586
        %v651 = vpack.c.b16 %v603, %v595
        %v652 = vpack.c.b16 %v604, %v596
        %v653 = vpack.c.b16 %v605, %v597
        %v654 = vpack.c.b16 %v606, %v598
        %v655 = vpack.c.b16 %v607, %v599
        %v656 = vpack.c.b16 %v608, %v600
        %v657 = vpack.c.b16 %v609, %v601
        %v658 = vpack.c.b16 %v610, %v602
        %v659 = vpack.c.b16 %v619, %v611
        %v660 = vpack.c.b16 %v620, %v612
        %v661 = vpack.c.b16 %v621, %v613
        %v662 = vpack.c.b16 %v622, %v614
        %v663 = vpack.c.b16 %v623, %v615
        %v664 = vpack.c.b16 %v624, %v616
        %v665 = vpack.c.b16 %v625, %v617
        %v666 = vpack.c.b16 %v626, %v618
        %v667 = vpack.c.b16 %v635, %v627
        %v668 = vpack.c.b16 %v636, %v628
        %v669 = vpack.c.b16 %v637, %v629
        %v670 = vpack.c.b16 %v638, %v630
        %v671 = vpack.c.b16 %v639, %v631
        %v672 = vpack.c.b16 %v640, %v632
        %v673 = vpack.c.b16 %v641, %v633
        %v674 = vpack.c.b16 %v642, %v634
        %vm707 = vcmask 523264
        %v709 = vsel %vm707, %v543, 0
        %v712 = vsel %vm707, %v544, 0
        %v715 = vsel %vm707, %v545, 0
        %v718 = vsel %vm707, %v546, 0
        %720 = vmatprep.subr.bf16.mxu0 %v644
        %721 = vmatpush1.bf16.msra.mxu0 %v643
        %722 = vmatprep.subr.bf16.mxu0 %v652
        %723 = vmatpush1.bf16.msra.mxu0 %v651
        %724 = vmatprep.subr.bf16.mxu0 %v660
        %725 = vmatpush1.bf16.msra.mxu0 %v659
        %726 = vmatprep.subr.bf16.mxu0 %v668
        %727 = vmatpush1.bf16.msra.mxu0 %v667
        %728 = vmatprep.subr.bf16.mxu0 0
        %729 = vmatpush1.bf16.msra.mxu0 0
        %730 = vmatprep.subr.bf16.mxu0 0
        %731 = vmatpush1.bf16.msra.mxu0 0
        %732 = vmatprep.subr.bf16.mxu0 0
        %733 = vmatpush1.bf16.msra.mxu0 0
        %734 = vmatprep.subr.bf16.mxu0 0
        %735 = vmatpush1.bf16.msra.mxu0 0
        %736 = vmatprep.subr.bf16.mxu0 0
        %737 = vmatpush1.bf16.msra.mxu0 0
        %738 = vmatprep.subr.bf16.mxu0 0
        %739 = vmatpush1.bf16.msra.mxu0 0
        %740 = vmatprep.subr.bf16.mxu0 0
        %741 = vmatpush1.bf16.msra.mxu0 0
        %742 = vmatprep.subr.bf16.mxu0 0
        %743 = vmatpush1.bf16.msra.mxu0 0
        %744 = vmatprep.subr.bf16.mxu0 0
        %745 = vmatpush1.bf16.msra.mxu0 0
        %746 = vmatprep.subr.bf16.mxu0 0
        %747 = vmatpush1.bf16.msra.mxu0 0
        %748 = vmatprep.subr.bf16.mxu0 0
        %749 = vmatpush1.bf16.msra.mxu0 0
        %750 = vmatprep.subr.bf16.mxu0 0
        %751 = vmatpush1.bf16.msra.mxu0 0
        %752 = vmatprep.mubr.bf16.mxu0 0
        %753 = vmatmul.mubr.bf16.gmra.mrb[0].mxu0 %v709
        %v754 = vpop.f32.mrb[0].mxu0
        %v755 = vadd.f32 %v490, %v754
        %v756 = vpop.f32.mrb[0].mxu0
        %v757 = vadd.f32 %v494, %v756
        %v758 = vpop.f32.mrb[0].mxu0
        %v759 = vadd.f32 %v490, %v758
        %v760 = vpop.f32.mrb[0].mxu0
        %v761 = vadd.f32 %v494, %v760
        %762 = vmatprep.mubr.bf16.mxu0 0
        %763 = vmatmul.mubr.bf16.gmra.mrb[0].mxu0 %v712
        %v764 = vpop.f32.mrb[0].mxu0
        %v765 = vadd.f32 %v490, %v764
        %v766 = vpop.f32.mrb[0].mxu0
        %v767 = vadd.f32 %v494, %v766
        %v768 = vpop.f32.mrb[0].mxu0
        %v769 = vadd.f32 %v490, %v768
        %v770 = vpop.f32.mrb[0].mxu0
        %v771 = vadd.f32 %v494, %v770
        %772 = vmatprep.mubr.bf16.mxu0 0
        %773 = vmatmul.mubr.bf16.gmra.mrb[0].mxu0 %v715
        %v774 = vpop.f32.mrb[0].mxu0
        %v775 = vadd.f32 %v490, %v774
        %v776 = vpop.f32.mrb[0].mxu0
        %v777 = vadd.f32 %v494, %v776
        %v778 = vpop.f32.mrb[0].mxu0
        %v779 = vadd.f32 %v490, %v778
        %v780 = vpop.f32.mrb[0].mxu0
        %v781 = vadd.f32 %v494, %v780
        %782 = vmatprep.mubr.bf16.mxu0 0
        %783 = vmatmul.mubr.bf16.gmra.mrb[0].mxu0 %v718
        %v784 = vpop.f32.mrb[0].mxu0
        %v785 = vadd.f32 %v490, %v784
        %v786 = vpop.f32.mrb[0].mxu0
        %v787 = vadd.f32 %v494, %v786
        %v788 = vpop.f32.mrb[0].mxu0
        %v789 = vadd.f32 %v490, %v788
        %v790 = vpop.f32.mrb[0].mxu0
        %v791 = vadd.f32 %v494, %v790
        %792 = vdwg.mxu0
        %793 = vmatprep.subr.bf16.mxu0 %v646
        %794 = vmatpush1.bf16.msra.mxu0 %v645
        %795 = vmatprep.subr.bf16.mxu0 %v654
        %796 = vmatpush1.bf16.msra.mxu0 %v653
        %797 = vmatprep.subr.bf16.mxu0 %v662
        %798 = vmatpush1.bf16.msra.mxu0 %v661
        %799 = vmatprep.subr.bf16.mxu0 %v670
        %800 = vmatpush1.bf16.msra.mxu0 %v669
        %801 = vmatprep.subr.bf16.mxu0 0
        %802 = vmatpush1.bf16.msra.mxu0 0
        %803 = vmatprep.subr.bf16.mxu0 0
        %804 = vmatpush1.bf16.msra.mxu0 0
        %805 = vmatprep.subr.bf16.mxu0 0
        %806 = vmatpush1.bf16.msra.mxu0 0
        %807 = vmatprep.subr.bf16.mxu0 0
        %808 = vmatpush1.bf16.msra.mxu0 0
        %809 = vmatprep.subr.bf16.mxu0 0
        %810 = vmatpush1.bf16.msra.mxu0 0
        %811 = vmatprep.subr.bf16.mxu0 0
        %812 = vmatpush1.bf16.msra.mxu0 0
        %813 = vmatprep.subr.bf16.mxu0 0
        %814 = vmatpush1.bf16.msra.mxu0 0
        %815 = vmatprep.subr.bf16.mxu0 0
        %816 = vmatpush1.bf16.msra.mxu0 0
        %817 = vmatprep.subr.bf16.mxu0 0
        %818 = vmatpush1.bf16.msra.mxu0 0
        %819 = vmatprep.subr.bf16.mxu0 0
        %820 = vmatpush1.bf16.msra.mxu0 0
        %821 = vmatprep.subr.bf16.mxu0 0
        %822 = vmatpush1.bf16.msra.mxu0 0
        %823 = vmatprep.subr.bf16.mxu0 0
        %824 = vmatpush1.bf16.msra.mxu0 0
        %825 = vmatprep.mubr.bf16.mxu0 0
        %826 = vmatmul.mubr.bf16.gmra.mrb[0].mxu0 %v709
        %v827 = vpop.f32.mrb[0].mxu0
        %v828 = vadd.f32 %v498, %v827
        %v829 = vpop.f32.mrb[0].mxu0
        %v830 = vadd.f32 %v502, %v829
        %v831 = vpop.f32.mrb[0].mxu0
        %v832 = vadd.f32 %v498, %v831
        %v833 = vpop.f32.mrb[0].mxu0
        %v834 = vadd.f32 %v502, %v833
        %835 = vmatprep.mubr.bf16.mxu0 0
        %836 = vmatmul.mubr.bf16.gmra.mrb[0].mxu0 %v712
        %v837 = vpop.f32.mrb[0].mxu0
        %v838 = vadd.f32 %v498, %v837
        %v839 = vpop.f32.mrb[0].mxu0
        %v840 = vadd.f32 %v502, %v839
        %v841 = vpop.f32.mrb[0].mxu0
        %v842 = vadd.f32 %v498, %v841
        %v843 = vpop.f32.mrb[0].mxu0
        %v844 = vadd.f32 %v502, %v843
        %845 = vmatprep.mubr.bf16.mxu0 0
        %846 = vmatmul.mubr.bf16.gmra.mrb[0].mxu0 %v715
        %v847 = vpop.f32.mrb[0].mxu0
        %v848 = vadd.f32 %v498, %v847
        %v849 = vpop.f32.mrb[0].mxu0
        %v850 = vadd.f32 %v502, %v849
        %v851 = vpop.f32.mrb[0].mxu0
        %v852 = vadd.f32 %v498, %v851
        %v853 = vpop.f32.mrb[0].mxu0
        %v854 = vadd.f32 %v502, %v853
        %855 = vmatprep.mubr.bf16.mxu0 0
        %856 = vmatmul.mubr.bf16.gmra.mrb[0].mxu0 %v718
        %v857 = vpop.f32.mrb[0].mxu0
        %v858 = vadd.f32 %v498, %v857
        %v859 = vpop.f32.mrb[0].mxu0
        %v860 = vadd.f32 %v502, %v859
        %v861 = vpop.f32.mrb[0].mxu0
        %v862 = vadd.f32 %v498, %v861
        %v863 = vpop.f32.mrb[0].mxu0
        %v864 = vadd.f32 %v502, %v863
        %865 = vdwg.mxu0
        %866 = vmatprep.subr.bf16.mxu0 %v648
        %867 = vmatpush1.bf16.msra.mxu0 %v647
        %868 = vmatprep.subr.bf16.mxu0 %v656
        %869 = vmatpush1.bf16.msra.mxu0 %v655
        %870 = vmatprep.subr.bf16.mxu0 %v664
        %871 = vmatpush1.bf16.msra.mxu0 %v663
        %872 = vmatprep.subr.bf16.mxu0 %v672
        %873 = vmatpush1.bf16.msra.mxu0 %v671
        %874 = vmatprep.subr.bf16.mxu0 0
        %875 = vmatpush1.bf16.msra.mxu0 0
        %876 = vmatprep.subr.bf16.mxu0 0
        %877 = vmatpush1.bf16.msra.mxu0 0
        %878 = vmatprep.subr.bf16.mxu0 0
        %879 = vmatpush1.bf16.msra.mxu0 0
        %880 = vmatprep.subr.bf16.mxu0 0
        %881 = vmatpush1.bf16.msra.mxu0 0
        %882 = vmatprep.subr.bf16.mxu0 0
        %883 = vmatpush1.bf16.msra.mxu0 0
        %884 = vmatprep.subr.bf16.mxu0 0
        %885 = vmatpush1.bf16.msra.mxu0 0
        %886 = vmatprep.subr.bf16.mxu0 0
        %887 = vmatpush1.bf16.msra.mxu0 0
        %888 = vmatprep.subr.bf16.mxu0 0
        %889 = vmatpush1.bf16.msra.mxu0 0
        %890 = vmatprep.subr.bf16.mxu0 0
        %891 = vmatpush1.bf16.msra.mxu0 0
        %892 = vmatprep.subr.bf16.mxu0 0
        %893 = vmatpush1.bf16.msra.mxu0 0
        %894 = vmatprep.subr.bf16.mxu0 0
        %895 = vmatpush1.bf16.msra.mxu0 0
        %896 = vmatprep.subr.bf16.mxu0 0
        %897 = vmatpush1.bf16.msra.mxu0 0
        %898 = vmatprep.mubr.bf16.mxu0 0
        %899 = vmatmul.mubr.bf16.gmra.mrb[0].mxu0 %v709
        %v900 = vpop.f32.mrb[0].mxu0
        %v901 = vadd.f32 %v506, %v900
        %v902 = vpop.f32.mrb[0].mxu0
        %v903 = vadd.f32 %v510, %v902
        %v904 = vpop.f32.mrb[0].mxu0
        %v905 = vadd.f32 %v506, %v904
        %v906 = vpop.f32.mrb[0].mxu0
        %v907 = vadd.f32 %v510, %v906
        %908 = vmatprep.mubr.bf16.mxu0 0
        %909 = vmatmul.mubr.bf16.gmra.mrb[0].mxu0 %v712
        %v910 = vpop.f32.mrb[0].mxu0
        %v911 = vadd.f32 %v506, %v910
        %v912 = vpop.f32.mrb[0].mxu0
        %v913 = vadd.f32 %v510, %v912
        %v914 = vpop.f32.mrb[0].mxu0
        %v915 = vadd.f32 %v506, %v914
        %v916 = vpop.f32.mrb[0].mxu0
        %v917 = vadd.f32 %v510, %v916
        %918 = vmatprep.mubr.bf16.mxu0 0
        %919 = vmatmul.mubr.bf16.gmra.mrb[0].mxu0 %v715
        %v920 = vpop.f32.mrb[0].mxu0
        %v921 = vadd.f32 %v506, %v920
        %v922 = vpop.f32.mrb[0].mxu0
        %v923 = vadd.f32 %v510, %v922
        %v924 = vpop.f32.mrb[0].mxu0
        %v925 = vadd.f32 %v506, %v924
        %v926 = vpop.f32.mrb[0].mxu0
        %v927 = vadd.f32 %v510, %v926
        %928 = vmatprep.mubr.bf16.mxu0 0
        %929 = vmatmul.mubr.bf16.gmra.mrb[0].mxu0 %v718
        %v930 = vpop.f32.mrb[0].mxu0
        %v931 = vadd.f32 %v506, %v930
        %v932 = vpop.f32.mrb[0].mxu0
        %v933 = vadd.f32 %v510, %v932
        %v934 = vpop.f32.mrb[0].mxu0
        %v935 = vadd.f32 %v506, %v934
        %v936 = vpop.f32.mrb[0].mxu0
        %v937 = vadd.f32 %v510, %v936
        %938 = vdwg.mxu0
        %939 = vmatprep.subr.bf16.mxu0 %v650
        %940 = vmatpush1.bf16.msra.mxu0 %v649
        %941 = vmatprep.subr.bf16.mxu0 %v658
        %942 = vmatpush1.bf16.msra.mxu0 %v657
        %943 = vmatprep.subr.bf16.mxu0 %v666
        %944 = vmatpush1.bf16.msra.mxu0 %v665
        %945 = vmatprep.subr.bf16.mxu0 %v674
        %946 = vmatpush1.bf16.msra.mxu0 %v673
        %947 = vmatprep.subr.bf16.mxu0 0
        %948 = vmatpush1.bf16.msra.mxu0 0
        %949 = vmatprep.subr.bf16.mxu0 0
        %950 = vmatpush1.bf16.msra.mxu0 0
        %951 = vmatprep.subr.bf16.mxu0 0
        %952 = vmatpush1.bf16.msra.mxu0 0
        %953 = vmatprep.subr.bf16.mxu0 0
        %954 = vmatpush1.bf16.msra.mxu0 0
        %955 = vmatprep.subr.bf16.mxu0 0
        %956 = vmatpush1.bf16.msra.mxu0 0
        %957 = vmatprep.subr.bf16.mxu0 0
        %958 = vmatpush1.bf16.msra.mxu0 0
        %959 = vmatprep.subr.bf16.mxu0 0
        %960 = vmatpush1.bf16.msra.mxu0 0
        %961 = vmatprep.subr.bf16.mxu0 0
        %962 = vmatpush1.bf16.msra.mxu0 0
        %963 = vmatprep.subr.bf16.mxu0 0
        %964 = vmatpush1.bf16.msra.mxu0 0
        %965 = vmatprep.subr.bf16.mxu0 0
        %966 = vmatpush1.bf16.msra.mxu0 0
        %967 = vmatprep.subr.bf16.mxu0 0
        %968 = vmatpush1.bf16.msra.mxu0 0
        %969 = vmatprep.subr.bf16.mxu0 0
        %970 = vmatpush1.bf16.msra.mxu0 0
        %971 = vmatprep.mubr.bf16.mxu0 0
        %972 = vmatmul.mubr.bf16.gmra.mrb[0].mxu0 %v709
        %v973 = vpop.f32.mrb[0].mxu0
        %v974 = vadd.f32 %v514, %v973
        %v975 = vpop.f32.mrb[0].mxu0
        %v976 = vadd.f32 %v518, %v975
        %v977 = vpop.f32.mrb[0].mxu0
        %v978 = vadd.f32 %v514, %v977
        %v979 = vpop.f32.mrb[0].mxu0
        %v980 = vadd.f32 %v518, %v979
        %981 = vmatprep.mubr.bf16.mxu0 0
        %982 = vmatmul.mubr.bf16.gmra.mrb[0].mxu0 %v712
        %v983 = vpop.f32.mrb[0].mxu0
        %v984 = vadd.f32 %v514, %v983
        %v985 = vpop.f32.mrb[0].mxu0
        %v986 = vadd.f32 %v518, %v985
        %v987 = vpop.f32.mrb[0].mxu0
        %v988 = vadd.f32 %v514, %v987
        %v989 = vpop.f32.mrb[0].mxu0
        %v990 = vadd.f32 %v518, %v989
        %991 = vmatprep.mubr.bf16.mxu0 0
        %992 = vmatmul.mubr.bf16.gmra.mrb[0].mxu0 %v715
        %v993 = vpop.f32.mrb[0].mxu0
        %v994 = vadd.f32 %v514, %v993
        %v995 = vpop.f32.mrb[0].mxu0
        %v996 = vadd.f32 %v518, %v995
        %v997 = vpop.f32.mrb[0].mxu0
        %v998 = vadd.f32 %v514, %v997
        %v999 = vpop.f32.mrb[0].mxu0
        %v1000 = vadd.f32 %v518, %v999
        %1001 = vmatprep.mubr.bf16.mxu0 0
        %1002 = vmatmul.mubr.bf16.gmra.mrb[0].mxu0 %v718
        %v1003 = vpop.f32.mrb[0].mxu0
        %v1004 = vadd.f32 %v514, %v1003
        %v1005 = vpop.f32.mrb[0].mxu0
        %v1006 = vadd.f32 %v518, %v1005
        %v1007 = vpop.f32.mrb[0].mxu0
        %v1008 = vadd.f32 %v514, %v1007
        %v1009 = vpop.f32.mrb[0].mxu0
        %v1010 = vadd.f32 %v518, %v1009
        %1011 = vdwg.mxu0
        %v1012 = vmul.f32 %v755, 0.5
        %v1013 = vmul.f32 %v757, 0.5
        %v1014 = vmul.f32 %v828, 0.5
        %v1015 = vmul.f32 %v830, 0.5
        %v1016 = vmul.f32 %v901, 0.5
        %v1017 = vmul.f32 %v903, 0.5
        %v1018 = vmul.f32 %v974, 0.5
        %v1019 = vmul.f32 %v976, 0.5
        %v1020 = vmul.f32 %v759, 0.5
        %v1021 = vmul.f32 %v761, 0.5
        %v1022 = vmul.f32 %v832, 0.5
        %v1023 = vmul.f32 %v834, 0.5
        %v1024 = vmul.f32 %v905, 0.5
        %v1025 = vmul.f32 %v907, 0.5
        %v1026 = vmul.f32 %v978, 0.5
        %v1027 = vmul.f32 %v980, 0.5
        %v1028 = vmul.f32 %v765, 0.5
        %v1029 = vmul.f32 %v767, 0.5
        %v1030 = vmul.f32 %v838, 0.5
        %v1031 = vmul.f32 %v840, 0.5
        %v1032 = vmul.f32 %v911, 0.5
        %v1033 = vmul.f32 %v913, 0.5
        %v1034 = vmul.f32 %v984, 0.5
        %v1035 = vmul.f32 %v986, 0.5
        %v1036 = vmul.f32 %v769, 0.5
        %v1037 = vmul.f32 %v771, 0.5
        %v1038 = vmul.f32 %v842, 0.5
        %v1039 = vmul.f32 %v844, 0.5
        %v1040 = vmul.f32 %v915, 0.5
        %v1041 = vmul.f32 %v917, 0.5
        %v1042 = vmul.f32 %v988, 0.5
        %v1043 = vmul.f32 %v990, 0.5
        %v1044 = vmul.f32 %v775, 0.5
        %v1045 = vmul.f32 %v777, 0.5
        %v1046 = vmul.f32 %v848, 0.5
        %v1047 = vmul.f32 %v850, 0.5
        %v1048 = vmul.f32 %v921, 0.5
        %v1049 = vmul.f32 %v923, 0.5
        %v1050 = vmul.f32 %v994, 0.5
        %v1051 = vmul.f32 %v996, 0.5
        %v1052 = vmul.f32 %v779, 0.5
        %v1053 = vmul.f32 %v781, 0.5
        %v1054 = vmul.f32 %v852, 0.5
        %v1055 = vmul.f32 %v854, 0.5
        %v1056 = vmul.f32 %v925, 0.5
        %v1057 = vmul.f32 %v927, 0.5
        %v1058 = vmul.f32 %v998, 0.5
        %v1059 = vmul.f32 %v1000, 0.5
        %v1060 = vmul.f32 %v785, 0.5
        %v1061 = vmul.f32 %v787, 0.5
        %v1062 = vmul.f32 %v858, 0.5
        %v1063 = vmul.f32 %v860, 0.5
        %v1064 = vmul.f32 %v931, 0.5
        %v1065 = vmul.f32 %v933, 0.5
        %v1066 = vmul.f32 %v1004, 0.5
        %v1067 = vmul.f32 %v1006, 0.5
        %v1068 = vmul.f32 %v789, 0.5
        %v1069 = vmul.f32 %v791, 0.5
        %v1070 = vmul.f32 %v862, 0.5
        %v1071 = vmul.f32 %v864, 0.5
        %v1072 = vmul.f32 %v935, 0.5
        %v1073 = vmul.f32 %v937, 0.5
        %v1074 = vmul.f32 %v1008, 0.5
        %v1075 = vmul.f32 %v1010, 0.5
        %v1076 = vmul.f32 %v755, 0.044715
        %v1077 = vmul.f32 %v757, 0.044715
        %v1078 = vmul.f32 %v828, 0.044715
        %v1079 = vmul.f32 %v830, 0.044715
        %v1080 = vmul.f32 %v901, 0.044715
        %v1081 = vmul.f32 %v903, 0.044715
        %v1082 = vmul.f32 %v974, 0.044715
        %v1083 = vmul.f32 %v976, 0.044715
        %v1084 = vmul.f32 %v759, 0.044715
        %v1085 = vmul.f32 %v761, 0.044715
        %v1086 = vmul.f32 %v832, 0.044715
        %v1087 = vmul.f32 %v834, 0.044715
        %v1088 = vmul.f32 %v905, 0.044715
        %v1089 = vmul.f32 %v907, 0.044715
        %v1090 = vmul.f32 %v978, 0.044715
        %v1091 = vmul.f32 %v980, 0.044715
        %v1092 = vmul.f32 %v765, 0.044715
        %v1093 = vmul.f32 %v767, 0.044715
        %v1094 = vmul.f32 %v838, 0.044715
        %v1095 = vmul.f32 %v840, 0.044715
        %v1096 = vmul.f32 %v911, 0.044715
        %v1097 = vmul.f32 %v913, 0.044715
        %v1098 = vmul.f32 %v984, 0.044715
        %v1099 = vmul.f32 %v986, 0.044715
        %v1100 = vmul.f32 %v769, 0.044715
        %v1101 = vmul.f32 %v771, 0.044715
        %v1102 = vmul.f32 %v842, 0.044715
        %v1103 = vmul.f32 %v844, 0.044715
        %v1104 = vmul.f32 %v915, 0.044715
        %v1105 = vmul.f32 %v917, 0.044715
        %v1106 = vmul.f32 %v988, 0.044715
        %v1107 = vmul.f32 %v990, 0.044715
        %v1108 = vmul.f32 %v775, 0.044715
        %v1109 = vmul.f32 %v777, 0.044715
        %v1110 = vmul.f32 %v848, 0.044715
        %v1111 = vmul.f32 %v850, 0.044715
        %v1112 = vmul.f32 %v921, 0.044715
        %v1113 = vmul.f32 %v923, 0.044715
        %v1114 = vmul.f32 %v994, 0.044715
        %v1115 = vmul.f32 %v996, 0.044715
        %v1116 = vmul.f32 %v779, 0.044715
        %v1117 = vmul.f32 %v781, 0.044715
        %v1118 = vmul.f32 %v852, 0.044715
        %v1119 = vmul.f32 %v854, 0.044715
        %v1120 = vmul.f32 %v925, 0.044715
        %v1121 = vmul.f32 %v927, 0.044715
        %v1122 = vmul.f32 %v998, 0.044715
        %v1123 = vmul.f32 %v1000, 0.044715
        %v1124 = vmul.f32 %v785, 0.044715
        %v1125 = vmul.f32 %v787, 0.044715
        %v1126 = vmul.f32 %v858, 0.044715
        %v1127 = vmul.f32 %v860, 0.044715
        %v1128 = vmul.f32 %v931, 0.044715
        %v1129 = vmul.f32 %v933, 0.044715
        %v1130 = vmul.f32 %v1004, 0.044715
        %v1131 = vmul.f32 %v1006, 0.044715
        %v1132 = vmul.f32 %v789, 0.044715
        %v1133 = vmul.f32 %v791, 0.044715
        %v1134 = vmul.f32 %v862, 0.044715
        %v1135 = vmul.f32 %v864, 0.044715
        %v1136 = vmul.f32 %v935, 0.044715
        %v1137 = vmul.f32 %v937, 0.044715
        %v1138 = vmul.f32 %v1008, 0.044715
        %v1139 = vmul.f32 %v1010, 0.044715
        %v1140 = vmul.f32 %v1076, %v755
        %v1141 = vmul.f32 %v1077, %v757
        %v1142 = vmul.f32 %v1078, %v828
        %v1143 = vmul.f32 %v1079, %v830
        %v1144 = vmul.f32 %v1080, %v901
        %v1145 = vmul.f32 %v1081, %v903
        %v1146 = vmul.f32 %v1082, %v974
        %v1147 = vmul.f32 %v1083, %v976
        %v1148 = vmul.f32 %v1084, %v759
        %v1149 = vmul.f32 %v1085, %v761
        %v1150 = vmul.f32 %v1086, %v832
        %v1151 = vmul.f32 %v1087, %v834
        %v1152 = vmul.f32 %v1088, %v905
        %v1153 = vmul.f32 %v1089, %v907
        %v1154 = vmul.f32 %v1090, %v978
        %v1155 = vmul.f32 %v1091, %v980
        %v1156 = vmul.f32 %v1092, %v765
        %v1157 = vmul.f32 %v1093, %v767
        %v1158 = vmul.f32 %v1094, %v838
        %v1159 = vmul.f32 %v1095, %v840
        %v1160 = vmul.f32 %v1096, %v911
        %v1161 = vmul.f32 %v1097, %v913
        %v1162 = vmul.f32 %v1098, %v984
        %v1163 = vmul.f32 %v1099, %v986
        %v1164 = vmul.f32 %v1100, %v769
        %v1165 = vmul.f32 %v1101, %v771
        %v1166 = vmul.f32 %v1102, %v842
        %v1167 = vmul.f32 %v1103, %v844
        %v1168 = vmul.f32 %v1104, %v915
        %v1169 = vmul.f32 %v1105, %v917
        %v1170 = vmul.f32 %v1106, %v988
        %v1171 = vmul.f32 %v1107, %v990
        %v1172 = vmul.f32 %v1108, %v775
        %v1173 = vmul.f32 %v1109, %v777
        %v1174 = vmul.f32 %v1110, %v848
        %v1175 = vmul.f32 %v1111, %v850
        %v1176 = vmul.f32 %v1112, %v921
        %v1177 = vmul.f32 %v1113, %v923
        %v1178 = vmul.f32 %v1114, %v994
        %v1179 = vmul.f32 %v1115, %v996
        %v1180 = vmul.f32 %v1116, %v779
        %v1181 = vmul.f32 %v1117, %v781
        %v1182 = vmul.f32 %v1118, %v852
        %v1183 = vmul.f32 %v1119, %v854
        %v1184 = vmul.f32 %v1120, %v925
        %v1185 = vmul.f32 %v1121, %v927
        %v1186 = vmul.f32 %v1122, %v998
        %v1187 = vmul.f32 %v1123, %v1000
        %v1188 = vmul.f32 %v1124, %v785
        %v1189 = vmul.f32 %v1125, %v787
        %v1190 = vmul.f32 %v1126, %v858
        %v1191 = vmul.f32 %v1127, %v860
        %v1192 = vmul.f32 %v1128, %v931
        %v1193 = vmul.f32 %v1129, %v933
        %v1194 = vmul.f32 %v1130, %v1004
        %v1195 = vmul.f32 %v1131, %v1006
        %v1196 = vmul.f32 %v1132, %v789
        %v1197 = vmul.f32 %v1133, %v791
        %v1198 = vmul.f32 %v1134, %v862
        %v1199 = vmul.f32 %v1135, %v864
        %v1200 = vmul.f32 %v1136, %v935
        %v1201 = vmul.f32 %v1137, %v937
        %v1202 = vmul.f32 %v1138, %v1008
        %v1203 = vmul.f32 %v1139, %v1010
        %v1204 = vmul.f32 %v1140, %v755
        %v1205 = vmul.f32 %v1141, %v757
        %v1206 = vmul.f32 %v1142, %v828
        %v1207 = vmul.f32 %v1143, %v830
        %v1208 = vmul.f32 %v1144, %v901
        %v1209 = vmul.f32 %v1145, %v903
        %v1210 = vmul.f32 %v1146, %v974
        %v1211 = vmul.f32 %v1147, %v976
        %v1212 = vmul.f32 %v1148, %v759
        %v1213 = vmul.f32 %v1149, %v761
        %v1214 = vmul.f32 %v1150, %v832
        %v1215 = vmul.f32 %v1151, %v834
        %v1216 = vmul.f32 %v1152, %v905
        %v1217 = vmul.f32 %v1153, %v907
        %v1218 = vmul.f32 %v1154, %v978
        %v1219 = vmul.f32 %v1155, %v980
        %v1220 = vmul.f32 %v1156, %v765
        %v1221 = vmul.f32 %v1157, %v767
        %v1222 = vmul.f32 %v1158, %v838
        %v1223 = vmul.f32 %v1159, %v840
        %v1224 = vmul.f32 %v1160, %v911
        %v1225 = vmul.f32 %v1161, %v913
        %v1226 = vmul.f32 %v1162, %v984
        %v1227 = vmul.f32 %v1163, %v986
        %v1228 = vmul.f32 %v1164, %v769
        %v1229 = vmul.f32 %v1165, %v771
        %v1230 = vmul.f32 %v1166, %v842
        %v1231 = vmul.f32 %v1167, %v844
        %v1232 = vmul.f32 %v1168, %v915
        %v1233 = vmul.f32 %v1169, %v917
        %v1234 = vmul.f32 %v1170, %v988
        %v1235 = vmul.f32 %v1171, %v990
        %v1236 = vmul.f32 %v1172, %v775
        %v1237 = vmul.f32 %v1173, %v777
        %v1238 = vmul.f32 %v1174, %v848
        %v1239 = vmul.f32 %v1175, %v850
        %v1240 = vmul.f32 %v1176, %v921
        %v1241 = vmul.f32 %v1177, %v923
        %v1242 = vmul.f32 %v1178, %v994
        %v1243 = vmul.f32 %v1179, %v996
        %v1244 = vmul.f32 %v1180, %v779
        %v1245 = vmul.f32 %v1181, %v781
        %v1246 = vmul.f32 %v1182, %v852
        %v1247 = vmul.f32 %v1183, %v854
        %v1248 = vmul.f32 %v1184, %v925
        %v1249 = vmul.f32 %v1185, %v927
        %v1250 = vmul.f32 %v1186, %v998
        %v1251 = vmul.f32 %v1187, %v1000
        %v1252 = vmul.f32 %v1188, %v785
        %v1253 = vmul.f32 %v1189, %v787
        %v1254 = vmul.f32 %v1190, %v858
        %v1255 = vmul.f32 %v1191, %v860
        %v1256 = vmul.f32 %v1192, %v931
        %v1257 = vmul.f32 %v1193, %v933
        %v1258 = vmul.f32 %v1194, %v1004
        %v1259 = vmul.f32 %v1195, %v1006
        %v1260 = vmul.f32 %v1196, %v789
        %v1261 = vmul.f32 %v1197, %v791
        %v1262 = vmul.f32 %v1198, %v862
        %v1263 = vmul.f32 %v1199, %v864
        %v1264 = vmul.f32 %v1200, %v935
        %v1265 = vmul.f32 %v1201, %v937
        %v1266 = vmul.f32 %v1202, %v1008
        %v1267 = vmul.f32 %v1203, %v1010
        %v1268 = vadd.f32 %v755, %v1204
        %v1269 = vadd.f32 %v757, %v1205
        %v1270 = vadd.f32 %v828, %v1206
        %v1271 = vadd.f32 %v830, %v1207
        %v1272 = vadd.f32 %v901, %v1208
        %v1273 = vadd.f32 %v903, %v1209
        %v1274 = vadd.f32 %v974, %v1210
        %v1275 = vadd.f32 %v976, %v1211
        %v1276 = vadd.f32 %v759, %v1212
        %v1277 = vadd.f32 %v761, %v1213
        %v1278 = vadd.f32 %v832, %v1214
        %v1279 = vadd.f32 %v834, %v1215
        %v1280 = vadd.f32 %v905, %v1216
        %v1281 = vadd.f32 %v907, %v1217
        %v1282 = vadd.f32 %v978, %v1218
        %v1283 = vadd.f32 %v980, %v1219
        %v1284 = vadd.f32 %v765, %v1220
        %v1285 = vadd.f32 %v767, %v1221
        %v1286 = vadd.f32 %v838, %v1222
        %v1287 = vadd.f32 %v840, %v1223
        %v1288 = vadd.f32 %v911, %v1224
        %v1289 = vadd.f32 %v913, %v1225
        %v1290 = vadd.f32 %v984, %v1226
        %v1291 = vadd.f32 %v986, %v1227
        %v1292 = vadd.f32 %v769, %v1228
        %v1293 = vadd.f32 %v771, %v1229
        %v1294 = vadd.f32 %v842, %v1230
        %v1295 = vadd.f32 %v844, %v1231
        %v1296 = vadd.f32 %v915, %v1232
        %v1297 = vadd.f32 %v917, %v1233
        %v1298 = vadd.f32 %v988, %v1234
        %v1299 = vadd.f32 %v990, %v1235
        %v1300 = vadd.f32 %v775, %v1236
        %v1301 = vadd.f32 %v777, %v1237
        %v1302 = vadd.f32 %v848, %v1238
        %v1303 = vadd.f32 %v850, %v1239
        %v1304 = vadd.f32 %v921, %v1240
        %v1305 = vadd.f32 %v923, %v1241
        %v1306 = vadd.f32 %v994, %v1242
        %v1307 = vadd.f32 %v996, %v1243
        %v1308 = vadd.f32 %v779, %v1244
        %v1309 = vadd.f32 %v781, %v1245
        %v1310 = vadd.f32 %v852, %v1246
        %v1311 = vadd.f32 %v854, %v1247
        %v1312 = vadd.f32 %v925, %v1248
        %v1313 = vadd.f32 %v927, %v1249
        %v1314 = vadd.f32 %v998, %v1250
        %v1315 = vadd.f32 %v1000, %v1251
        %v1316 = vadd.f32 %v785, %v1252
        %v1317 = vadd.f32 %v787, %v1253
        %v1318 = vadd.f32 %v858, %v1254
        %v1319 = vadd.f32 %v860, %v1255
        %v1320 = vadd.f32 %v931, %v1256
        %v1321 = vadd.f32 %v933, %v1257
        %v1322 = vadd.f32 %v1004, %v1258
        %v1323 = vadd.f32 %v1006, %v1259
        %v1324 = vadd.f32 %v789, %v1260
        %v1325 = vadd.f32 %v791, %v1261
        %v1326 = vadd.f32 %v862, %v1262
        %v1327 = vadd.f32 %v864, %v1263
        %v1328 = vadd.f32 %v935, %v1264
        %v1329 = vadd.f32 %v937, %v1265
        %v1330 = vadd.f32 %v1008, %v1266
        %v1331 = vadd.f32 %v1010, %v1267
        %v1332 = vmul.f32 %v1268, 0.7978846
        %v1333 = vmul.f32 %v1269, 0.7978846
        %v1334 = vmul.f32 %v1270, 0.7978846
        %v1335 = vmul.f32 %v1271, 0.7978846
        %v1336 = vmul.f32 %v1272, 0.7978846
        %v1337 = vmul.f32 %v1273, 0.7978846
        %v1338 = vmul.f32 %v1274, 0.7978846
        %v1339 = vmul.f32 %v1275, 0.7978846
        %v1340 = vmul.f32 %v1276, 0.7978846
        %v1341 = vmul.f32 %v1277, 0.7978846
        %v1342 = vmul.f32 %v1278, 0.7978846
        %v1343 = vmul.f32 %v1279, 0.7978846
        %v1344 = vmul.f32 %v1280, 0.7978846
        %v1345 = vmul.f32 %v1281, 0.7978846
        %v1346 = vmul.f32 %v1282, 0.7978846
        %v1347 = vmul.f32 %v1283, 0.7978846
        %v1348 = vmul.f32 %v1284, 0.7978846
        %v1349 = vmul.f32 %v1285, 0.7978846
        %v1350 = vmul.f32 %v1286, 0.7978846
        %v1351 = vmul.f32 %v1287, 0.7978846
        %v1352 = vmul.f32 %v1288, 0.7978846
        %v1353 = vmul.f32 %v1289, 0.7978846
        %v1354 = vmul.f32 %v1290, 0.7978846
        %v1355 = vmul.f32 %v1291, 0.7978846
        %v1356 = vmul.f32 %v1292, 0.7978846
        %v1357 = vmul.f32 %v1293, 0.7978846
        %v1358 = vmul.f32 %v1294, 0.7978846
        %v1359 = vmul.f32 %v1295, 0.7978846
        %v1360 = vmul.f32 %v1296, 0.7978846
        %v1361 = vmul.f32 %v1297, 0.7978846
        %v1362 = vmul.f32 %v1298, 0.7978846
        %v1363 = vmul.f32 %v1299, 0.7978846
        %v1364 = vmul.f32 %v1300, 0.7978846
        %v1365 = vmul.f32 %v1301, 0.7978846
        %v1366 = vmul.f32 %v1302, 0.7978846
        %v1367 = vmul.f32 %v1303, 0.7978846
        %v1368 = vmul.f32 %v1304, 0.7978846
        %v1369 = vmul.f32 %v1305, 0.7978846
        %v1370 = vmul.f32 %v1306, 0.7978846
        %v1371 = vmul.f32 %v1307, 0.7978846
        %v1372 = vmul.f32 %v1308, 0.7978846
        %v1373 = vmul.f32 %v1309, 0.7978846
        %v1374 = vmul.f32 %v1310, 0.7978846
        %v1375 = vmul.f32 %v1311, 0.7978846
        %v1376 = vmul.f32 %v1312, 0.7978846
        %v1377 = vmul.f32 %v1313, 0.7978846
        %v1378 = vmul.f32 %v1314, 0.7978846
        %v1379 = vmul.f32 %v1315, 0.7978846
        %v1380 = vmul.f32 %v1316, 0.7978846
        %v1381 = vmul.f32 %v1317, 0.7978846
        %v1382 = vmul.f32 %v1318, 0.7978846
        %v1383 = vmul.f32 %v1319, 0.7978846
        %v1384 = vmul.f32 %v1320, 0.7978846
        %v1385 = vmul.f32 %v1321, 0.7978846
        %v1386 = vmul.f32 %v1322, 0.7978846
        %v1387 = vmul.f32 %v1323, 0.7978846
        %v1388 = vmul.f32 %v1324, 0.7978846
        %v1389 = vmul.f32 %v1325, 0.7978846
        %v1390 = vmul.f32 %v1326, 0.7978846
        %v1391 = vmul.f32 %v1327, 0.7978846
        %v1392 = vmul.f32 %v1328, 0.7978846
        %v1393 = vmul.f32 %v1329, 0.7978846
        %v1394 = vmul.f32 %v1330, 0.7978846
        %v1395 = vmul.f32 %v1331, 0.7978846
        %v1396 = vtanh.pop %v1332
        %v1397 = vtanh.pop %v1333
        %v1398 = vtanh.pop %v1334
        %v1399 = vtanh.pop %v1335
        %v1400 = vtanh.pop %v1336
        %v1401 = vtanh.pop %v1337
        %v1402 = vtanh.pop %v1338
        %v1403 = vtanh.pop %v1339
        %v1404 = vtanh.pop %v1340
        %v1405 = vtanh.pop %v1341
        %v1406 = vtanh.pop %v1342
        %v1407 = vtanh.pop %v1343
        %v1408 = vtanh.pop %v1344
        %v1409 = vtanh.pop %v1345
        %v1410 = vtanh.pop %v1346
        %v1411 = vtanh.pop %v1347
        %v1412 = vtanh.pop %v1348
        %v1413 = vtanh.pop %v1349
        %v1414 = vtanh.pop %v1350
        %v1415 = vtanh.pop %v1351
        %v1416 = vtanh.pop %v1352
        %v1417 = vtanh.pop %v1353
        %v1418 = vtanh.pop %v1354
        %v1419 = vtanh.pop %v1355
        %v1420 = vtanh.pop %v1356
        %v1421 = vtanh.pop %v1357
        %v1422 = vtanh.pop %v1358
        %v1423 = vtanh.pop %v1359
        %v1424 = vtanh.pop %v1360
        %v1425 = vtanh.pop %v1361
        %v1426 = vtanh.pop %v1362
        %v1427 = vtanh.pop %v1363
        %v1428 = vtanh.pop %v1364
        %v1429 = vtanh.pop %v1365
        %v1430 = vtanh.pop %v1366
        %v1431 = vtanh.pop %v1367
        %v1432 = vtanh.pop %v1368
        %v1433 = vtanh.pop %v1369
        %v1434 = vtanh.pop %v1370
        %v1435 = vtanh.pop %v1371
        %v1436 = vtanh.pop %v1372
        %v1437 = vtanh.pop %v1373
        %v1438 = vtanh.pop %v1374
        %v1439 = vtanh.pop %v1375
        %v1440 = vtanh.pop %v1376
        %v1441 = vtanh.pop %v1377
        %v1442 = vtanh.pop %v1378
        %v1443 = vtanh.pop %v1379
        %v1444 = vtanh.pop %v1380
        %v1445 = vtanh.pop %v1381
        %v1446 = vtanh.pop %v1382
        %v1447 = vtanh.pop %v1383
        %v1448 = vtanh.pop %v1384
        %v1449 = vtanh.pop %v1385
        %v1450 = vtanh.pop %v1386
        %v1451 = vtanh.pop %v1387
        %v1452 = vtanh.pop %v1388
        %v1453 = vtanh.pop %v1389
        %v1454 = vtanh.pop %v1390
        %v1455 = vtanh.pop %v1391
        %v1456 = vtanh.pop %v1392
        %v1457 = vtanh.pop %v1393
        %v1458 = vtanh.pop %v1394
        %v1459 = vtanh.pop %v1395
        %v1460 = vadd.f32 %v1396, 1.0
        %v1461 = vadd.f32 %v1397, 1.0
        %v1462 = vadd.f32 %v1398, 1.0
        %v1463 = vadd.f32 %v1399, 1.0
        %v1464 = vadd.f32 %v1400, 1.0
        %v1465 = vadd.f32 %v1401, 1.0
        %v1466 = vadd.f32 %v1402, 1.0
        %v1467 = vadd.f32 %v1403, 1.0
        %v1468 = vadd.f32 %v1404, 1.0
        %v1469 = vadd.f32 %v1405, 1.0
        %v1470 = vadd.f32 %v1406, 1.0
        %v1471 = vadd.f32 %v1407, 1.0
        %v1472 = vadd.f32 %v1408, 1.0
        %v1473 = vadd.f32 %v1409, 1.0
        %v1474 = vadd.f32 %v1410, 1.0
        %v1475 = vadd.f32 %v1411, 1.0
        %v1476 = vadd.f32 %v1412, 1.0
        %v1477 = vadd.f32 %v1413, 1.0
        %v1478 = vadd.f32 %v1414, 1.0
        %v1479 = vadd.f32 %v1415, 1.0
        %v1480 = vadd.f32 %v1416, 1.0
        %v1481 = vadd.f32 %v1417, 1.0
        %v1482 = vadd.f32 %v1418, 1.0
        %v1483 = vadd.f32 %v1419, 1.0
        %v1484 = vadd.f32 %v1420, 1.0
        %v1485 = vadd.f32 %v1421, 1.0
        %v1486 = vadd.f32 %v1422, 1.0
        %v1487 = vadd.f32 %v1423, 1.0
        %v1488 = vadd.f32 %v1424, 1.0
        %v1489 = vadd.f32 %v1425, 1.0
        %v1490 = vadd.f32 %v1426, 1.0
        %v1491 = vadd.f32 %v1427, 1.0
        %v1492 = vadd.f32 %v1428, 1.0
        %v1493 = vadd.f32 %v1429, 1.0
        %v1494 = vadd.f32 %v1430, 1.0
        %v1495 = vadd.f32 %v1431, 1.0
        %v1496 = vadd.f32 %v1432, 1.0
        %v1497 = vadd.f32 %v1433, 1.0
        %v1498 = vadd.f32 %v1434, 1.0
        %v1499 = vadd.f32 %v1435, 1.0
        %v1500 = vadd.f32 %v1436, 1.0
        %v1501 = vadd.f32 %v1437, 1.0
        %v1502 = vadd.f32 %v1438, 1.0
        %v1503 = vadd.f32 %v1439, 1.0
        %v1504 = vadd.f32 %v1440, 1.0
        %v1505 = vadd.f32 %v1441, 1.0
        %v1506 = vadd.f32 %v1442, 1.0
        %v1507 = vadd.f32 %v1443, 1.0
        %v1508 = vadd.f32 %v1444, 1.0
        %v1509 = vadd.f32 %v1445, 1.0
        %v1510 = vadd.f32 %v1446, 1.0
        %v1511 = vadd.f32 %v1447, 1.0
        %v1512 = vadd.f32 %v1448, 1.0
        %v1513 = vadd.f32 %v1449, 1.0
        %v1514 = vadd.f32 %v1450, 1.0
        %v1515 = vadd.f32 %v1451, 1.0
        %v1516 = vadd.f32 %v1452, 1.0
        %v1517 = vadd.f32 %v1453, 1.0
        %v1518 = vadd.f32 %v1454, 1.0
        %v1519 = vadd.f32 %v1455, 1.0
        %v1520 = vadd.f32 %v1456, 1.0
        %v1521 = vadd.f32 %v1457, 1.0
        %v1522 = vadd.f32 %v1458, 1.0
        %v1523 = vadd.f32 %v1459, 1.0
        %v1524 = vmul.f32 %v1012, %v1460
        %v1525 = vmul.f32 %v1013, %v1461
        %v1526 = vmul.f32 %v1014, %v1462
        %v1527 = vmul.f32 %v1015, %v1463
        %v1528 = vmul.f32 %v1016, %v1464
        %v1529 = vmul.f32 %v1017, %v1465
        %v1530 = vmul.f32 %v1018, %v1466
        %v1531 = vmul.f32 %v1019, %v1467
        %v1532 = vmul.f32 %v1020, %v1468
        %v1533 = vmul.f32 %v1021, %v1469
        %v1534 = vmul.f32 %v1022, %v1470
        %v1535 = vmul.f32 %v1023, %v1471
        %v1536 = vmul.f32 %v1024, %v1472
        %v1537 = vmul.f32 %v1025, %v1473
        %v1538 = vmul.f32 %v1026, %v1474
        %v1539 = vmul.f32 %v1027, %v1475
        %v1540 = vmul.f32 %v1028, %v1476
        %v1541 = vmul.f32 %v1029, %v1477
        %v1542 = vmul.f32 %v1030, %v1478
        %v1543 = vmul.f32 %v1031, %v1479
        %v1544 = vmul.f32 %v1032, %v1480
        %v1545 = vmul.f32 %v1033, %v1481
        %v1546 = vmul.f32 %v1034, %v1482
        %v1547 = vmul.f32 %v1035, %v1483
        %v1548 = vmul.f32 %v1036, %v1484
        %v1549 = vmul.f32 %v1037, %v1485
        %v1550 = vmul.f32 %v1038, %v1486
        %v1551 = vmul.f32 %v1039, %v1487
        %v1552 = vmul.f32 %v1040, %v1488
        %v1553 = vmul.f32 %v1041, %v1489
        %v1554 = vmul.f32 %v1042, %v1490
        %v1555 = vmul.f32 %v1043, %v1491
        %v1556 = vmul.f32 %v1044, %v1492
        %v1557 = vmul.f32 %v1045, %v1493
        %v1558 = vmul.f32 %v1046, %v1494
        %v1559 = vmul.f32 %v1047, %v1495
        %v1560 = vmul.f32 %v1048, %v1496
        %v1561 = vmul.f32 %v1049, %v1497
        %v1562 = vmul.f32 %v1050, %v1498
        %v1563 = vmul.f32 %v1051, %v1499
        %v1564 = vmul.f32 %v1052, %v1500
        %v1565 = vmul.f32 %v1053, %v1501
        %v1566 = vmul.f32 %v1054, %v1502
        %v1567 = vmul.f32 %v1055, %v1503
        %v1568 = vmul.f32 %v1056, %v1504
        %v1569 = vmul.f32 %v1057, %v1505
        %v1570 = vmul.f32 %v1058, %v1506
        %v1571 = vmul.f32 %v1059, %v1507
        %v1572 = vmul.f32 %v1060, %v1508
        %v1573 = vmul.f32 %v1061, %v1509
        %v1574 = vmul.f32 %v1062, %v1510
        %v1575 = vmul.f32 %v1063, %v1511
        %v1576 = vmul.f32 %v1064, %v1512
        %v1577 = vmul.f32 %v1065, %v1513
        %v1578 = vmul.f32 %v1066, %v1514
        %v1579 = vmul.f32 %v1067, %v1515
        %v1580 = vmul.f32 %v1068, %v1516
        %v1581 = vmul.f32 %v1069, %v1517
        %v1582 = vmul.f32 %v1070, %v1518
        %v1583 = vmul.f32 %v1071, %v1519
        %v1584 = vmul.f32 %v1072, %v1520
        %v1585 = vmul.f32 %v1073, %v1521
        %v1586 = vmul.f32 %v1074, %v1522
        %v1587 = vmul.f32 %v1075, %v1523
        %v1588 = vpack.c.bf16 %v1532, %v1524
        %v1589 = vpack.c.bf16 %v1533, %v1525
        %v1590 = vpack.c.bf16 %v1534, %v1526
        %v1591 = vpack.c.bf16 %v1535, %v1527
        %v1592 = vpack.c.bf16 %v1536, %v1528
        %v1593 = vpack.c.bf16 %v1537, %v1529
        %v1594 = vpack.c.bf16 %v1538, %v1530
        %v1595 = vpack.c.bf16 %v1539, %v1531
        %v1596 = vpack.c.bf16 %v1548, %v1540
        %v1597 = vpack.c.bf16 %v1549, %v1541
        %v1598 = vpack.c.bf16 %v1550, %v1542
        %v1599 = vpack.c.bf16 %v1551, %v1543
        %v1600 = vpack.c.bf16 %v1552, %v1544
        %v1601 = vpack.c.bf16 %v1553, %v1545
        %v1602 = vpack.c.bf16 %v1554, %v1546
        %v1603 = vpack.c.bf16 %v1555, %v1547
        %v1604 = vpack.c.bf16 %v1564, %v1556
        %v1605 = vpack.c.bf16 %v1565, %v1557
        %v1606 = vpack.c.bf16 %v1566, %v1558
        %v1607 = vpack.c.bf16 %v1567, %v1559
        %v1608 = vpack.c.bf16 %v1568, %v1560
        %v1609 = vpack.c.bf16 %v1569, %v1561
        %v1610 = vpack.c.bf16 %v1570, %v1562
        %v1611 = vpack.c.bf16 %v1571, %v1563
        %v1612 = vpack.c.bf16 %v1580, %v1572
        %v1613 = vpack.c.bf16 %v1581, %v1573
        %v1614 = vpack.c.bf16 %v1582, %v1574
        %v1615 = vpack.c.bf16 %v1583, %v1575
        %v1616 = vpack.c.bf16 %v1584, %v1576
        %v1617 = vpack.c.bf16 %v1585, %v1577
        %v1618 = vpack.c.bf16 %v1586, %v1578
        %v1619 = vpack.c.bf16 %v1587, %v1579
        %v1620 = vld [vmem:[#allocation4] sm:$0xff]
        %v1621 = vld [vmem:[#allocation4 + $0x8] sm:$0xff]
        %v1622 = vld [vmem:[#allocation4 + $0x10] sm:$0xff]
        %v1623 = vld [vmem:[#allocation4 + $0x18] sm:$0xff]
        %v1624 = vld [vmem:[#allocation4 + $0x20] sm:$0xff]
        %v1625 = vld [vmem:[#allocation4 + $0x28] sm:$0xff]
        %v1626 = vld [vmem:[#allocation4 + $0x30] sm:$0xff]
        %v1627 = vld [vmem:[#allocation4 + $0x38] sm:$0xff]
        %v1628 = vld [vmem:[#allocation4 + $0x40] sm:$0xff]
        %v1629 = vld [vmem:[#allocation4 + $0x48] sm:$0xff]
        %v1630 = vld [vmem:[#allocation4 + $0x50] sm:$0xff]
        %v1631 = vld [vmem:[#allocation4 + $0x58] sm:$0xff]
        %v1632 = vld [vmem:[#allocation4 + $0x60] sm:$0xff]
        %v1633 = vld [vmem:[#allocation4 + $0x68] sm:$0xff]
        %v1634 = vld [vmem:[#allocation4 + $0x70] sm:$0xff]
        %v1635 = vld [vmem:[#allocation4 + $0x78] sm:$0xff]
        %v1636 = vld [vmem:[#allocation4 + $0x80] sm:$0xff]
        %v1637 = vld [vmem:[#allocation4 + $0x88] sm:$0xff]
        %v1638 = vld [vmem:[#allocation4 + $0x90] sm:$0xff]
        %v1639 = vld [vmem:[#allocation4 + $0x98] sm:$0xff]
        %v1640 = vld [vmem:[#allocation4 + $0xa0] sm:$0xff]
        %v1641 = vld [vmem:[#allocation4 + $0xa8] sm:$0xff]
        %v1642 = vld [vmem:[#allocation4 + $0xb0] sm:$0xff]
        %v1643 = vld [vmem:[#allocation4 + $0xb8] sm:$0xff]
        %v1644 = vld [vmem:[#allocation4 + $0xc0] sm:$0xff]
        %v1645 = vld [vmem:[#allocation4 + $0xc8] sm:$0xff]
        %v1646 = vld [vmem:[#allocation4 + $0xd0] sm:$0xff]
        %v1647 = vld [vmem:[#allocation4 + $0xd8] sm:$0xff]
        %v1648 = vld [vmem:[#allocation4 + $0xe0] sm:$0xff]
        %v1649 = vld [vmem:[#allocation4 + $0xe8] sm:$0xff]
        %v1650 = vld [vmem:[#allocation4 + $0xf0] sm:$0xff]
        %v1651 = vld [vmem:[#allocation4 + $0xf8] sm:$0xff]
        %v1652 = vld [vmem:[#allocation4 + $0x100] sm:$0xff]
        %v1653 = vld [vmem:[#allocation4 + $0x108] sm:$0xff]
        %v1654 = vld [vmem:[#allocation4 + $0x110] sm:$0xff]
        %v1655 = vld [vmem:[#allocation4 + $0x118] sm:$0xff]
        %v1656 = vld [vmem:[#allocation4 + $0x120] sm:$0xff]
        %v1657 = vld [vmem:[#allocation4 + $0x128] sm:$0xff]
        %v1658 = vld [vmem:[#allocation4 + $0x130] sm:$0xff]
        %v1659 = vld [vmem:[#allocation4 + $0x138] sm:$0xff]
        %v1660 = vld [vmem:[#allocation4 + $0x140] sm:$0xff]
        %v1661 = vld [vmem:[#allocation4 + $0x148] sm:$0xff]
        %v1662 = vld [vmem:[#allocation4 + $0x150] sm:$0xff]
        %v1663 = vld [vmem:[#allocation4 + $0x158] sm:$0xff]
        %v1664 = vld [vmem:[#allocation4 + $0x160] sm:$0xff]
        %v1665 = vld [vmem:[#allocation4 + $0x168] sm:$0xff]
        %v1666 = vld [vmem:[#allocation4 + $0x170] sm:$0xff]
        %v1667 = vld [vmem:[#allocation4 + $0x178] sm:$0xff]
        %v1668 = vld [vmem:[#allocation4 + $0x180] sm:$0xff]
        %v1669 = vld [vmem:[#allocation4 + $0x188] sm:$0xff]
        %v1670 = vld [vmem:[#allocation4 + $0x190] sm:$0xff]
        %v1671 = vld [vmem:[#allocation4 + $0x198] sm:$0xff]
        %v1672 = vld [vmem:[#allocation4 + $0x1a0] sm:$0xff]
        %v1673 = vld [vmem:[#allocation4 + $0x1a8] sm:$0xff]
        %v1674 = vld [vmem:[#allocation4 + $0x1b0] sm:$0xff]
        %v1675 = vld [vmem:[#allocation4 + $0x1b8] sm:$0xff]
        %v1676 = vld [vmem:[#allocation4 + $0x1c0] sm:$0xff]
        %v1677 = vld [vmem:[#allocation4 + $0x1c8] sm:$0xff]
        %v1678 = vld [vmem:[#allocation4 + $0x1d0] sm:$0xff]
        %v1679 = vld [vmem:[#allocation4 + $0x1d8] sm:$0xff]
        %v1680 = vld [vmem:[#allocation4 + $0x1e0] sm:$0xff]
        %v1681 = vld [vmem:[#allocation4 + $0x1e8] sm:$0xff]
        %v1682 = vld [vmem:[#allocation4 + $0x1f0] sm:$0xff]
        %v1683 = vld [vmem:[#allocation4 + $0x1f8] sm:$0xff]
        %v1684 = vld [vmem:[#allocation4 + $0x200] sm:$0xff]
        %v1685 = vld [vmem:[#allocation4 + $0x208] sm:$0xff]
        %v1686 = vld [vmem:[#allocation4 + $0x210] sm:$0xff]
        %v1687 = vld [vmem:[#allocation4 + $0x218] sm:$0xff]
        %v1688 = vld [vmem:[#allocation4 + $0x220] sm:$0xff]
        %v1689 = vld [vmem:[#allocation4 + $0x228] sm:$0xff]
        %v1690 = vld [vmem:[#allocation4 + $0x230] sm:$0xff]
        %v1691 = vld [vmem:[#allocation4 + $0x238] sm:$0xff]
        %v1692 = vld [vmem:[#allocation4 + $0x240] sm:$0xff]
        %v1693 = vld [vmem:[#allocation4 + $0x248] sm:$0xff]
        %v1694 = vld [vmem:[#allocation4 + $0x250] sm:$0xff]
        %v1695 = vld [vmem:[#allocation4 + $0x258] sm:$0xff]
        %v1696 = vld [vmem:[#allocation4 + $0x260] sm:$0xff]
        %v1697 = vld [vmem:[#allocation4 + $0x268] sm:$0xff]
        %v1698 = vld [vmem:[#allocation4 + $0x270] sm:$0xff]
        %v1699 = vld [vmem:[#allocation4 + $0x278] sm:$0xff]
        %v1700 = vld [vmem:[#allocation4 + $0x280] sm:$0xff]
        %v1701 = vld [vmem:[#allocation4 + $0x288] sm:$0xff]
        %v1702 = vld [vmem:[#allocation4 + $0x290] sm:$0xff]
        %v1703 = vld [vmem:[#allocation4 + $0x298] sm:$0xff]
        %v1704 = vld [vmem:[#allocation4 + $0x2a0] sm:$0xff]
        %v1705 = vld [vmem:[#allocation4 + $0x2a8] sm:$0xff]
        %v1706 = vld [vmem:[#allocation4 + $0x2b0] sm:$0xff]
        %v1707 = vld [vmem:[#allocation4 + $0x2b8] sm:$0xff]
        %v1708 = vld [vmem:[#allocation4 + $0x2c0] sm:$0xff]
        %v1709 = vld [vmem:[#allocation4 + $0x2c8] sm:$0xff]
        %v1710 = vld [vmem:[#allocation4 + $0x2d0] sm:$0xff]
        %v1711 = vld [vmem:[#allocation4 + $0x2d8] sm:$0xff]
        %v1712 = vld [vmem:[#allocation4 + $0x2e0] sm:$0xff]
        %v1713 = vld [vmem:[#allocation4 + $0x2e8] sm:$0xff]
        %v1714 = vld [vmem:[#allocation4 + $0x2f0] sm:$0xff]
        %v1715 = vld [vmem:[#allocation4 + $0x2f8] sm:$0xff]
        %v1716 = vld [vmem:[#allocation4 + $0x300] sm:$0xff]
        %v1717 = vld [vmem:[#allocation4 + $0x308] sm:$0xff]
        %v1718 = vld [vmem:[#allocation4 + $0x310] sm:$0xff]
        %v1719 = vld [vmem:[#allocation4 + $0x318] sm:$0xff]
        %v1720 = vld [vmem:[#allocation4 + $0x320] sm:$0xff]
        %v1721 = vld [vmem:[#allocation4 + $0x328] sm:$0xff]
        %v1722 = vld [vmem:[#allocation4 + $0x330] sm:$0xff]
        %v1723 = vld [vmem:[#allocation4 + $0x338] sm:$0xff]
        %v1724 = vld [vmem:[#allocation4 + $0x340] sm:$0xff]
        %v1725 = vld [vmem:[#allocation4 + $0x348] sm:$0xff]
        %v1726 = vld [vmem:[#allocation4 + $0x350] sm:$0xff]
        %v1727 = vld [vmem:[#allocation4 + $0x358] sm:$0xff]
        %v1728 = vld [vmem:[#allocation4 + $0x360] sm:$0xff]
        %v1729 = vld [vmem:[#allocation4 + $0x368] sm:$0xff]
        %v1730 = vld [vmem:[#allocation4 + $0x370] sm:$0xff]
        %v1731 = vld [vmem:[#allocation4 + $0x378] sm:$0xff]
        %v1732 = vld [vmem:[#allocation4 + $0x380] sm:$0xff]
        %v1733 = vld [vmem:[#allocation4 + $0x388] sm:$0xff]
        %v1734 = vld [vmem:[#allocation4 + $0x390] sm:$0xff]
        %v1735 = vld [vmem:[#allocation4 + $0x398] sm:$0xff]
        %v1736 = vld [vmem:[#allocation4 + $0x3a0] sm:$0xff]
        %v1737 = vld [vmem:[#allocation4 + $0x3a8] sm:$0xff]
        %v1738 = vld [vmem:[#allocation4 + $0x3b0] sm:$0xff]
        %v1739 = vld [vmem:[#allocation4 + $0x3b8] sm:$0xff]
        %v1740 = vld [vmem:[#allocation4 + $0x3c0] sm:$0xff]
        %v1741 = vld [vmem:[#allocation4 + $0x3c8] sm:$0xff]
        %v1742 = vld [vmem:[#allocation4 + $0x3d0] sm:$0xff]
        %v1743 = vld [vmem:[#allocation4 + $0x3d8] sm:$0xff]
        %v1744 = vld [vmem:[#allocation4 + $0x3e0] sm:$0xff]
        %v1745 = vld [vmem:[#allocation4 + $0x3e8] sm:$0xff]
        %v1746 = vld [vmem:[#allocation4 + $0x3f0] sm:$0xff]
        %v1747 = vld [vmem:[#allocation4 + $0x3f8] sm:$0xff]
        %v1748 = vld [vmem:[%s4] sm:$0x3]
        %v1750 = vlaneseq
        %v1751 = vshrl.u32 %v1750, 7
        %v1752 = vsub.s32 0, %v1751
        %v1753 = vrot.slane %v1748, %v1752
        %v1754 = vlaneseq
        %v1755 = vshrl.u32 %v1754, 7
        %v1756 = vsub.s32 1, %v1755
        %v1757 = vrot.slane %v1748, %v1756
        %v1888 = vunpack.c.l.b16 %v1620
        %v1889 = vunpack.c.h.b16 %v1620
        %v1890 = vunpack.c.l.b16 %v1621
        %v1891 = vunpack.c.h.b16 %v1621
        %v1892 = vunpack.c.l.b16 %v1622
        %v1893 = vunpack.c.h.b16 %v1622
        %v1894 = vunpack.c.l.b16 %v1623
        %v1895 = vunpack.c.h.b16 %v1623
        %v1896 = vunpack.c.l.b16 %v1624
        %v1897 = vunpack.c.h.b16 %v1624
        %v1898 = vunpack.c.l.b16 %v1625
        %v1899 = vunpack.c.h.b16 %v1625
        %v1900 = vunpack.c.l.b16 %v1626
        %v1901 = vunpack.c.h.b16 %v1626
        %v1902 = vunpack.c.l.b16 %v1627
        %v1903 = vunpack.c.h.b16 %v1627
        %v1904 = vunpack.c.l.b16 %v1628
        %v1905 = vunpack.c.h.b16 %v1628
        %v1906 = vunpack.c.l.b16 %v1629
        %v1907 = vunpack.c.h.b16 %v1629
        %v1908 = vunpack.c.l.b16 %v1630
        %v1909 = vunpack.c.h.b16 %v1630
        %v1910 = vunpack.c.l.b16 %v1631
        %v1911 = vunpack.c.h.b16 %v1631
        %v1912 = vunpack.c.l.b16 %v1632
        %v1913 = vunpack.c.h.b16 %v1632
        %v1914 = vunpack.c.l.b16 %v1633
        %v1915 = vunpack.c.h.b16 %v1633
        %v1916 = vunpack.c.l.b16 %v1634
        %v1917 = vunpack.c.h.b16 %v1634
        %v1918 = vunpack.c.l.b16 %v1635
        %v1919 = vunpack.c.h.b16 %v1635
        %v1920 = vunpack.c.l.b16 %v1636
        %v1921 = vunpack.c.h.b16 %v1636
        %v1922 = vunpack.c.l.b16 %v1637
        %v1923 = vunpack.c.h.b16 %v1637
        %v1924 = vunpack.c.l.b16 %v1638
        %v1925 = vunpack.c.h.b16 %v1638
        %v1926 = vunpack.c.l.b16 %v1639
        %v1927 = vunpack.c.h.b16 %v1639
        %v1928 = vunpack.c.l.b16 %v1640
        %v1929 = vunpack.c.h.b16 %v1640
        %v1930 = vunpack.c.l.b16 %v1641
        %v1931 = vunpack.c.h.b16 %v1641
        %v1932 = vunpack.c.l.b16 %v1642
        %v1933 = vunpack.c.h.b16 %v1642
        %v1934 = vunpack.c.l.b16 %v1643
        %v1935 = vunpack.c.h.b16 %v1643
        %v1936 = vunpack.c.l.b16 %v1644
        %v1937 = vunpack.c.h.b16 %v1644
        %v1938 = vunpack.c.l.b16 %v1645
        %v1939 = vunpack.c.h.b16 %v1645
        %v1940 = vunpack.c.l.b16 %v1646
        %v1941 = vunpack.c.h.b16 %v1646
        %v1942 = vunpack.c.l.b16 %v1647
        %v1943 = vunpack.c.h.b16 %v1647
        %v1944 = vunpack.c.l.b16 %v1648
        %v1945 = vunpack.c.h.b16 %v1648
        %v1946 = vunpack.c.l.b16 %v1649
        %v1947 = vunpack.c.h.b16 %v1649
        %v1948 = vunpack.c.l.b16 %v1650
        %v1949 = vunpack.c.h.b16 %v1650
        %v1950 = vunpack.c.l.b16 %v1651
        %v1951 = vunpack.c.h.b16 %v1651
        %v1952 = vunpack.c.l.b16 %v1652
        %v1953 = vunpack.c.h.b16 %v1652
        %v1954 = vunpack.c.l.b16 %v1653
        %v1955 = vunpack.c.h.b16 %v1653
        %v1956 = vunpack.c.l.b16 %v1654
        %v1957 = vunpack.c.h.b16 %v1654
        %v1958 = vunpack.c.l.b16 %v1655
        %v1959 = vunpack.c.h.b16 %v1655
        %v1960 = vunpack.c.l.b16 %v1656
        %v1961 = vunpack.c.h.b16 %v1656
        %v1962 = vunpack.c.l.b16 %v1657
        %v1963 = vunpack.c.h.b16 %v1657
        %v1964 = vunpack.c.l.b16 %v1658
        %v1965 = vunpack.c.h.b16 %v1658
        %v1966 = vunpack.c.l.b16 %v1659
        %v1967 = vunpack.c.h.b16 %v1659
        %v1968 = vunpack.c.l.b16 %v1660
        %v1969 = vunpack.c.h.b16 %v1660
        %v1970 = vunpack.c.l.b16 %v1661
        %v1971 = vunpack.c.h.b16 %v1661
        %v1972 = vunpack.c.l.b16 %v1662
        %v1973 = vunpack.c.h.b16 %v1662
        %v1974 = vunpack.c.l.b16 %v1663
        %v1975 = vunpack.c.h.b16 %v1663
        %v1976 = vunpack.c.l.b16 %v1664
        %v1977 = vunpack.c.h.b16 %v1664
        %v1978 = vunpack.c.l.b16 %v1665
        %v1979 = vunpack.c.h.b16 %v1665
        %v1980 = vunpack.c.l.b16 %v1666
        %v1981 = vunpack.c.h.b16 %v1666
        %v1982 = vunpack.c.l.b16 %v1667
        %v1983 = vunpack.c.h.b16 %v1667
        %v1984 = vunpack.c.l.b16 %v1668
        %v1985 = vunpack.c.h.b16 %v1668
        %v1986 = vunpack.c.l.b16 %v1669
        %v1987 = vunpack.c.h.b16 %v1669
        %v1988 = vunpack.c.l.b16 %v1670
        %v1989 = vunpack.c.h.b16 %v1670
        %v1990 = vunpack.c.l.b16 %v1671
        %v1991 = vunpack.c.h.b16 %v1671
        %v1992 = vunpack.c.l.b16 %v1672
        %v1993 = vunpack.c.h.b16 %v1672
        %v1994 = vunpack.c.l.b16 %v1673
        %v1995 = vunpack.c.h.b16 %v1673
        %v1996 = vunpack.c.l.b16 %v1674
        %v1997 = vunpack.c.h.b16 %v1674
        %v1998 = vunpack.c.l.b16 %v1675
        %v1999 = vunpack.c.h.b16 %v1675
        %v2000 = vunpack.c.l.b16 %v1676
        %v2001 = vunpack.c.h.b16 %v1676
        %v2002 = vunpack.c.l.b16 %v1677
        %v2003 = vunpack.c.h.b16 %v1677
        %v2004 = vunpack.c.l.b16 %v1678
        %v2005 = vunpack.c.h.b16 %v1678
        %v2006 = vunpack.c.l.b16 %v1679
        %v2007 = vunpack.c.h.b16 %v1679
        %v2008 = vunpack.c.l.b16 %v1680
        %v2009 = vunpack.c.h.b16 %v1680
        %v2010 = vunpack.c.l.b16 %v1681
        %v2011 = vunpack.c.h.b16 %v1681
        %v2012 = vunpack.c.l.b16 %v1682
        %v2013 = vunpack.c.h.b16 %v1682
        %v2014 = vunpack.c.l.b16 %v1683
        %v2015 = vunpack.c.h.b16 %v1683
        %v2016 = vunpack.c.l.b16 %v1684
        %v2017 = vunpack.c.h.b16 %v1684
        %v2018 = vunpack.c.l.b16 %v1685
        %v2019 = vunpack.c.h.b16 %v1685
        %v2020 = vunpack.c.l.b16 %v1686
        %v2021 = vunpack.c.h.b16 %v1686
        %v2022 = vunpack.c.l.b16 %v1687
        %v2023 = vunpack.c.h.b16 %v1687
        %v2024 = vunpack.c.l.b16 %v1688
        %v2025 = vunpack.c.h.b16 %v1688
        %v2026 = vunpack.c.l.b16 %v1689
        %v2027 = vunpack.c.h.b16 %v1689
        %v2028 = vunpack.c.l.b16 %v1690
        %v2029 = vunpack.c.h.b16 %v1690
        %v2030 = vunpack.c.l.b16 %v1691
        %v2031 = vunpack.c.h.b16 %v1691
        %v2032 = vunpack.c.l.b16 %v1692
        %v2033 = vunpack.c.h.b16 %v1692
        %v2034 = vunpack.c.l.b16 %v1693
        %v2035 = vunpack.c.h.b16 %v1693
        %v2036 = vunpack.c.l.b16 %v1694
        %v2037 = vunpack.c.h.b16 %v1694
        %v2038 = vunpack.c.l.b16 %v1695
        %v2039 = vunpack.c.h.b16 %v1695
        %v2040 = vunpack.c.l.b16 %v1696
        %v2041 = vunpack.c.h.b16 %v1696
        %v2042 = vunpack.c.l.b16 %v1697
        %v2043 = vunpack.c.h.b16 %v1697
        %v2044 = vunpack.c.l.b16 %v1698
        %v2045 = vunpack.c.h.b16 %v1698
        %v2046 = vunpack.c.l.b16 %v1699
        %v2047 = vunpack.c.h.b16 %v1699
        %v2048 = vunpack.c.l.b16 %v1700
        %v2049 = vunpack.c.h.b16 %v1700
        %v2050 = vunpack.c.l.b16 %v1701
        %v2051 = vunpack.c.h.b16 %v1701
        %v2052 = vunpack.c.l.b16 %v1702
        %v2053 = vunpack.c.h.b16 %v1702
        %v2054 = vunpack.c.l.b16 %v1703
        %v2055 = vunpack.c.h.b16 %v1703
        %v2056 = vunpack.c.l.b16 %v1704
        %v2057 = vunpack.c.h.b16 %v1704
        %v2058 = vunpack.c.l.b16 %v1705
        %v2059 = vunpack.c.h.b16 %v1705
        %v2060 = vunpack.c.l.b16 %v1706
        %v2061 = vunpack.c.h.b16 %v1706
        %v2062 = vunpack.c.l.b16 %v1707
        %v2063 = vunpack.c.h.b16 %v1707
        %v2064 = vunpack.c.l.b16 %v1708
        %v2065 = vunpack.c.h.b16 %v1708
        %v2066 = vunpack.c.l.b16 %v1709
        %v2067 = vunpack.c.h.b16 %v1709
        %v2068 = vunpack.c.l.b16 %v1710
        %v2069 = vunpack.c.h.b16 %v1710
        %v2070 = vunpack.c.l.b16 %v1711
        %v2071 = vunpack.c.h.b16 %v1711
        %v2072 = vunpack.c.l.b16 %v1712
        %v2073 = vunpack.c.h.b16 %v1712
        %v2074 = vunpack.c.l.b16 %v1713
        %v2075 = vunpack.c.h.b16 %v1713
        %v2076 = vunpack.c.l.b16 %v1714
        %v2077 = vunpack.c.h.b16 %v1714
        %v2078 = vunpack.c.l.b16 %v1715
        %v2079 = vunpack.c.h.b16 %v1715
        %v2080 = vunpack.c.l.b16 %v1716
        %v2081 = vunpack.c.h.b16 %v1716
        %v2082 = vunpack.c.l.b16 %v1717
        %v2083 = vunpack.c.h.b16 %v1717
        %v2084 = vunpack.c.l.b16 %v1718
        %v2085 = vunpack.c.h.b16 %v1718
        %v2086 = vunpack.c.l.b16 %v1719
        %v2087 = vunpack.c.h.b16 %v1719
        %v2088 = vunpack.c.l.b16 %v1720
        %v2089 = vunpack.c.h.b16 %v1720
        %v2090 = vunpack.c.l.b16 %v1721
        %v2091 = vunpack.c.h.b16 %v1721
        %v2092 = vunpack.c.l.b16 %v1722
        %v2093 = vunpack.c.h.b16 %v1722
        %v2094 = vunpack.c.l.b16 %v1723
        %v2095 = vunpack.c.h.b16 %v1723
        %v2096 = vunpack.c.l.b16 %v1724
        %v2097 = vunpack.c.h.b16 %v1724
        %v2098 = vunpack.c.l.b16 %v1725
        %v2099 = vunpack.c.h.b16 %v1725
        %v2100 = vunpack.c.l.b16 %v1726
        %v2101 = vunpack.c.h.b16 %v1726
        %v2102 = vunpack.c.l.b16 %v1727
        %v2103 = vunpack.c.h.b16 %v1727
        %v2104 = vunpack.c.l.b16 %v1728
        %v2105 = vunpack.c.h.b16 %v1728
        %v2106 = vunpack.c.l.b16 %v1729
        %v2107 = vunpack.c.h.b16 %v1729
        %v2108 = vunpack.c.l.b16 %v1730
        %v2109 = vunpack.c.h.b16 %v1730
        %v2110 = vunpack.c.l.b16 %v1731
        %v2111 = vunpack.c.h.b16 %v1731
        %v2112 = vunpack.c.l.b16 %v1732
        %v2113 = vunpack.c.h.b16 %v1732
        %v2114 = vunpack.c.l.b16 %v1733
        %v2115 = vunpack.c.h.b16 %v1733
        %v2116 = vunpack.c.l.b16 %v1734
        %v2117 = vunpack.c.h.b16 %v1734
        %v2118 = vunpack.c.l.b16 %v1735
        %v2119 = vunpack.c.h.b16 %v1735
        %v2120 = vunpack.c.l.b16 %v1736
        %v2121 = vunpack.c.h.b16 %v1736
        %v2122 = vunpack.c.l.b16 %v1737
        %v2123 = vunpack.c.h.b16 %v1737
        %v2124 = vunpack.c.l.b16 %v1738
        %v2125 = vunpack.c.h.b16 %v1738
        %v2126 = vunpack.c.l.b16 %v1739
        %v2127 = vunpack.c.h.b16 %v1739
        %v2128 = vunpack.c.l.b16 %v1740
        %v2129 = vunpack.c.h.b16 %v1740
        %v2130 = vunpack.c.l.b16 %v1741
        %v2131 = vunpack.c.h.b16 %v1741
        %v2132 = vunpack.c.l.b16 %v1742
        %v2133 = vunpack.c.h.b16 %v1742
        %v2134 = vunpack.c.l.b16 %v1743
        %v2135 = vunpack.c.h.b16 %v1743
        %v2136 = vunpack.c.l.b16 %v1744
        %v2137 = vunpack.c.h.b16 %v1744
        %v2138 = vunpack.c.l.b16 %v1745
        %v2139 = vunpack.c.h.b16 %v1745
        %v2140 = vunpack.c.l.b16 %v1746
        %v2141 = vunpack.c.h.b16 %v1746
        %v2142 = vunpack.c.l.b16 %v1747
        %v2143 = vunpack.c.h.b16 %v1747
        %v2144 = vpack.c.b16 %v1890, %v1888
        %v2145 = vpack.c.b16 %v1891, %v1889
        %v2146 = vpack.c.b16 %v1894, %v1892
        %v2147 = vpack.c.b16 %v1895, %v1893
        %v2148 = vpack.c.b16 %v1898, %v1896
        %v2149 = vpack.c.b16 %v1899, %v1897
        %v2150 = vpack.c.b16 %v1902, %v1900
        %v2151 = vpack.c.b16 %v1903, %v1901
        %v2152 = vpack.c.b16 %v1906, %v1904
        %v2153 = vpack.c.b16 %v1907, %v1905
        %v2154 = vpack.c.b16 %v1910, %v1908
        %v2155 = vpack.c.b16 %v1911, %v1909
        %v2156 = vpack.c.b16 %v1914, %v1912
        %v2157 = vpack.c.b16 %v1915, %v1913
        %v2158 = vpack.c.b16 %v1918, %v1916
        %v2159 = vpack.c.b16 %v1919, %v1917
        %v2160 = vpack.c.b16 %v1922, %v1920
        %v2161 = vpack.c.b16 %v1923, %v1921
        %v2162 = vpack.c.b16 %v1926, %v1924
        %v2163 = vpack.c.b16 %v1927, %v1925
        %v2164 = vpack.c.b16 %v1930, %v1928
        %v2165 = vpack.c.b16 %v1931, %v1929
        %v2166 = vpack.c.b16 %v1934, %v1932
        %v2167 = vpack.c.b16 %v1935, %v1933
        %v2168 = vpack.c.b16 %v1938, %v1936
        %v2169 = vpack.c.b16 %v1939, %v1937
        %v2170 = vpack.c.b16 %v1942, %v1940
        %v2171 = vpack.c.b16 %v1943, %v1941
        %v2172 = vpack.c.b16 %v1946, %v1944
        %v2173 = vpack.c.b16 %v1947, %v1945
        %v2174 = vpack.c.b16 %v1950, %v1948
        %v2175 = vpack.c.b16 %v1951, %v1949
        %v2176 = vpack.c.b16 %v1954, %v1952
        %v2177 = vpack.c.b16 %v1955, %v1953
        %v2178 = vpack.c.b16 %v1958, %v1956
        %v2179 = vpack.c.b16 %v1959, %v1957
        %v2180 = vpack.c.b16 %v1962, %v1960
        %v2181 = vpack.c.b16 %v1963, %v1961
        %v2182 = vpack.c.b16 %v1966, %v1964
        %v2183 = vpack.c.b16 %v1967, %v1965
        %v2184 = vpack.c.b16 %v1970, %v1968
        %v2185 = vpack.c.b16 %v1971, %v1969
        %v2186 = vpack.c.b16 %v1974, %v1972
        %v2187 = vpack.c.b16 %v1975, %v1973
        %v2188 = vpack.c.b16 %v1978, %v1976
        %v2189 = vpack.c.b16 %v1979, %v1977
        %v2190 = vpack.c.b16 %v1982, %v1980
        %v2191 = vpack.c.b16 %v1983, %v1981
        %v2192 = vpack.c.b16 %v1986, %v1984
        %v2193 = vpack.c.b16 %v1987, %v1985
        %v2194 = vpack.c.b16 %v1990, %v1988
        %v2195 = vpack.c.b16 %v1991, %v1989
        %v2196 = vpack.c.b16 %v1994, %v1992
        %v2197 = vpack.c.b16 %v1995, %v1993
        %v2198 = vpack.c.b16 %v1998, %v1996
        %v2199 = vpack.c.b16 %v1999, %v1997
        %v2200 = vpack.c.b16 %v2002, %v2000
        %v2201 = vpack.c.b16 %v2003, %v2001
        %v2202 = vpack.c.b16 %v2006, %v2004
        %v2203 = vpack.c.b16 %v2007, %v2005
        %v2204 = vpack.c.b16 %v2010, %v2008
        %v2205 = vpack.c.b16 %v2011, %v2009
        %v2206 = vpack.c.b16 %v2014, %v2012
        %v2207 = vpack.c.b16 %v2015, %v2013
        %v2208 = vpack.c.b16 %v2018, %v2016
        %v2209 = vpack.c.b16 %v2019, %v2017
        %v2210 = vpack.c.b16 %v2022, %v2020
        %v2211 = vpack.c.b16 %v2023, %v2021
        %v2212 = vpack.c.b16 %v2026, %v2024
        %v2213 = vpack.c.b16 %v2027, %v2025
        %v2214 = vpack.c.b16 %v2030, %v2028
        %v2215 = vpack.c.b16 %v2031, %v2029
        %v2216 = vpack.c.b16 %v2034, %v2032
        %v2217 = vpack.c.b16 %v2035, %v2033
        %v2218 = vpack.c.b16 %v2038, %v2036
        %v2219 = vpack.c.b16 %v2039, %v2037
        %v2220 = vpack.c.b16 %v2042, %v2040
        %v2221 = vpack.c.b16 %v2043, %v2041
        %v2222 = vpack.c.b16 %v2046, %v2044
        %v2223 = vpack.c.b16 %v2047, %v2045
        %v2224 = vpack.c.b16 %v2050, %v2048
        %v2225 = vpack.c.b16 %v2051, %v2049
        %v2226 = vpack.c.b16 %v2054, %v2052
        %v2227 = vpack.c.b16 %v2055, %v2053
        %v2228 = vpack.c.b16 %v2058, %v2056
        %v2229 = vpack.c.b16 %v2059, %v2057
        %v2230 = vpack.c.b16 %v2062, %v2060
        %v2231 = vpack.c.b16 %v2063, %v2061
        %v2232 = vpack.c.b16 %v2066, %v2064
        %v2233 = vpack.c.b16 %v2067, %v2065
        %v2234 = vpack.c.b16 %v2070, %v2068
        %v2235 = vpack.c.b16 %v2071, %v2069
        %v2236 = vpack.c.b16 %v2074, %v2072
        %v2237 = vpack.c.b16 %v2075, %v2073
        %v2238 = vpack.c.b16 %v2078, %v2076
        %v2239 = vpack.c.b16 %v2079, %v2077
        %v2240 = vpack.c.b16 %v2082, %v2080
        %v2241 = vpack.c.b16 %v2083, %v2081
        %v2242 = vpack.c.b16 %v2086, %v2084
        %v2243 = vpack.c.b16 %v2087, %v2085
        %v2244 = vpack.c.b16 %v2090, %v2088
        %v2245 = vpack.c.b16 %v2091, %v2089
        %v2246 = vpack.c.b16 %v2094, %v2092
        %v2247 = vpack.c.b16 %v2095, %v2093
        %v2248 = vpack.c.b16 %v2098, %v2096
        %v2249 = vpack.c.b16 %v2099, %v2097
        %v2250 = vpack.c.b16 %v2102, %v2100
        %v2251 = vpack.c.b16 %v2103, %v2101
        %v2252 = vpack.c.b16 %v2106, %v2104
        %v2253 = vpack.c.b16 %v2107, %v2105
        %v2254 = vpack.c.b16 %v2110, %v2108
        %v2255 = vpack.c.b16 %v2111, %v2109
        %v2256 = vpack.c.b16 %v2114, %v2112
        %v2257 = vpack.c.b16 %v2115, %v2113
        %v2258 = vpack.c.b16 %v2118, %v2116
        %v2259 = vpack.c.b16 %v2119, %v2117
        %v2260 = vpack.c.b16 %v2122, %v2120
        %v2261 = vpack.c.b16 %v2123, %v2121
        %v2262 = vpack.c.b16 %v2126, %v2124
        %v2263 = vpack.c.b16 %v2127, %v2125
        %v2264 = vpack.c.b16 %v2130, %v2128
        %v2265 = vpack.c.b16 %v2131, %v2129
        %v2266 = vpack.c.b16 %v2134, %v2132
        %v2267 = vpack.c.b16 %v2135, %v2133
        %v2268 = vpack.c.b16 %v2138, %v2136
        %v2269 = vpack.c.b16 %v2139, %v2137
        %v2270 = vpack.c.b16 %v2142, %v2140
        %v2271 = vpack.c.b16 %v2143, %v2141
        %2400 = vmatprep.subr.bf16.mxu0 %v2145
        %2401 = vmatpush1.bf16.msra.mxu0 %v2144
        %2402 = vmatprep.subr.bf16.mxu0 %v2147
        %2403 = vmatpush1.bf16.msra.mxu0 %v2146
        %2404 = vmatprep.subr.bf16.mxu0 %v2149
        %2405 = vmatpush1.bf16.msra.mxu0 %v2148
        %2406 = vmatprep.subr.bf16.mxu0 %v2151
        %2407 = vmatpush1.bf16.msra.mxu0 %v2150
        %2408 = vmatprep.subr.bf16.mxu0 %v2153
        %2409 = vmatpush1.bf16.msra.mxu0 %v2152
        %2410 = vmatprep.subr.bf16.mxu0 %v2155
        %2411 = vmatpush1.bf16.msra.mxu0 %v2154
        %2412 = vmatprep.subr.bf16.mxu0 %v2157
        %2413 = vmatpush1.bf16.msra.mxu0 %v2156
        %2414 = vmatprep.subr.bf16.mxu0 %v2159
        %2415 = vmatpush1.bf16.msra.mxu0 %v2158
        %2416 = vmatprep.subr.bf16.mxu0 %v2161
        %2417 = vmatpush1.bf16.msra.mxu0 %v2160
        %2418 = vmatprep.subr.bf16.mxu0 %v2163
        %2419 = vmatpush1.bf16.msra.mxu0 %v2162
        %2420 = vmatprep.subr.bf16.mxu0 %v2165
        %2421 = vmatpush1.bf16.msra.mxu0 %v2164
        %2422 = vmatprep.subr.bf16.mxu0 %v2167
        %2423 = vmatpush1.bf16.msra.mxu0 %v2166
        %2424 = vmatprep.subr.bf16.mxu0 %v2169
        %2425 = vmatpush1.bf16.msra.mxu0 %v2168
        %2426 = vmatprep.subr.bf16.mxu0 %v2171
        %2427 = vmatpush1.bf16.msra.mxu0 %v2170
        %2428 = vmatprep.subr.bf16.mxu0 %v2173
        %2429 = vmatpush1.bf16.msra.mxu0 %v2172
        %2430 = vmatprep.subr.bf16.mxu0 %v2175
        %2431 = vmatpush1.bf16.msra.mxu0 %v2174
        %2432 = vmatprep.mubr.bf16.mxu0 %v1589
        %2433 = vmatmul.mubr.bf16.gmra.mrb[0].mxu0 %v1588
        %v2434 = vpop.f32.mrb[0].mxu0
        %v2435 = vadd.f32 %v1753, %v2434
        %v2436 = vpop.f32.mrb[0].mxu0
        %v2437 = vadd.f32 %v1757, %v2436
        %v2438 = vpop.f32.mrb[0].mxu0
        %v2439 = vadd.f32 %v1753, %v2438
        %v2440 = vpop.f32.mrb[0].mxu0
        %v2441 = vadd.f32 %v1757, %v2440
        %2442 = vmatprep.mubr.bf16.mxu0 %v1597
        %2443 = vmatmul.mubr.bf16.gmra.mrb[0].mxu0 %v1596
        %v2444 = vpop.f32.mrb[0].mxu0
        %v2445 = vadd.f32 %v1753, %v2444
        %v2446 = vpop.f32.mrb[0].mxu0
        %v2447 = vadd.f32 %v1757, %v2446
        %v2448 = vpop.f32.mrb[0].mxu0
        %v2449 = vadd.f32 %v1753, %v2448
        %v2450 = vpop.f32.mrb[0].mxu0
        %v2451 = vadd.f32 %v1757, %v2450
        %2452 = vmatprep.mubr.bf16.mxu0 %v1605
        %2453 = vmatmul.mubr.bf16.gmra.mrb[0].mxu0 %v1604
        %v2454 = vpop.f32.mrb[0].mxu0
        %v2455 = vadd.f32 %v1753, %v2454
        %v2456 = vpop.f32.mrb[0].mxu0
        %v2457 = vadd.f32 %v1757, %v2456
        %v2458 = vpop.f32.mrb[0].mxu0
        %v2459 = vadd.f32 %v1753, %v2458
        %v2460 = vpop.f32.mrb[0].mxu0
        %v2461 = vadd.f32 %v1757, %v2460
        %2462 = vmatprep.mubr.bf16.mxu0 %v1613
        %2463 = vmatmul.mubr.bf16.gmra.mrb[0].mxu0 %v1612
        %v2464 = vpop.f32.mrb[0].mxu0
        %v2465 = vadd.f32 %v1753, %v2464
        %v2466 = vpop.f32.mrb[0].mxu0
        %v2467 = vadd.f32 %v1757, %v2466
        %v2468 = vpop.f32.mrb[0].mxu0
        %v2469 = vadd.f32 %v1753, %v2468
        %v2470 = vpop.f32.mrb[0].mxu0
        %v2471 = vadd.f32 %v1757, %v2470
        %2472 = vdwg.mxu0
        %2473 = vmatprep.subr.bf16.mxu0 %v2177
        %2474 = vmatpush1.bf16.msra.mxu0 %v2176
        %2475 = vmatprep.subr.bf16.mxu0 %v2179
        %2476 = vmatpush1.bf16.msra.mxu0 %v2178
        %2477 = vmatprep.subr.bf16.mxu0 %v2181
        %2478 = vmatpush1.bf16.msra.mxu0 %v2180
        %2479 = vmatprep.subr.bf16.mxu0 %v2183
        %2480 = vmatpush1.bf16.msra.mxu0 %v2182
        %2481 = vmatprep.subr.bf16.mxu0 %v2185
        %2482 = vmatpush1.bf16.msra.mxu0 %v2184
        %2483 = vmatprep.subr.bf16.mxu0 %v2187
        %2484 = vmatpush1.bf16.msra.mxu0 %v2186
        %2485 = vmatprep.subr.bf16.mxu0 %v2189
        %2486 = vmatpush1.bf16.msra.mxu0 %v2188
        %2487 = vmatprep.subr.bf16.mxu0 %v2191
        %2488 = vmatpush1.bf16.msra.mxu0 %v2190
        %2489 = vmatprep.subr.bf16.mxu0 %v2193
        %2490 = vmatpush1.bf16.msra.mxu0 %v2192
        %2491 = vmatprep.subr.bf16.mxu0 %v2195
        %2492 = vmatpush1.bf16.msra.mxu0 %v2194
        %2493 = vmatprep.subr.bf16.mxu0 %v2197
        %2494 = vmatpush1.bf16.msra.mxu0 %v2196
        %2495 = vmatprep.subr.bf16.mxu0 %v2199
        %2496 = vmatpush1.bf16.msra.mxu0 %v2198
        %2497 = vmatprep.subr.bf16.mxu0 %v2201
        %2498 = vmatpush1.bf16.msra.mxu0 %v2200
        %2499 = vmatprep.subr.bf16.mxu0 %v2203
        %2500 = vmatpush1.bf16.msra.mxu0 %v2202
        %2501 = vmatprep.subr.bf16.mxu0 %v2205
        %2502 = vmatpush1.bf16.msra.mxu0 %v2204
        %2503 = vmatprep.subr.bf16.mxu0 %v2207
        %2504 = vmatpush1.bf16.msra.mxu0 %v2206
        %2505 = vmatprep.mubr.bf16.mxu0 %v1591
        %2506 = vmatmul.mubr.bf16.gmra.mrb[0].mxu0 %v1590
        %v2507 = vpop.f32.mrb[0].mxu0
        %v2508 = vadd.f32 %v2435, %v2507
        %v2509 = vpop.f32.mrb[0].mxu0
        %v2510 = vadd.f32 %v2437, %v2509
        %v2511 = vpop.f32.mrb[0].mxu0
        %v2512 = vadd.f32 %v2439, %v2511
        %v2513 = vpop.f32.mrb[0].mxu0
        %v2514 = vadd.f32 %v2441, %v2513
        %2515 = vmatprep.mubr.bf16.mxu0 %v1599
        %2516 = vmatmul.mubr.bf16.gmra.mrb[0].mxu0 %v1598
        %v2517 = vpop.f32.mrb[0].mxu0
        %v2518 = vadd.f32 %v2445, %v2517
        %v2519 = vpop.f32.mrb[0].mxu0
        %v2520 = vadd.f32 %v2447, %v2519
        %v2521 = vpop.f32.mrb[0].mxu0
        %v2522 = vadd.f32 %v2449, %v2521
        %v2523 = vpop.f32.mrb[0].mxu0
        %v2524 = vadd.f32 %v2451, %v2523
        %2525 = vmatprep.mubr.bf16.mxu0 %v1607
        %2526 = vmatmul.mubr.bf16.gmra.mrb[0].mxu0 %v1606
        %v2527 = vpop.f32.mrb[0].mxu0
        %v2528 = vadd.f32 %v2455, %v2527
        %v2529 = vpop.f32.mrb[0].mxu0
        %v2530 = vadd.f32 %v2457, %v2529
        %v2531 = vpop.f32.mrb[0].mxu0
        %v2532 = vadd.f32 %v2459, %v2531
        %v2533 = vpop.f32.mrb[0].mxu0
        %v2534 = vadd.f32 %v2461, %v2533
        %2535 = vmatprep.mubr.bf16.mxu0 %v1615
        %2536 = vmatmul.mubr.bf16.gmra.mrb[0].mxu0 %v1614
        %v2537 = vpop.f32.mrb[0].mxu0
        %v2538 = vadd.f32 %v2465, %v2537
        %v2539 = vpop.f32.mrb[0].mxu0
        %v2540 = vadd.f32 %v2467, %v2539
        %v2541 = vpop.f32.mrb[0].mxu0
        %v2542 = vadd.f32 %v2469, %v2541
        %v2543 = vpop.f32.mrb[0].mxu0
        %v2544 = vadd.f32 %v2471, %v2543
        %2545 = vdwg.mxu0
        %2546 = vmatprep.subr.bf16.mxu0 %v2209
        %2547 = vmatpush1.bf16.msra.mxu0 %v2208
        %2548 = vmatprep.subr.bf16.mxu0 %v2211
        %2549 = vmatpush1.bf16.msra.mxu0 %v2210
        %2550 = vmatprep.subr.bf16.mxu0 %v2213
        %2551 = vmatpush1.bf16.msra.mxu0 %v2212
        %2552 = vmatprep.subr.bf16.mxu0 %v2215
        %2553 = vmatpush1.bf16.msra.mxu0 %v2214
        %2554 = vmatprep.subr.bf16.mxu0 %v2217
        %2555 = vmatpush1.bf16.msra.mxu0 %v2216
        %2556 = vmatprep.subr.bf16.mxu0 %v2219
        %2557 = vmatpush1.bf16.msra.mxu0 %v2218
        %2558 = vmatprep.subr.bf16.mxu0 %v2221
        %2559 = vmatpush1.bf16.msra.mxu0 %v2220
        %2560 = vmatprep.subr.bf16.mxu0 %v2223
        %2561 = vmatpush1.bf16.msra.mxu0 %v2222
        %2562 = vmatprep.subr.bf16.mxu0 %v2225
        %2563 = vmatpush1.bf16.msra.mxu0 %v2224
        %2564 = vmatprep.subr.bf16.mxu0 %v2227
        %2565 = vmatpush1.bf16.msra.mxu0 %v2226
        %2566 = vmatprep.subr.bf16.mxu0 %v2229
        %2567 = vmatpush1.bf16.msra.mxu0 %v2228
        %2568 = vmatprep.subr.bf16.mxu0 %v2231
        %2569 = vmatpush1.bf16.msra.mxu0 %v2230
        %2570 = vmatprep.subr.bf16.mxu0 %v2233
        %2571 = vmatpush1.bf16.msra.mxu0 %v2232
        %2572 = vmatprep.subr.bf16.mxu0 %v2235
        %2573 = vmatpush1.bf16.msra.mxu0 %v2234
        %2574 = vmatprep.subr.bf16.mxu0 %v2237
        %2575 = vmatpush1.bf16.msra.mxu0 %v2236
        %2576 = vmatprep.subr.bf16.mxu0 %v2239
        %2577 = vmatpush1.bf16.msra.mxu0 %v2238
        %2578 = vmatprep.mubr.bf16.mxu0 %v1593
        %2579 = vmatmul.mubr.bf16.gmra.mrb[0].mxu0 %v1592
        %v2580 = vpop.f32.mrb[0].mxu0
        %v2581 = vadd.f32 %v2508, %v2580
        %v2582 = vpop.f32.mrb[0].mxu0
        %v2583 = vadd.f32 %v2510, %v2582
        %v2584 = vpop.f32.mrb[0].mxu0
        %v2585 = vadd.f32 %v2512, %v2584
        %v2586 = vpop.f32.mrb[0].mxu0
        %v2587 = vadd.f32 %v2514, %v2586
        %2588 = vmatprep.mubr.bf16.mxu0 %v1601
        %2589 = vmatmul.mubr.bf16.gmra.mrb[0].mxu0 %v1600
        %v2590 = vpop.f32.mrb[0].mxu0
        %v2591 = vadd.f32 %v2518, %v2590
        %v2592 = vpop.f32.mrb[0].mxu0
        %v2593 = vadd.f32 %v2520, %v2592
        %v2594 = vpop.f32.mrb[0].mxu0
        %v2595 = vadd.f32 %v2522, %v2594
        %v2596 = vpop.f32.mrb[0].mxu0
        %v2597 = vadd.f32 %v2524, %v2596
        %2598 = vmatprep.mubr.bf16.mxu0 %v1609
        %2599 = vmatmul.mubr.bf16.gmra.mrb[0].mxu0 %v1608
        %v2600 = vpop.f32.mrb[0].mxu0
        %v2601 = vadd.f32 %v2528, %v2600
        %v2602 = vpop.f32.mrb[0].mxu0
        %v2603 = vadd.f32 %v2530, %v2602
        %v2604 = vpop.f32.mrb[0].mxu0
        %v2605 = vadd.f32 %v2532, %v2604
        %v2606 = vpop.f32.mrb[0].mxu0
        %v2607 = vadd.f32 %v2534, %v2606
        %2608 = vmatprep.mubr.bf16.mxu0 %v1617
        %2609 = vmatmul.mubr.bf16.gmra.mrb[0].mxu0 %v1616
        %v2610 = vpop.f32.mrb[0].mxu0
        %v2611 = vadd.f32 %v2538, %v2610
        %v2612 = vpop.f32.mrb[0].mxu0
        %v2613 = vadd.f32 %v2540, %v2612
        %v2614 = vpop.f32.mrb[0].mxu0
        %v2615 = vadd.f32 %v2542, %v2614
        %v2616 = vpop.f32.mrb[0].mxu0
        %v2617 = vadd.f32 %v2544, %v2616
        %2618 = vdwg.mxu0
        %2619 = vmatprep.subr.bf16.mxu0 %v2241
        %2620 = vmatpush1.bf16.msra.mxu0 %v2240
        %2621 = vmatprep.subr.bf16.mxu0 %v2243
        %2622 = vmatpush1.bf16.msra.mxu0 %v2242
        %2623 = vmatprep.subr.bf16.mxu0 %v2245
        %2624 = vmatpush1.bf16.msra.mxu0 %v2244
        %2625 = vmatprep.subr.bf16.mxu0 %v2247
        %2626 = vmatpush1.bf16.msra.mxu0 %v2246
        %2627 = vmatprep.subr.bf16.mxu0 %v2249
        %2628 = vmatpush1.bf16.msra.mxu0 %v2248
        %2629 = vmatprep.subr.bf16.mxu0 %v2251
        %2630 = vmatpush1.bf16.msra.mxu0 %v2250
        %2631 = vmatprep.subr.bf16.mxu0 %v2253
        %2632 = vmatpush1.bf16.msra.mxu0 %v2252
        %2633 = vmatprep.subr.bf16.mxu0 %v2255
        %2634 = vmatpush1.bf16.msra.mxu0 %v2254
        %2635 = vmatprep.subr.bf16.mxu0 %v2257
        %2636 = vmatpush1.bf16.msra.mxu0 %v2256
        %2637 = vmatprep.subr.bf16.mxu0 %v2259
        %2638 = vmatpush1.bf16.msra.mxu0 %v2258
        %2639 = vmatprep.subr.bf16.mxu0 %v2261
        %2640 = vmatpush1.bf16.msra.mxu0 %v2260
        %2641 = vmatprep.subr.bf16.mxu0 %v2263
        %2642 = vmatpush1.bf16.msra.mxu0 %v2262
        %2643 = vmatprep.subr.bf16.mxu0 %v2265
        %2644 = vmatpush1.bf16.msra.mxu0 %v2264
        %2645 = vmatprep.subr.bf16.mxu0 %v2267
        %2646 = vmatpush1.bf16.msra.mxu0 %v2266
        %2647 = vmatprep.subr.bf16.mxu0 %v2269
        %2648 = vmatpush1.bf16.msra.mxu0 %v2268
        %2649 = vmatprep.subr.bf16.mxu0 %v2271
        %2650 = vmatpush1.bf16.msra.mxu0 %v2270
        %2651 = vmatprep.mubr.bf16.mxu0 %v1595
        %2652 = vmatmul.mubr.bf16.gmra.mrb[0].mxu0 %v1594
        %v2653 = vpop.f32.mrb[0].mxu0
        %v2654 = vadd.f32 %v2581, %v2653
        %v2655 = vpop.f32.mrb[0].mxu0
        %v2656 = vadd.f32 %v2583, %v2655
        %v2657 = vpop.f32.mrb[0].mxu0
        %v2658 = vadd.f32 %v2585, %v2657
        %v2659 = vpop.f32.mrb[0].mxu0
        %v2660 = vadd.f32 %v2587, %v2659
        %2661 = vmatprep.mubr.bf16.mxu0 %v1603
        %2662 = vmatmul.mubr.bf16.gmra.mrb[0].mxu0 %v1602
        %v2663 = vpop.f32.mrb[0].mxu0
        %v2664 = vadd.f32 %v2591, %v2663
        %v2665 = vpop.f32.mrb[0].mxu0
        %v2666 = vadd.f32 %v2593, %v2665
        %v2667 = vpop.f32.mrb[0].mxu0
        %v2668 = vadd.f32 %v2595, %v2667
        %v2669 = vpop.f32.mrb[0].mxu0
        %v2670 = vadd.f32 %v2597, %v2669
        %2671 = vmatprep.mubr.bf16.mxu0 %v1611
        %2672 = vmatmul.mubr.bf16.gmra.mrb[0].mxu0 %v1610
        %v2673 = vpop.f32.mrb[0].mxu0
        %v2674 = vadd.f32 %v2601, %v2673
        %v2675 = vpop.f32.mrb[0].mxu0
        %v2676 = vadd.f32 %v2603, %v2675
        %v2677 = vpop.f32.mrb[0].mxu0
        %v2678 = vadd.f32 %v2605, %v2677
        %v2679 = vpop.f32.mrb[0].mxu0
        %v2680 = vadd.f32 %v2607, %v2679
        %2681 = vmatprep.mubr.bf16.mxu0 %v1619
        %2682 = vmatmul.mubr.bf16.gmra.mrb[0].mxu0 %v1618
        %v2683 = vpop.f32.mrb[0].mxu0
        %v2684 = vadd.f32 %v2611, %v2683
        %v2685 = vpop.f32.mrb[0].mxu0
        %v2686 = vadd.f32 %v2613, %v2685
        %v2687 = vpop.f32.mrb[0].mxu0
        %v2688 = vadd.f32 %v2615, %v2687
        %v2689 = vpop.f32.mrb[0].mxu0
        %v2690 = vadd.f32 %v2617, %v2689
        %2691 = vdwg.mxu0
        %v2692 = vmul.f32 %v2654, 0.5
        %v2693 = vmul.f32 %v2656, 0.5
        %v2694 = vmul.f32 %v2658, 0.5
        %v2695 = vmul.f32 %v2660, 0.5
        %v2696 = vmul.f32 %v2664, 0.5
        %v2697 = vmul.f32 %v2666, 0.5
        %v2698 = vmul.f32 %v2668, 0.5
        %v2699 = vmul.f32 %v2670, 0.5
        %v2700 = vmul.f32 %v2674, 0.5
        %v2701 = vmul.f32 %v2676, 0.5
        %v2702 = vmul.f32 %v2678, 0.5
        %v2703 = vmul.f32 %v2680, 0.5
        %v2704 = vmul.f32 %v2684, 0.5
        %v2705 = vmul.f32 %v2686, 0.5
        %v2706 = vmul.f32 %v2688, 0.5
        %v2707 = vmul.f32 %v2690, 0.5
        %v2708 = vmul.f32 %v2654, 0.044715
        %v2709 = vmul.f32 %v2656, 0.044715
        %v2710 = vmul.f32 %v2658, 0.044715
        %v2711 = vmul.f32 %v2660, 0.044715
        %v2712 = vmul.f32 %v2664, 0.044715
        %v2713 = vmul.f32 %v2666, 0.044715
        %v2714 = vmul.f32 %v2668, 0.044715
        %v2715 = vmul.f32 %v2670, 0.044715
        %v2716 = vmul.f32 %v2674, 0.044715
        %v2717 = vmul.f32 %v2676, 0.044715
        %v2718 = vmul.f32 %v2678, 0.044715
        %v2719 = vmul.f32 %v2680, 0.044715
        %v2720 = vmul.f32 %v2684, 0.044715
        %v2721 = vmul.f32 %v2686, 0.044715
        %v2722 = vmul.f32 %v2688, 0.044715
        %v2723 = vmul.f32 %v2690, 0.044715
        %v2724 = vmul.f32 %v2708, %v2654
        %v2725 = vmul.f32 %v2709, %v2656
        %v2726 = vmul.f32 %v2710, %v2658
        %v2727 = vmul.f32 %v2711, %v2660
        %v2728 = vmul.f32 %v2712, %v2664
        %v2729 = vmul.f32 %v2713, %v2666
        %v2730 = vmul.f32 %v2714, %v2668
        %v2731 = vmul.f32 %v2715, %v2670
        %v2732 = vmul.f32 %v2716, %v2674
        %v2733 = vmul.f32 %v2717, %v2676
        %v2734 = vmul.f32 %v2718, %v2678
        %v2735 = vmul.f32 %v2719, %v2680
        %v2736 = vmul.f32 %v2720, %v2684
        %v2737 = vmul.f32 %v2721, %v2686
        %v2738 = vmul.f32 %v2722, %v2688
        %v2739 = vmul.f32 %v2723, %v2690
        %v2740 = vmul.f32 %v2724, %v2654
        %v2741 = vmul.f32 %v2725, %v2656
        %v2742 = vmul.f32 %v2726, %v2658
        %v2743 = vmul.f32 %v2727, %v2660
        %v2744 = vmul.f32 %v2728, %v2664
        %v2745 = vmul.f32 %v2729, %v2666
        %v2746 = vmul.f32 %v2730, %v2668
        %v2747 = vmul.f32 %v2731, %v2670
        %v2748 = vmul.f32 %v2732, %v2674
        %v2749 = vmul.f32 %v2733, %v2676
        %v2750 = vmul.f32 %v2734, %v2678
        %v2751 = vmul.f32 %v2735, %v2680
        %v2752 = vmul.f32 %v2736, %v2684
        %v2753 = vmul.f32 %v2737, %v2686
        %v2754 = vmul.f32 %v2738, %v2688
        %v2755 = vmul.f32 %v2739, %v2690
        %v2756 = vadd.f32 %v2654, %v2740
        %v2757 = vadd.f32 %v2656, %v2741
        %v2758 = vadd.f32 %v2658, %v2742
        %v2759 = vadd.f32 %v2660, %v2743
        %v2760 = vadd.f32 %v2664, %v2744
        %v2761 = vadd.f32 %v2666, %v2745
        %v2762 = vadd.f32 %v2668, %v2746
        %v2763 = vadd.f32 %v2670, %v2747
        %v2764 = vadd.f32 %v2674, %v2748
        %v2765 = vadd.f32 %v2676, %v2749
        %v2766 = vadd.f32 %v2678, %v2750
        %v2767 = vadd.f32 %v2680, %v2751
        %v2768 = vadd.f32 %v2684, %v2752
        %v2769 = vadd.f32 %v2686, %v2753
        %v2770 = vadd.f32 %v2688, %v2754
        %v2771 = vadd.f32 %v2690, %v2755
        %v2772 = vmul.f32 %v2756, 0.7978846
        %v2773 = vmul.f32 %v2757, 0.7978846
        %v2774 = vmul.f32 %v2758, 0.7978846
        %v2775 = vmul.f32 %v2759, 0.7978846
        %v2776 = vmul.f32 %v2760, 0.7978846
        %v2777 = vmul.f32 %v2761, 0.7978846
        %v2778 = vmul.f32 %v2762, 0.7978846
        %v2779 = vmul.f32 %v2763, 0.7978846
        %v2780 = vmul.f32 %v2764, 0.7978846
        %v2781 = vmul.f32 %v2765, 0.7978846
        %v2782 = vmul.f32 %v2766, 0.7978846
        %v2783 = vmul.f32 %v2767, 0.7978846
        %v2784 = vmul.f32 %v2768, 0.7978846
        %v2785 = vmul.f32 %v2769, 0.7978846
        %v2786 = vmul.f32 %v2770, 0.7978846
        %v2787 = vmul.f32 %v2771, 0.7978846
        %v2788 = vtanh.pop %v2772
        %v2789 = vtanh.pop %v2773
        %v2790 = vtanh.pop %v2774
        %v2791 = vtanh.pop %v2775
        %v2792 = vtanh.pop %v2776
        %v2793 = vtanh.pop %v2777
        %v2794 = vtanh.pop %v2778
        %v2795 = vtanh.pop %v2779
        %v2796 = vtanh.pop %v2780
        %v2797 = vtanh.pop %v2781
        %v2798 = vtanh.pop %v2782
        %v2799 = vtanh.pop %v2783
        %v2800 = vtanh.pop %v2784
        %v2801 = vtanh.pop %v2785
        %v2802 = vtanh.pop %v2786
        %v2803 = vtanh.pop %v2787
        %v2804 = vadd.f32 %v2788, 1.0
        %v2805 = vadd.f32 %v2789, 1.0
        %v2806 = vadd.f32 %v2790, 1.0
        %v2807 = vadd.f32 %v2791, 1.0
        %v2808 = vadd.f32 %v2792, 1.0
        %v2809 = vadd.f32 %v2793, 1.0
        %v2810 = vadd.f32 %v2794, 1.0
        %v2811 = vadd.f32 %v2795, 1.0
        %v2812 = vadd.f32 %v2796, 1.0
        %v2813 = vadd.f32 %v2797, 1.0
        %v2814 = vadd.f32 %v2798, 1.0
        %v2815 = vadd.f32 %v2799, 1.0
        %v2816 = vadd.f32 %v2800, 1.0
        %v2817 = vadd.f32 %v2801, 1.0
        %v2818 = vadd.f32 %v2802, 1.0
        %v2819 = vadd.f32 %v2803, 1.0
        %v2820 = vmul.f32 %v2692, %v2804
        %v2821 = vmul.f32 %v2693, %v2805
        %v2822 = vmul.f32 %v2694, %v2806
        %v2823 = vmul.f32 %v2695, %v2807
        %v2824 = vmul.f32 %v2696, %v2808
        %v2825 = vmul.f32 %v2697, %v2809
        %v2826 = vmul.f32 %v2698, %v2810
        %v2827 = vmul.f32 %v2699, %v2811
        %v2828 = vmul.f32 %v2700, %v2812
        %v2829 = vmul.f32 %v2701, %v2813
        %v2830 = vmul.f32 %v2702, %v2814
        %v2831 = vmul.f32 %v2703, %v2815
        %v2832 = vmul.f32 %v2704, %v2816
        %v2833 = vmul.f32 %v2705, %v2817
        %v2834 = vmul.f32 %v2706, %v2818
        %v2835 = vmul.f32 %v2707, %v2819
        %v2836 = vpack.c.bf16 %v2822, %v2820
        %v2837 = vpack.c.bf16 %v2823, %v2821
        %v2838 = vpack.c.bf16 %v2826, %v2824
        %v2839 = vpack.c.bf16 %v2827, %v2825
        %v2840 = vpack.c.bf16 %v2830, %v2828
        %v2841 = vpack.c.bf16 %v2831, %v2829
        %v2842 = vpack.c.bf16 %v2834, %v2832
        %v2843 = vpack.c.bf16 %v2835, %v2833
        %v2844 = vld [vmem:[#allocation6] sm:$0xf]
        %v2845 = vld [vmem:[#allocation6 + $0x4] sm:$0xf]
        %v2846 = vld [vmem:[#allocation6 + $0x8] sm:$0xf]
        %v2847 = vld [vmem:[#allocation6 + $0xc] sm:$0xf]
        %v2848 = vld [vmem:[#allocation6 + $0x10] sm:$0xf]
        %v2849 = vld [vmem:[#allocation6 + $0x14] sm:$0xf]
        %v2850 = vld [vmem:[#allocation6 + $0x18] sm:$0xf]
        %v2851 = vld [vmem:[#allocation6 + $0x1c] sm:$0xf]
        %v2852 = vld [vmem:[#allocation6 + $0x20] sm:$0xf]
        %v2853 = vld [vmem:[#allocation6 + $0x24] sm:$0xf]
        %v2854 = vld [vmem:[#allocation6 + $0x28] sm:$0xf]
        %v2855 = vld [vmem:[#allocation6 + $0x2c] sm:$0xf]
        %v2856 = vld [vmem:[#allocation6 + $0x30] sm:$0xf]
        %v2857 = vld [vmem:[#allocation6 + $0x34] sm:$0xf]
        %v2858 = vld [vmem:[#allocation6 + $0x38] sm:$0xf]
        %v2859 = vld [vmem:[#allocation6 + $0x3c] sm:$0xf]
        %v2860 = vld [vmem:[#allocation6 + $0x40] sm:$0xf]
        %v2861 = vld [vmem:[#allocation6 + $0x44] sm:$0xf]
        %v2862 = vld [vmem:[#allocation6 + $0x48] sm:$0xf]
        %v2863 = vld [vmem:[#allocation6 + $0x4c] sm:$0xf]
        %v2864 = vld [vmem:[#allocation6 + $0x50] sm:$0xf]
        %v2865 = vld [vmem:[#allocation6 + $0x54] sm:$0xf]
        %v2866 = vld [vmem:[#allocation6 + $0x58] sm:$0xf]
        %v2867 = vld [vmem:[#allocation6 + $0x5c] sm:$0xf]
        %v2868 = vld [vmem:[#allocation6 + $0x60] sm:$0xf]
        %v2869 = vld [vmem:[#allocation6 + $0x64] sm:$0xf]
        %v2870 = vld [vmem:[#allocation6 + $0x68] sm:$0xf]
        %v2871 = vld [vmem:[#allocation6 + $0x6c] sm:$0xf]
        %v2872 = vld [vmem:[#allocation6 + $0x70] sm:$0xf]
        %v2873 = vld [vmem:[#allocation6 + $0x74] sm:$0xf]
        %v2874 = vld [vmem:[#allocation6 + $0x78] sm:$0xf]
        %v2875 = vld [vmem:[#allocation6 + $0x7c] sm:$0xf]
        %v2876 = vld [vmem:[%s6] sm:$0x1]
        %v2878 = vlaneseq
        %v2879 = vshrl.u32 %v2878, 7
        %v2880 = vsub.s32 0, %v2879
        %v2881 = vrot.slane %v2876, %v2880
        %v2915 = vunpack.c.l.b16 %v2844
        %v2916 = vunpack.c.l.b16 %v2845
        %v2917 = vunpack.c.l.b16 %v2846
        %v2918 = vunpack.c.l.b16 %v2847
        %v2919 = vunpack.c.l.b16 %v2848
        %v2920 = vunpack.c.l.b16 %v2849
        %v2921 = vunpack.c.l.b16 %v2850
        %v2922 = vunpack.c.l.b16 %v2851
        %v2923 = vunpack.c.l.b16 %v2852
        %v2924 = vunpack.c.l.b16 %v2853
        %v2925 = vunpack.c.l.b16 %v2854
        %v2926 = vunpack.c.l.b16 %v2855
        %v2927 = vunpack.c.l.b16 %v2856
        %v2928 = vunpack.c.l.b16 %v2857
        %v2929 = vunpack.c.l.b16 %v2858
        %v2930 = vunpack.c.l.b16 %v2859
        %v2931 = vunpack.c.l.b16 %v2860
        %v2932 = vunpack.c.l.b16 %v2861
        %v2933 = vunpack.c.l.b16 %v2862
        %v2934 = vunpack.c.l.b16 %v2863
        %v2935 = vunpack.c.l.b16 %v2864
        %v2936 = vunpack.c.l.b16 %v2865
        %v2937 = vunpack.c.l.b16 %v2866
        %v2938 = vunpack.c.l.b16 %v2867
        %v2939 = vunpack.c.l.b16 %v2868
        %v2940 = vunpack.c.l.b16 %v2869
        %v2941 = vunpack.c.l.b16 %v2870
        %v2942 = vunpack.c.l.b16 %v2871
        %v2943 = vunpack.c.l.b16 %v2872
        %v2944 = vunpack.c.l.b16 %v2873
        %v2945 = vunpack.c.l.b16 %v2874
        %v2946 = vunpack.c.l.b16 %v2875
        %v2947 = vpack.c.b16 %v2916, %v2915
        %v2948 = vpack.c.b16 %v2918, %v2917
        %v2949 = vpack.c.b16 %v2920, %v2919
        %v2950 = vpack.c.b16 %v2922, %v2921
        %v2951 = vpack.c.b16 %v2924, %v2923
        %v2952 = vpack.c.b16 %v2926, %v2925
        %v2953 = vpack.c.b16 %v2928, %v2927
        %v2954 = vpack.c.b16 %v2930, %v2929
        %v2955 = vpack.c.b16 %v2932, %v2931
        %v2956 = vpack.c.b16 %v2934, %v2933
        %v2957 = vpack.c.b16 %v2936, %v2935
        %v2958 = vpack.c.b16 %v2938, %v2937
        %v2959 = vpack.c.b16 %v2940, %v2939
        %v2960 = vpack.c.b16 %v2942, %v2941
        %v2961 = vpack.c.b16 %v2944, %v2943
        %v2962 = vpack.c.b16 %v2946, %v2945
        %2979 = vmatprep.subr.bf16.mxu0 0
        %2980 = vmatpush1.bf16.msra.mxu0 %v2947
        %2981 = vmatprep.subr.bf16.mxu0 0
        %2982 = vmatpush1.bf16.msra.mxu0 %v2948
        %2983 = vmatprep.subr.bf16.mxu0 0
        %2984 = vmatpush1.bf16.msra.mxu0 %v2949
        %2985 = vmatprep.subr.bf16.mxu0 0
        %2986 = vmatpush1.bf16.msra.mxu0 %v2950
        %2987 = vmatprep.subr.bf16.mxu0 0
        %2988 = vmatpush1.bf16.msra.mxu0 %v2951
        %2989 = vmatprep.subr.bf16.mxu0 0
        %2990 = vmatpush1.bf16.msra.mxu0 %v2952
        %2991 = vmatprep.subr.bf16.mxu0 0
        %2992 = vmatpush1.bf16.msra.mxu0 %v2953
        %2993 = vmatprep.subr.bf16.mxu0 0
        %2994 = vmatpush1.bf16.msra.mxu0 %v2954
        %2995 = vmatprep.subr.bf16.mxu0 0
        %2996 = vmatpush1.bf16.msra.mxu0 %v2955
        %2997 = vmatprep.subr.bf16.mxu0 0
        %2998 = vmatpush1.bf16.msra.mxu0 %v2956
        %2999 = vmatprep.subr.bf16.mxu0 0
        %3000 = vmatpush1.bf16.msra.mxu0 %v2957
        %3001 = vmatprep.subr.bf16.mxu0 0
        %3002 = vmatpush1.bf16.msra.mxu0 %v2958
        %3003 = vmatprep.subr.bf16.mxu0 0
        %3004 = vmatpush1.bf16.msra.mxu0 %v2959
        %3005 = vmatprep.subr.bf16.mxu0 0
        %3006 = vmatpush1.bf16.msra.mxu0 %v2960
        %3007 = vmatprep.subr.bf16.mxu0 0
        %3008 = vmatpush1.bf16.msra.mxu0 %v2961
        %3009 = vmatprep.subr.bf16.mxu0 0
        %3010 = vmatpush1.bf16.msra.mxu0 %v2962
        %3011 = vmatprep.mubr.bf16.mxu0 %v2837
        %3012 = vmatmul.mubr.bf16.gmra.mrb[0].mxu0 %v2836
        %v3013 = vpop.f32.mrb[0].mxu0
        %v3014 = vadd.f32 %v2881, %v3013
        %v3015 = vpop.f32.mrb[0].mxu0
        %v3016 = vpop.f32.mrb[0].mxu0
        %v3017 = vadd.f32 %v2881, %v3016
        %v3018 = vpop.f32.mrb[0].mxu0
        %3019 = vmatprep.mubr.bf16.mxu0 %v2839
        %3020 = vmatmul.mubr.bf16.gmra.mrb[0].mxu0 %v2838
        %v3021 = vpop.f32.mrb[0].mxu0
        %v3022 = vadd.f32 %v2881, %v3021
        %v3023 = vpop.f32.mrb[0].mxu0
        %v3024 = vpop.f32.mrb[0].mxu0
        %v3025 = vadd.f32 %v2881, %v3024
        %v3026 = vpop.f32.mrb[0].mxu0
        %3027 = vmatprep.mubr.bf16.mxu0 %v2841
        %3028 = vmatmul.mubr.bf16.gmra.mrb[0].mxu0 %v2840
        %v3029 = vpop.f32.mrb[0].mxu0
        %v3030 = vadd.f32 %v2881, %v3029
        %v3031 = vpop.f32.mrb[0].mxu0
        %v3032 = vpop.f32.mrb[0].mxu0
        %v3033 = vadd.f32 %v2881, %v3032
        %v3034 = vpop.f32.mrb[0].mxu0
        %3035 = vmatprep.mubr.bf16.mxu0 %v2843
        %3036 = vmatmul.mubr.bf16.gmra.mrb[0].mxu0 %v2842
        %v3037 = vpop.f32.mrb[0].mxu0
        %v3038 = vadd.f32 %v2881, %v3037
        %v3039 = vpop.f32.mrb[0].mxu0
        %v3040 = vpop.f32.mrb[0].mxu0
        %v3041 = vadd.f32 %v2881, %v3040
        %v3042 = vpop.f32.mrb[0].mxu0
        %3043 = vdwg.mxu0
        %v3044 = vmul.f32 %v3014, 0.5
        %v3045 = vmul.f32 %v3017, 0.5
        %v3046 = vmul.f32 %v3022, 0.5
        %v3047 = vmul.f32 %v3025, 0.5
        %v3048 = vmul.f32 %v3030, 0.5
        %v3049 = vmul.f32 %v3033, 0.5
        %v3050 = vmul.f32 %v3038, 0.5
        %v3051 = vmul.f32 %v3041, 0.5
        %v3052 = vmul.f32 %v3014, 0.044715
        %v3053 = vmul.f32 %v3017, 0.044715
        %v3054 = vmul.f32 %v3022, 0.044715
        %v3055 = vmul.f32 %v3025, 0.044715
        %v3056 = vmul.f32 %v3030, 0.044715
        %v3057 = vmul.f32 %v3033, 0.044715
        %v3058 = vmul.f32 %v3038, 0.044715
        %v3059 = vmul.f32 %v3041, 0.044715
        %v3060 = vmul.f32 %v3052, %v3014
        %v3061 = vmul.f32 %v3053, %v3017
        %v3062 = vmul.f32 %v3054, %v3022
        %v3063 = vmul.f32 %v3055, %v3025
        %v3064 = vmul.f32 %v3056, %v3030
        %v3065 = vmul.f32 %v3057, %v3033
        %v3066 = vmul.f32 %v3058, %v3038
        %v3067 = vmul.f32 %v3059, %v3041
        %v3068 = vmul.f32 %v3060, %v3014
        %v3069 = vmul.f32 %v3061, %v3017
        %v3070 = vmul.f32 %v3062, %v3022
        %v3071 = vmul.f32 %v3063, %v3025
        %v3072 = vmul.f32 %v3064, %v3030
        %v3073 = vmul.f32 %v3065, %v3033
        %v3074 = vmul.f32 %v3066, %v3038
        %v3075 = vmul.f32 %v3067, %v3041
        %v3076 = vadd.f32 %v3014, %v3068
        %v3077 = vadd.f32 %v3017, %v3069
        %v3078 = vadd.f32 %v3022, %v3070
        %v3079 = vadd.f32 %v3025, %v3071
        %v3080 = vadd.f32 %v3030, %v3072
        %v3081 = vadd.f32 %v3033, %v3073
        %v3082 = vadd.f32 %v3038, %v3074
        %v3083 = vadd.f32 %v3041, %v3075
        %v3084 = vmul.f32 %v3076, 0.7978846
        %v3085 = vmul.f32 %v3077, 0.7978846
        %v3086 = vmul.f32 %v3078, 0.7978846
        %v3087 = vmul.f32 %v3079, 0.7978846
        %v3088 = vmul.f32 %v3080, 0.7978846
        %v3089 = vmul.f32 %v3081, 0.7978846
        %v3090 = vmul.f32 %v3082, 0.7978846
        %v3091 = vmul.f32 %v3083, 0.7978846
        %v3092 = vtanh.pop %v3084
        %v3093 = vtanh.pop %v3085
        %v3094 = vtanh.pop %v3086
        %v3095 = vtanh.pop %v3087
        %v3096 = vtanh.pop %v3088
        %v3097 = vtanh.pop %v3089
        %v3098 = vtanh.pop %v3090
        %v3099 = vtanh.pop %v3091
        %v3100 = vadd.f32 %v3092, 1.0
        %v3101 = vadd.f32 %v3093, 1.0
        %v3102 = vadd.f32 %v3094, 1.0
        %v3103 = vadd.f32 %v3095, 1.0
        %v3104 = vadd.f32 %v3096, 1.0
        %v3105 = vadd.f32 %v3097, 1.0
        %v3106 = vadd.f32 %v3098, 1.0
        %v3107 = vadd.f32 %v3099, 1.0
        %v3108 = vmul.f32 %v3044, %v3100
        %v3109 = vmul.f32 %v3045, %v3101
        %v3110 = vmul.f32 %v3046, %v3102
        %v3111 = vmul.f32 %v3047, %v3103
        %v3112 = vmul.f32 %v3048, %v3104
        %v3113 = vmul.f32 %v3049, %v3105
        %v3114 = vmul.f32 %v3050, %v3106
        %v3115 = vmul.f32 %v3051, %v3107
        %v3116 = vld [vmem:[%s7] sm:$0x1]
        %v3117 = vld [vmem:[%s8] sm:$0x1]
        %3118 = vadd.xlane.f32.xlu0 %v3108
        %v3119 = vpop.xlane.xlu0 %3118
        %3120 = vadd.xlane.f32.xlu0 %v3109
        %v3121 = vpop.xlane.xlu0 %3120
        %3122 = vadd.xlane.f32.xlu0 %v3110
        %v3123 = vpop.xlane.xlu0 %3122
        %3124 = vadd.xlane.f32.xlu0 %v3111
        %v3125 = vpop.xlane.xlu0 %3124
        %3126 = vadd.xlane.f32.xlu0 %v3112
        %v3127 = vpop.xlane.xlu0 %3126
        %3128 = vadd.xlane.f32.xlu0 %v3113
        %v3129 = vpop.xlane.xlu0 %3128
        %3130 = vadd.xlane.f32.xlu0 %v3114
        %v3131 = vpop.xlane.xlu0 %3130
        %3132 = vadd.xlane.f32.xlu0 %v3115
        %v3133 = vpop.xlane.xlu0 %3132
        %v3134 = vrcp.pop 128.0
        %v3135 = vmul.f32 %v3119, %v3134
        %v3136 = vmul.f32 %v3121, %v3134
        %v3137 = vmul.f32 %v3123, %v3134
        %v3138 = vmul.f32 %v3125, %v3134
        %v3139 = vmul.f32 %v3127, %v3134
        %v3140 = vmul.f32 %v3129, %v3134
        %v3141 = vmul.f32 %v3131, %v3134
        %v3142 = vmul.f32 %v3133, %v3134
        %v3143 = vsub.f32 %v3108, %v3135
        %v3144 = vsub.f32 %v3109, %v3136
        %v3145 = vsub.f32 %v3110, %v3137
        %v3146 = vsub.f32 %v3111, %v3138
        %v3147 = vsub.f32 %v3112, %v3139
        %v3148 = vsub.f32 %v3113, %v3140
        %v3149 = vsub.f32 %v3114, %v3141
        %v3150 = vsub.f32 %v3115, %v3142
        %v3151 = vmul.f32 %v3143, %v3143
        %v3152 = vmul.f32 %v3144, %v3144
        %v3153 = vmul.f32 %v3145, %v3145
        %v3154 = vmul.f32 %v3146, %v3146
        %v3155 = vmul.f32 %v3147, %v3147
        %v3156 = vmul.f32 %v3148, %v3148
        %v3157 = vmul.f32 %v3149, %v3149
        %v3158 = vmul.f32 %v3150, %v3150
        %3159 = vadd.xlane.f32.xlu0 %v3151
        %v3160 = vpop.xlane.xlu0 %3159
        %3161 = vadd.xlane.f32.xlu0 %v3152
        %v3162 = vpop.xlane.xlu0 %3161
        %3163 = vadd.xlane.f32.xlu0 %v3153
        %v3164 = vpop.xlane.xlu0 %3163
        %3165 = vadd.xlane.f32.xlu0 %v3154
        %v3166 = vpop.xlane.xlu0 %3165
        %3167 = vadd.xlane.f32.xlu0 %v3155
        %v3168 = vpop.xlane.xlu0 %3167
        %3169 = vadd.xlane.f32.xlu0 %v3156
        %v3170 = vpop.xlane.xlu0 %3169
        %3171 = vadd.xlane.f32.xlu0 %v3157
        %v3172 = vpop.xlane.xlu0 %3171
        %3173 = vadd.xlane.f32.xlu0 %v3158
        %v3174 = vpop.xlane.xlu0 %3173
        %v3175 = vmul.f32 %v3160, %v3134
        %v3176 = vmul.f32 %v3162, %v3134
        %v3177 = vmul.f32 %v3164, %v3134
        %v3178 = vmul.f32 %v3166, %v3134
        %v3179 = vmul.f32 %v3168, %v3134
        %v3180 = vmul.f32 %v3170, %v3134
        %v3181 = vmul.f32 %v3172, %v3134
        %v3182 = vmul.f32 %v3174, %v3134
        %v3183 = vadd.f32 %v3175, 1e-05
        %v3184 = vadd.f32 %v3176, 1e-05
        %v3185 = vadd.f32 %v3177, 1e-05
        %v3186 = vadd.f32 %v3178, 1e-05
        %v3187 = vadd.f32 %v3179, 1e-05
        %v3188 = vadd.f32 %v3180, 1e-05
        %v3189 = vadd.f32 %v3181, 1e-05
        %v3190 = vadd.f32 %v3182, 1e-05
        %v3191 = vrsqrt.pop %v3183
        %v3192 = vrsqrt.pop %v3184
        %v3193 = vrsqrt.pop %v3185
        %v3194 = vrsqrt.pop %v3186
        %v3195 = vrsqrt.pop %v3187
        %v3196 = vrsqrt.pop %v3188
        %v3197 = vrsqrt.pop %v3189
        %v3198 = vrsqrt.pop %v3190
        %v3199 = vmul.f32 %v3143, %v3191
        %v3200 = vmul.f32 %v3144, %v3192
        %v3201 = vmul.f32 %v3145, %v3193
        %v3202 = vmul.f32 %v3146, %v3194
        %v3203 = vmul.f32 %v3147, %v3195
        %v3204 = vmul.f32 %v3148, %v3196
        %v3205 = vmul.f32 %v3149, %v3197
        %v3206 = vmul.f32 %v3150, %v3198
        %v3208 = vlaneseq
        %v3209 = vshrl.u32 %v3208, 7
        %v3210 = vsub.s32 0, %v3209
        %v3211 = vrot.slane %v3116, %v3210
        %v3213 = vmul.f32 %v3199, %v3211
        %v3214 = vmul.f32 %v3200, %v3211
        %v3215 = vmul.f32 %v3201, %v3211
        %v3216 = vmul.f32 %v3202, %v3211
        %v3217 = vmul.f32 %v3203, %v3211
        %v3218 = vmul.f32 %v3204, %v3211
        %v3219 = vmul.f32 %v3205, %v3211
        %v3220 = vmul.f32 %v3206, %v3211
        %v3222 = vlaneseq
        %v3223 = vshrl.u32 %v3222, 7
        %v3224 = vsub.s32 0, %v3223
        %v3225 = vrot.slane %v3117, %v3224
        %v3227 = vadd.f32 %v3213, %v3225
        %v3228 = vadd.f32 %v3214, %v3225
        %v3229 = vadd.f32 %v3215, %v3225
        %v3230 = vadd.f32 %v3216, %v3225
        %v3231 = vadd.f32 %v3217, %v3225
        %v3232 = vadd.f32 %v3218, %v3225
        %v3233 = vadd.f32 %v3219, %v3225
        %v3234 = vadd.f32 %v3220, %v3225
        %v3235 = vpack.c.bf16 %v3228, %v3227
        %v3236 = vpack.c.bf16 %v3230, %v3229
        %v3237 = vpack.c.bf16 %v3232, %v3231
        %v3238 = vpack.c.bf16 %v3234, %v3233
        %v3239 = vld [vmem:[#allocation7] sm:$0xf]
        %v3240 = vld [vmem:[#allocation7 + $0x4] sm:$0xf]
        %v3241 = vld [vmem:[#allocation7 + $0x8] sm:$0xf]
        %v3242 = vld [vmem:[#allocation7 + $0xc] sm:$0xf]
        %v3243 = vld [vmem:[#allocation7 + $0x10] sm:$0xf]
        %v3244 = vld [vmem:[#allocation7 + $0x14] sm:$0xf]
        %v3245 = vld [vmem:[#allocation7 + $0x18] sm:$0xf]
        %v3246 = vld [vmem:[#allocation7 + $0x1c] sm:$0xf]
        %v3247 = vld [vmem:[#allocation7 + $0x20] sm:$0xf]
        %v3248 = vld [vmem:[#allocation7 + $0x24] sm:$0xf]
        %v3249 = vld [vmem:[#allocation7 + $0x28] sm:$0xf]
        %v3250 = vld [vmem:[#allocation7 + $0x2c] sm:$0xf]
        %v3251 = vld [vmem:[#allocation7 + $0x30] sm:$0xf]
        %v3252 = vld [vmem:[#allocation7 + $0x34] sm:$0xf]
        %v3253 = vld [vmem:[#allocation7 + $0x38] sm:$0xf]
        %v3254 = vld [vmem:[#allocation7 + $0x3c] sm:$0xf]
        %v3255 = vld [vmem:[%s10] sm:$0x1]
        %v3257 = vlaneseq
        %v3258 = vshrl.u32 %v3257, 7
        %v3259 = vsub.s32 0, %v3258
        %v3260 = vrot.slane %v3255, %v3259
        %v3278 = vunpack.c.l.b16 %v3239
        %v3279 = vunpack.c.l.b16 %v3240
        %v3280 = vunpack.c.l.b16 %v3241
        %v3281 = vunpack.c.l.b16 %v3242
        %v3282 = vunpack.c.l.b16 %v3243
        %v3283 = vunpack.c.l.b16 %v3244
        %v3284 = vunpack.c.l.b16 %v3245
        %v3285 = vunpack.c.l.b16 %v3246
        %v3286 = vunpack.c.l.b16 %v3247
        %v3287 = vunpack.c.l.b16 %v3248
        %v3288 = vunpack.c.l.b16 %v3249
        %v3289 = vunpack.c.l.b16 %v3250
        %v3290 = vunpack.c.l.b16 %v3251
        %v3291 = vunpack.c.l.b16 %v3252
        %v3292 = vunpack.c.l.b16 %v3253
        %v3293 = vunpack.c.l.b16 %v3254
        %v3294 = vpack.c.b16 %v3279, %v3278
        %v3295 = vpack.c.b16 %v3281, %v3280
        %v3296 = vpack.c.b16 %v3283, %v3282
        %v3297 = vpack.c.b16 %v3285, %v3284
        %v3298 = vpack.c.b16 %v3287, %v3286
        %v3299 = vpack.c.b16 %v3289, %v3288
        %v3300 = vpack.c.b16 %v3291, %v3290
        %v3301 = vpack.c.b16 %v3293, %v3292
        %3310 = vmatprep.subr.bf16.mxu0 0
        %3311 = vmatpush1.bf16.msra.mxu0 %v3294
        %3312 = vmatprep.subr.bf16.mxu0 0
        %3313 = vmatpush1.bf16.msra.mxu0 %v3295
        %3314 = vmatprep.subr.bf16.mxu0 0
        %3315 = vmatpush1.bf16.msra.mxu0 %v3296
        %3316 = vmatprep.subr.bf16.mxu0 0
        %3317 = vmatpush1.bf16.msra.mxu0 %v3297
        %3318 = vmatprep.subr.bf16.mxu0 0
        %3319 = vmatpush1.bf16.msra.mxu0 %v3298
        %3320 = vmatprep.subr.bf16.mxu0 0
        %3321 = vmatpush1.bf16.msra.mxu0 %v3299
        %3322 = vmatprep.subr.bf16.mxu0 0
        %3323 = vmatpush1.bf16.msra.mxu0 %v3300
        %3324 = vmatprep.subr.bf16.mxu0 0
        %3325 = vmatpush1.bf16.msra.mxu0 %v3301
        %3326 = vmatprep.subr.bf16.mxu0 0
        %3327 = vmatpush1.bf16.msra.mxu0 0
        %3328 = vmatprep.subr.bf16.mxu0 0
        %3329 = vmatpush1.bf16.msra.mxu0 0
        %3330 = vmatprep.subr.bf16.mxu0 0
        %3331 = vmatpush1.bf16.msra.mxu0 0
        %3332 = vmatprep.subr.bf16.mxu0 0
        %3333 = vmatpush1.bf16.msra.mxu0 0
        %3334 = vmatprep.subr.bf16.mxu0 0
        %3335 = vmatpush1.bf16.msra.mxu0 0
        %3336 = vmatprep.subr.bf16.mxu0 0
        %3337 = vmatpush1.bf16.msra.mxu0 0
        %3338 = vmatprep.subr.bf16.mxu0 0
        %3339 = vmatpush1.bf16.msra.mxu0 0
        %3340 = vmatprep.subr.bf16.mxu0 0
        %3341 = vmatpush1.bf16.msra.mxu0 0
        %3342 = vmatprep.mubr.bf16.mxu0 0
        %3343 = vmatmul.mubr.bf16.gmra.mrb[0].mxu0 %v3235
        %v3344 = vpop.f32.mrb[0].mxu0
        %v3345 = vadd.f32 %v3260, %v3344
        %v3346 = vpop.f32.mrb[0].mxu0
        %v3347 = vpop.f32.mrb[0].mxu0
        %v3348 = vadd.f32 %v3260, %v3347
        %v3349 = vpop.f32.mrb[0].mxu0
        %3350 = vmatprep.mubr.bf16.mxu0 0
        %3351 = vmatmul.mubr.bf16.gmra.mrb[0].mxu0 %v3236
        %v3352 = vpop.f32.mrb[0].mxu0
        %v3353 = vadd.f32 %v3260, %v3352
        %v3354 = vpop.f32.mrb[0].mxu0
        %v3355 = vpop.f32.mrb[0].mxu0
        %v3356 = vadd.f32 %v3260, %v3355
        %v3357 = vpop.f32.mrb[0].mxu0
        %3358 = vmatprep.mubr.bf16.mxu0 0
        %3359 = vmatmul.mubr.bf16.gmra.mrb[0].mxu0 %v3237
        %v3360 = vpop.f32.mrb[0].mxu0
        %v3361 = vadd.f32 %v3260, %v3360
        %v3362 = vpop.f32.mrb[0].mxu0
        %v3363 = vpop.f32.mrb[0].mxu0
        %v3364 = vadd.f32 %v3260, %v3363
        %v3365 = vpop.f32.mrb[0].mxu0
        %3366 = vmatprep.mubr.bf16.mxu0 0
        %3367 = vmatmul.mubr.bf16.gmra.mrb[0].mxu0 %v3238
        %v3368 = vpop.f32.mrb[0].mxu0
        %v3369 = vadd.f32 %v3260, %v3368
        %v3370 = vpop.f32.mrb[0].mxu0
        %v3371 = vpop.f32.mrb[0].mxu0
        %v3372 = vadd.f32 %v3260, %v3371
        %v3373 = vpop.f32.mrb[0].mxu0
        %3374 = vdwg.mxu0
        %v3375 = vpack.c.bf16 %v3348, %v3345
        %v3376 = vpack.c.bf16 %v3356, %v3353
        %v3377 = vpack.c.bf16 %v3364, %v3361
        %v3378 = vpack.c.bf16 %v3372, %v3369
        %v3383 = vunpack.c.l.b16 %v3375
        %v3384 = vunpack.c.h.b16 %v3375
        %v3385 = vunpack.c.l.b16 %v3376
        %v3386 = vunpack.c.h.b16 %v3376
        %v3387 = vunpack.c.l.b16 %v3377
        %v3388 = vunpack.c.h.b16 %v3377
        %v3389 = vunpack.c.l.b16 %v3378
        %v3390 = vunpack.c.h.b16 %v3378
        %v3391 = vpack.c.b16 %v3383, %v3383
        %v3392 = vpack.c.b16 %v3384, %v3384
        %v3393 = vpack.c.b16 %v3385, %v3385
        %v3394 = vpack.c.b16 %v3386, %v3386
        %v3395 = vpack.c.b16 %v3387, %v3387
        %v3396 = vpack.c.b16 %v3388, %v3388
        %v3397 = vpack.c.b16 %v3389, %v3389
        %v3398 = vpack.c.b16 %v3390, %v3390
        %3407 = vst [vmem:[%s443] sm:$0xf] %v3391
        %3408 = vst [vmem:[%s443 + $0x4] sm:$0xf] %v3392
        %3409 = vst [vmem:[%s443 + $0x8] sm:$0xf] %v3393
        %3410 = vst [vmem:[%s443 + $0xc] sm:$0xf] %v3394
        %3411 = vst [vmem:[%s443 + $0x10] sm:$0xf] %v3395
        %3412 = vst [vmem:[%s443 + $0x14] sm:$0xf] %v3396
        %3413 = vst [vmem:[%s443 + $0x18] sm:$0xf] %v3397
        %3414 = vst [vmem:[%s443 + $0x1c] sm:$0xf] %v3398
        %p3415 = scmp.lt.s32.totalorder %s25, 1
        %s3416 = scalar_select %p3415, %s25, 1
        %s3417 = smul.addr %s3416, 8
        %s3418 = smul.addr %s3417, 4
        %s3419 = scalar_lea.vmem %s11, %s3418
        // Predicated region
        $region81: #{forward.2} parent=63 // pred_check
          %p3420 = pneg %p279
        $region82: #{forward.2} parent=63 // pred_check_branch
          %3422 = sbr.rel (%p3420) target = $region84
        $region83: #{forward.2} parent=63 // pred_region
          _
        $region84: #{forward.2} parent=63 // pred_fallthru
          _
      $region64: #{forward.2} parent=5 // pred_fallthru
        _
      %p3423 = scmp.le.s32.totalorder 2, %s20
      // Predicated region
      $region85: #{forward.2} parent=5 // pred_check
        %p3424 = pneg %p3423
      $region86: #{forward.2} parent=5 // pred_check_branch
        %3426 = sbr.rel (%p3424) target = $region88
      $region87: #{forward.2} parent=5 // pred_region
        %s3427 = ssub.s32 %s20, 2
        // Predicated region
        $region89: #{forward.2} parent=87 // pred_check
          %p3428 = pneg %p285
        $region90: #{forward.2} parent=87 // pred_check_branch
          %3430 = sbr.rel (%p3428) target = $region92
        $region91: #{forward.2} parent=87 // pred_region
          %p3431 = scmp.lt.s32.totalorder %s26, 1
          %s3432 = scalar_select %p3431, %s26, 1
          %s3433 = smul.addr %s3432, 8
          %s3434 = smul.addr %s3433, 4
          %s3435 = scalar_lea.vmem %s11, %s3434
        $region92: #{forward.2} parent=87 // pred_fallthru
          _
      $region88: #{forward.2} parent=5 // pred_fallthru
        _
    $region6: #{forward.2} parent=1 // loop_footer
      %s24 = sadd.s32 1, %s20
    $region7: #{forward.2} parent=1 // loop_footer_branch
      %19 = sbr.rel target = $region3
    $region8: #{forward.2} parent=1 // loop_exit
      _
    %3436 = vsyncpa [#allocation3], 1
    %s3437 = scalar_lea.sflag [#allocation3], 1
    %3438 = vsyncpa %s3437, 1
    %3439 = vsyncpa [#allocation5], 1
    %3440 = vsyncpa [#allocation8], 1

</llo_original>
